<compile_context>
chip_gen: v5e
topology: v5e:2x2
jax: 0.10.0
libtpu: 0.0.40
codegen_flags: <defaults>
</compile_context>

<pallas_src>
import functools
import warnings

import jax
import jax.numpy as jnp
from jax.experimental import pallas as pl
from jax.experimental.pallas import tpu as pltpu


# ---------------------------------------------------------------------------
# Kernel bodies
# ---------------------------------------------------------------------------
def _mlp_flat(x_ref, w1_ref, b1_ref, w2_ref, b2_ref):
    """Shared 2-layer MLP on one block of tile encodings.

    bf16 MXU operands (weights arrive pre-cast from the wrapper, x / h are
    cast here), f32 accumulation and f32 bias/tanh math.
    """
    x = x_ref[...].astype(w1_ref.dtype)
    h = jnp.dot(x, w1_ref[...], preferred_element_type=jnp.float32)
    h = jnp.tanh(h + b1_ref[...])
    flat = jnp.dot(h.astype(w2_ref.dtype), w2_ref[...],
                   preferred_element_type=jnp.float32)
    # TODO(synk): fold b2 into W2 (ones-column trick) if VALU becomes binding.
    return flat + b2_ref[...]


def _fused_strided_kernel(x_ref, w1_ref, b1_ref, w2_ref, b2_ref, o_ref,
                          *, rb, cols, t):
    """Fused tile assembly via per-sub-row slabs + sublane-strided stores.

    For each intra-tile row r, flat[:, r*T:(r+1)*T] reshaped to (rb, cols*T)
    is exactly the set of assembled-output rows {r, r+T, ..., r+(rb-1)*T},
    so a single strided store per r finishes the block with lane-dense
    (>=128-wide) writes and only one cheap minor-dim merge per r.
    """
    flat = _mlp_flat(x_ref, w1_ref, b1_ref, w2_ref, b2_ref)   # (rb*cols, T*T)
    for r in range(t):                                         # static unroll
        slab_r = flat[:, r * t:(r + 1) * t].reshape(rb, cols * t)
        o_ref[pl.ds(r, rb, stride=t), :] = slab_r.astype(o_ref.dtype)


def _fused_block_kernel(x_ref, w1_ref, b1_ref, w2_ref, b2_ref, o_ref,
                        *, rb, cols, t):
    """Fused tile assembly via a single middle-dim swap (fallback fused path)."""
    flat = _mlp_flat(x_ref, w1_ref, b1_ref, w2_ref, b2_ref)   # (rb*cols, T*T)
    slab = (flat.reshape(rb, cols, t, t)
                .swapaxes(1, 2)                                # (rb, T, cols, T)
                .reshape(rb * t, cols * t))
    o_ref[...] = slab.astype(o_ref.dtype)


def _flat_kernel(x_ref, w1_ref, b1_ref, w2_ref, b2_ref, o_ref):
    """Per-tile flat outputs; tile assembly happens in XLA afterwards."""
    o_ref[...] = _mlp_flat(x_ref, w1_ref, b1_ref, w2_ref, b2_ref).astype(o_ref.dtype)


# ---------------------------------------------------------------------------
# Specs / heuristics
# ---------------------------------------------------------------------------
def _weight_specs(d_in, hidden, t, single_buffer):
    # Constant index_map => weights fetched once, VMEM-resident across steps.
    extra = dict(pipeline_mode=pl.Buffered(1)) if single_buffer else {}
    return [
        pl.BlockSpec((d_in, hidden), lambda i: (0, 0), **extra),   # W1
        pl.BlockSpec((1, hidden), lambda i: (0, 0), **extra),      # b1
        pl.BlockSpec((hidden, t * t), lambda i: (0, 0), **extra),  # W2
        pl.BlockSpec((1, t * t), lambda i: (0, 0), **extra),       # b2
    ]


def _vmem_info():
    """Generation-aware (scoped VMEM limit, output-block cap) in bytes."""
    phys = 64 * 1024 * 1024
    try:
        phys = int(pltpu.get_tpu_info().vmem_capacity_bytes)
    except Exception:
        pass
    limit = min(phys * 3 // 4, 96 * 1024 * 1024)       # headroom for compiler scratch
    out_cap = 4 * 1024 * 1024 if phys <= 64 * 1024 * 1024 else 8 * 1024 * 1024
    return limit, out_cap


def _pick_rows_per_block(tile_rows, cols, t, d_in, hidden, *, budget, out_cap,
                         out_itemsize, mxu_itemsize):
    """Largest tile-row block that divides tile_rows, keeps >= 4 grid steps
    (>= 2 per v7x TensorCore), satisfies sublane alignment (16 rows for bf16
    outputs), caps the output block, and fits the VMEM budget."""
    min_steps = min(4, tile_rows)
    row_align = 16 if out_itemsize == 2 else 8
    fixed = (2 * mxu_itemsize * (d_in * hidden + hidden * t * t)   # W1, W2
             + 2 * 4 * (hidden + t * t))                           # b1, b2

    def per_block_bytes(rb):
        return (2 * rb * cols * d_in * 4                 # x block, double-buffered
                + 2 * rb * t * cols * t * out_itemsize   # output block, double-buffered
                + rb * cols * hidden * (4 + mxu_itemsize)  # h (f32 + bf16 copy)
                + rb * cols * t * t * 4                   # flat intermediate
                + 2 * rb * t * cols * t * 4)              # assembly temporaries

    def aligned(rb):
        if (rb * cols) % 8 and rb != tile_rows:
            return False
        if (rb * t) % row_align and rb != tile_rows:
            return False
        return True

    divisors = [rb for rb in range(1, tile_rows + 1) if tile_rows % rb == 0]
    aligned_divs = [rb for rb in divisors if aligned(rb)] or divisors
    fits = [rb for rb in aligned_divs if fixed + per_block_bytes(rb) <= budget]
    good = [rb for rb in fits
            if tile_rows // rb >= min_steps
            and rb * t * cols * t * out_itemsize <= out_cap]
    if good:
        return max(good)
    if fits:
        return max(fits)
    return min(aligned_divs)          # smallest expressible footprint


# ---------------------------------------------------------------------------
# pallas_call wrappers
# ---------------------------------------------------------------------------
def _fused_call(x, w1, b1, w2, b2, *, tile_rows, cols, t, rb, out_dtype,
                vmem_limit, assembly, single_buffer_weights):
    _, d_in = x.shape
    hidden = w1.shape[1]
    body = _fused_strided_kernel if assembly == "strided" else _fused_block_kernel
    kernel = functools.partial(body, rb=rb, cols=cols, t=t)
    return pl.pallas_call(
        kernel,
        out_shape=jax.ShapeDtypeStruct((tile_rows * t, cols * t), out_dtype),
        grid_spec=pltpu.PrefetchScalarGridSpec(
            num_scalar_prefetch=0,
            grid=(tile_rows // rb,),
            in_specs=[pl.BlockSpec((rb * cols, d_in), lambda i: (i, 0))]
                     + _weight_specs(d_in, hidden, t, single_buffer_weights),
            out_specs=pl.BlockSpec((rb * t, cols * t), lambda i: (i, 0)),
        ),
        compiler_params=pltpu.CompilerParams(
            dimension_semantics=("parallel",),
            vmem_limit_bytes=vmem_limit,
        ),
    )(x, w1, b1, w2, b2)


def _flat_call(x, w1, b1, w2, b2, *, tile_rows, cols, t, rb, out_dtype,
               vmem_limit):
    n_tiles, d_in = x.shape
    hidden = w1.shape[1]
    tm = rb * cols
    flat = pl.pallas_call(
        _flat_kernel,
        out_shape=jax.ShapeDtypeStruct((n_tiles, t * t), out_dtype),
        grid_spec=pltpu.PrefetchScalarGridSpec(
            num_scalar_prefetch=0,
            grid=(n_tiles // tm,),
            in_specs=[pl.BlockSpec((tm, d_in), lambda i: (i, 0))]
                     + _weight_specs(d_in, hidden, t, False),
            out_specs=pl.BlockSpec((tm, t * t), lambda i: (i, 0)),
        ),
        compiler_params=pltpu.CompilerParams(
            dimension_semantics=("parallel",),
            vmem_limit_bytes=vmem_limit,
        ),
    )(x, w1, b1, w2, b2)
    tiles = flat.reshape(tile_rows, cols, t, t)
    return tiles.transpose(0, 2, 1, 3).reshape(tile_rows * t, cols * t)


def reference_forward(x, w1, b1, w2, b2, *, tile_rows, tile_cols, tile_size,
                      out_dtype=None):
    h = jnp.tanh(x @ w1 + b1)
    flat = h @ w2 + b2
    t = tile_size
    tiles = flat.reshape(tile_rows, tile_cols, t, t)
    out = tiles.transpose(0, 2, 1, 3).reshape(tile_rows * t, tile_cols * t)
    return out.astype(out_dtype or x.dtype)


def hypernetwork_forward(x, w1, b1, w2, b2, *, tile_rows, tile_cols, tile_size,
                         rows_per_block=None, out_dtype=None,
                         mxu_dtype=jnp.bfloat16,
                         min_pallas_output_bytes=1 << 20):
    """Predict the assembled (tile_rows*T, tile_cols*T) weight matrix from
    per-tile encodings x: (tile_rows*tile_cols, D_IN) via a shared 2-layer MLP.

    Pass out_dtype=jnp.bfloat16 to halve HBM writeback when the p-network
    accepts bf16 weights.  Problems whose output is smaller than
    `min_pallas_output_bytes` are dispatched to plain XLA (pallas_call
    overhead dominates there); pass 0 to force the Pallas kernel.
    """
    n_tiles, d_in = x.shape
    t, cols = tile_size, tile_cols
    assert n_tiles == tile_rows * tile_cols
    hidden = w1.shape[1]
    assert w1.shape == (d_in, hidden) and b1.shape == (1, hidden)
    assert w2.shape == (hidden, t * t) and b2.shape == (1, t * t)
    out_dtype = jnp.dtype(out_dtype or x.dtype)
    mxu_dtype = jnp.dtype(mxu_dtype)

    out_bytes = tile_rows * t * cols * t * out_dtype.itemsize
    if out_bytes < min_pallas_output_bytes:
        return reference_forward(x, w1, b1, w2, b2, tile_rows=tile_rows,
                                 tile_cols=tile_cols, tile_size=tile_size,
                                 out_dtype=out_dtype)

    # Cast MXU operands once; biases stay f32 for the VPU/EUP math.
    w1m, w2m = w1.astype(mxu_dtype), w2.astype(mxu_dtype)
    b1f, b2f = b1.astype(jnp.float32), b2.astype(jnp.float32)

    vmem_limit, out_cap = _vmem_info()
    rb = rows_per_block or _pick_rows_per_block(
        tile_rows, cols, t, d_in, hidden, budget=vmem_limit, out_cap=out_cap,
        out_itemsize=out_dtype.itemsize, mxu_itemsize=mxu_dtype.itemsize)
    assert tile_rows % rb == 0

    common = dict(tile_rows=tile_rows, cols=cols, t=t, rb=rb,
                  out_dtype=out_dtype, vmem_limit=vmem_limit)

    # Fused assembly only pays off when the final store is lane-dense.
    attempts = []
    if (cols * t) % 128 == 0:
        attempts.append(("fused-strided",
                         dict(assembly="strided", single_buffer_weights=True)))
        attempts.append(("fused-block",
                         dict(assembly="block", single_buffer_weights=False)))
    attempts.append(("flat", None))

    last_err = None
    for idx, (name, cfg) in enumerate(attempts):
        try:
            if cfg is None:
                out = _flat_call(x, w1m, b1f, w2m, b2f, **common)
            else:
                out = _fused_call(x, w1m, b1f, w2m, b2f, **common, **cfg)
            if idx > 0:
                # Mosaic lowering failures surface as several exception types,
                # so the catch below is broad -- but never silent.
                warnings.warn(
                    f"hypernetwork_forward: fell back to '{name}' path "
                    f"(previous path failed with: {last_err!r})")
            return out
        except Exception as e:          # noqa: BLE001 -- see warning above
            last_err = e
    raise last_err


# ---------------------------------------------------------------------------
# Demo / self-check
# ---------------------------------------------------------------------------
if __name__ == "__main__":
    # Predict a (512, 128) weight matrix from a 32x8 grid of 16x16 tiles; each
    # tile is described by a 32-dim encoding fed through a 64-wide MLP.
    TILE_SIZE = 16
    TILE_ROWS, TILE_COLS = 32, 8
    N_TILES = TILE_ROWS * TILE_COLS          # 256
    D_IN = 32                                # tile positional-encoding dim
    HIDDEN = 64                              # hypernetwork hidden width

    key = jax.random.PRNGKey(0)
    kx, k1, k2, k3, k4 = jax.random.split(key, 5)

    x = jax.random.normal(kx, (N_TILES, D_IN), dtype=jnp.float32)
    w1 = jax.random.normal(k1, (D_IN, HIDDEN), dtype=jnp.float32) * 0.1
    b1 = jax.random.normal(k2, (1, HIDDEN), dtype=jnp.float32) * 0.01
    w2 = jax.random.normal(k3, (HIDDEN, TILE_SIZE * TILE_SIZE), dtype=jnp.float32) * 0.1
    b2 = jax.random.normal(k4, (1, TILE_SIZE * TILE_SIZE), dtype=jnp.float32) * 0.01

    # The demo output (256 KiB) is below the real-use dispatch threshold, so
    # force the Pallas path to actually exercise the kernel here.
    out = hypernetwork_forward(
        x, w1, b1, w2, b2,
        tile_rows=TILE_ROWS, tile_cols=TILE_COLS, tile_size=TILE_SIZE,
        min_pallas_output_bytes=0)
    out = jax.block_until_ready(out)

    ref = reference_forward(
        x, w1, b1, w2, b2,
        tile_rows=TILE_ROWS, tile_cols=TILE_COLS, tile_size=TILE_SIZE)

    assert out.shape == (TILE_ROWS * TILE_SIZE, TILE_COLS * TILE_SIZE)
    # bf16 MXU operands vs. the f32 reference -> dtype-aware tolerance.
    assert jnp.allclose(out, ref, atol=5e-2, rtol=5e-2), \
        float(jnp.max(jnp.abs(out - ref)))

    print("KERNEL_OK")
</pallas_src>

<mosaic_0001>
module attributes {stable_mosaic.version = 11 : i64} {
  func.func @_fused_strided_kernel(%arg0: i32, %arg1: memref<64x32xf32, #tpu.memory_space<vmem>>, %arg2: memref<32x64xbf16, #tpu.memory_space<vmem>>, %arg3: memref<1x64xf32, #tpu.memory_space<vmem>>, %arg4: memref<64x256xbf16, #tpu.memory_space<vmem>>, %arg5: memref<1x256xf32, #tpu.memory_space<vmem>>, %arg6: memref<128x128xf32, #tpu.memory_space<vmem>>) attributes {dimension_semantics = [#tpu.dimension_semantics<parallel>], iteration_bounds = array<i64: 4>, scalar_prefetch = 0 : i64, scratch_operands = 0 : i64, tpu.core_type = #tpu.core_type<tc>, window_params = [{transform_indices = @transform_0, window_bounds = array<i64: 64, 32>}, {pipeline_mode = #tpu.pipeline_mode<synchronous>, transform_indices = @transform_1, window_bounds = array<i64: 32, 64>}, {pipeline_mode = #tpu.pipeline_mode<synchronous>, transform_indices = @transform_2, window_bounds = array<i64: 1, 64>}, {pipeline_mode = #tpu.pipeline_mode<synchronous>, transform_indices = @transform_3, window_bounds = array<i64: 64, 256>}, {pipeline_mode = #tpu.pipeline_mode<synchronous>, transform_indices = @transform_4, window_bounds = array<i64: 1, 256>}, {transform_indices = @transform_5, window_bounds = array<i64: 128, 128>}]} {
    %c0 = arith.constant 0 : index
    %c0_0 = arith.constant 0 : index
    %0 = vector.load %arg1[%c0, %c0_0] : memref<64x32xf32, #tpu.memory_space<vmem>>, vector<64x32xf32>
    %1 = arith.truncf %0 : vector<64x32xf32> to vector<64x32xbf16>
    %c0_1 = arith.constant 0 : index
    %c0_2 = arith.constant 0 : index
    %2 = vector.load %arg2[%c0_1, %c0_2] : memref<32x64xbf16, #tpu.memory_space<vmem>>, vector<32x64xbf16>
    %cst = arith.constant dense<0.000000e+00> : vector<64x64xf32>
    %3 = tpu.matmul %1, %2, %cst {dimension_numbers = #tpu.dot_dimension_numbers<[1], [0], [0], [1], [0, 0, 1, 1], [], []>} : vector<64x32xbf16>, vector<32x64xbf16>, vector<64x64xf32> -> vector<64x64xf32>
    %c0_3 = arith.constant 0 : index
    %c0_4 = arith.constant 0 : index
    %4 = vector.load %arg3[%c0_3, %c0_4] : memref<1x64xf32, #tpu.memory_space<vmem>>, vector<1x64xf32>
    %5 = vector.broadcast %4 : vector<1x64xf32> to vector<64x64xf32>
    %6 = arith.addf %3, %5 : vector<64x64xf32>
    %7 = math.tanh %6 : vector<64x64xf32>
    %8 = arith.truncf %7 : vector<64x64xf32> to vector<64x64xbf16>
    %c0_5 = arith.constant 0 : index
    %c0_6 = arith.constant 0 : index
    %9 = vector.load %arg4[%c0_5, %c0_6] : memref<64x256xbf16, #tpu.memory_space<vmem>>, vector<64x256xbf16>
    %cst_7 = arith.constant dense<0.000000e+00> : vector<64x256xf32>
    %10 = tpu.matmul %8, %9, %cst_7 {dimension_numbers = #tpu.dot_dimension_numbers<[1], [0], [0], [1], [0, 0, 1, 1], [], []>} : vector<64x64xbf16>, vector<64x256xbf16>, vector<64x256xf32> -> vector<64x256xf32>
    %c0_8 = arith.constant 0 : index
    %c0_9 = arith.constant 0 : index
    %11 = vector.load %arg5[%c0_8, %c0_9] : memref<1x256xf32, #tpu.memory_space<vmem>>, vector<1x256xf32>
    %12 = vector.broadcast %11 : vector<1x256xf32> to vector<64x256xf32>
    %13 = arith.addf %10, %12 : vector<64x256xf32>
    %14 = vector.extract_strided_slice %13 {offsets = [0, 0], sizes = [64, 16], strides = [1, 1]} : vector<64x256xf32> to vector<64x16xf32>
    %15 = vector.shape_cast %14 : vector<64x16xf32> to vector<8x128xf32>
    %c0_10 = arith.constant 0 : index
    %c0_11 = arith.constant 0 : index
    %16 = tpu.strided_load %arg6[%c0_10, %c0_11] {strides = array<i32: 16, 1>} : memref<128x128xf32, #tpu.memory_space<vmem>>, vector<8x128xf32>
    tpu.strided_store %arg6[%c0_10, %c0_11], %15 {strides = array<i32: 16, 1>} : memref<128x128xf32, #tpu.memory_space<vmem>>, vector<8x128xf32>
    %17 = vector.extract_strided_slice %13 {offsets = [0, 16], sizes = [64, 16], strides = [1, 1]} : vector<64x256xf32> to vector<64x16xf32>
    %18 = vector.shape_cast %17 : vector<64x16xf32> to vector<8x128xf32>
    %c1 = arith.constant 1 : index
    %c0_12 = arith.constant 0 : index
    %19 = tpu.strided_load %arg6[%c1, %c0_12] {strides = array<i32: 16, 1>} : memref<128x128xf32, #tpu.memory_space<vmem>>, vector<8x128xf32>
    tpu.strided_store %arg6[%c1, %c0_12], %18 {strides = array<i32: 16, 1>} : memref<128x128xf32, #tpu.memory_space<vmem>>, vector<8x128xf32>
    %20 = vector.extract_strided_slice %13 {offsets = [0, 32], sizes = [64, 16], strides = [1, 1]} : vector<64x256xf32> to vector<64x16xf32>
    %21 = vector.shape_cast %20 : vector<64x16xf32> to vector<8x128xf32>
    %c2 = arith.constant 2 : index
    %c0_13 = arith.constant 0 : index
    %22 = tpu.strided_load %arg6[%c2, %c0_13] {strides = array<i32: 16, 1>} : memref<128x128xf32, #tpu.memory_space<vmem>>, vector<8x128xf32>
    tpu.strided_store %arg6[%c2, %c0_13], %21 {strides = array<i32: 16, 1>} : memref<128x128xf32, #tpu.memory_space<vmem>>, vector<8x128xf32>
    %23 = vector.extract_strided_slice %13 {offsets = [0, 48], sizes = [64, 16], strides = [1, 1]} : vector<64x256xf32> to vector<64x16xf32>
    %24 = vector.shape_cast %23 : vector<64x16xf32> to vector<8x128xf32>
    %c3 = arith.constant 3 : index
    %c0_14 = arith.constant 0 : index
    %25 = tpu.strided_load %arg6[%c3, %c0_14] {strides = array<i32: 16, 1>} : memref<128x128xf32, #tpu.memory_space<vmem>>, vector<8x128xf32>
    tpu.strided_store %arg6[%c3, %c0_14], %24 {strides = array<i32: 16, 1>} : memref<128x128xf32, #tpu.memory_space<vmem>>, vector<8x128xf32>
    %26 = vector.extract_strided_slice %13 {offsets = [0, 64], sizes = [64, 16], strides = [1, 1]} : vector<64x256xf32> to vector<64x16xf32>
    %27 = vector.shape_cast %26 : vector<64x16xf32> to vector<8x128xf32>
    %c4 = arith.constant 4 : index
    %c0_15 = arith.constant 0 : index
    %28 = tpu.strided_load %arg6[%c4, %c0_15] {strides = array<i32: 16, 1>} : memref<128x128xf32, #tpu.memory_space<vmem>>, vector<8x128xf32>
    tpu.strided_store %arg6[%c4, %c0_15], %27 {strides = array<i32: 16, 1>} : memref<128x128xf32, #tpu.memory_space<vmem>>, vector<8x128xf32>
    %29 = vector.extract_strided_slice %13 {offsets = [0, 80], sizes = [64, 16], strides = [1, 1]} : vector<64x256xf32> to vector<64x16xf32>
    %30 = vector.shape_cast %29 : vector<64x16xf32> to vector<8x128xf32>
    %c5 = arith.constant 5 : index
    %c0_16 = arith.constant 0 : index
    %31 = tpu.strided_load %arg6[%c5, %c0_16] {strides = array<i32: 16, 1>} : memref<128x128xf32, #tpu.memory_space<vmem>>, vector<8x128xf32>
    tpu.strided_store %arg6[%c5, %c0_16], %30 {strides = array<i32: 16, 1>} : memref<128x128xf32, #tpu.memory_space<vmem>>, vector<8x128xf32>
    %32 = vector.extract_strided_slice %13 {offsets = [0, 96], sizes = [64, 16], strides = [1, 1]} : vector<64x256xf32> to vector<64x16xf32>
    %33 = vector.shape_cast %32 : vector<64x16xf32> to vector<8x128xf32>
    %c6 = arith.constant 6 : index
    %c0_17 = arith.constant 0 : index
    %34 = tpu.strided_load %arg6[%c6, %c0_17] {strides = array<i32: 16, 1>} : memref<128x128xf32, #tpu.memory_space<vmem>>, vector<8x128xf32>
    tpu.strided_store %arg6[%c6, %c0_17], %33 {strides = array<i32: 16, 1>} : memref<128x128xf32, #tpu.memory_space<vmem>>, vector<8x128xf32>
    %35 = vector.extract_strided_slice %13 {offsets = [0, 112], sizes = [64, 16], strides = [1, 1]} : vector<64x256xf32> to vector<64x16xf32>
    %36 = vector.shape_cast %35 : vector<64x16xf32> to vector<8x128xf32>
    %c7 = arith.constant 7 : index
    %c0_18 = arith.constant 0 : index
    %37 = tpu.strided_load %arg6[%c7, %c0_18] {strides = array<i32: 16, 1>} : memref<128x128xf32, #tpu.memory_space<vmem>>, vector<8x128xf32>
    tpu.strided_store %arg6[%c7, %c0_18], %36 {strides = array<i32: 16, 1>} : memref<128x128xf32, #tpu.memory_space<vmem>>, vector<8x128xf32>
    %38 = vector.extract_strided_slice %13 {offsets = [0, 128], sizes = [64, 16], strides = [1, 1]} : vector<64x256xf32> to vector<64x16xf32>
    %39 = vector.shape_cast %38 : vector<64x16xf32> to vector<8x128xf32>
    %c8 = arith.constant 8 : index
    %c0_19 = arith.constant 0 : index
    %40 = tpu.strided_load %arg6[%c8, %c0_19] {strides = array<i32: 16, 1>} : memref<128x128xf32, #tpu.memory_space<vmem>>, vector<8x128xf32>
    tpu.strided_store %arg6[%c8, %c0_19], %39 {strides = array<i32: 16, 1>} : memref<128x128xf32, #tpu.memory_space<vmem>>, vector<8x128xf32>
    %41 = vector.extract_strided_slice %13 {offsets = [0, 144], sizes = [64, 16], strides = [1, 1]} : vector<64x256xf32> to vector<64x16xf32>
    %42 = vector.shape_cast %41 : vector<64x16xf32> to vector<8x128xf32>
    %c9 = arith.constant 9 : index
    %c0_20 = arith.constant 0 : index
    %43 = tpu.strided_load %arg6[%c9, %c0_20] {strides = array<i32: 16, 1>} : memref<128x128xf32, #tpu.memory_space<vmem>>, vector<8x128xf32>
    tpu.strided_store %arg6[%c9, %c0_20], %42 {strides = array<i32: 16, 1>} : memref<128x128xf32, #tpu.memory_space<vmem>>, vector<8x128xf32>
    %44 = vector.extract_strided_slice %13 {offsets = [0, 160], sizes = [64, 16], strides = [1, 1]} : vector<64x256xf32> to vector<64x16xf32>
    %45 = vector.shape_cast %44 : vector<64x16xf32> to vector<8x128xf32>
    %c10 = arith.constant 10 : index
    %c0_21 = arith.constant 0 : index
    %46 = tpu.strided_load %arg6[%c10, %c0_21] {strides = array<i32: 16, 1>} : memref<128x128xf32, #tpu.memory_space<vmem>>, vector<8x128xf32>
    tpu.strided_store %arg6[%c10, %c0_21], %45 {strides = array<i32: 16, 1>} : memref<128x128xf32, #tpu.memory_space<vmem>>, vector<8x128xf32>
    %47 = vector.extract_strided_slice %13 {offsets = [0, 176], sizes = [64, 16], strides = [1, 1]} : vector<64x256xf32> to vector<64x16xf32>
    %48 = vector.shape_cast %47 : vector<64x16xf32> to vector<8x128xf32>
    %c11 = arith.constant 11 : index
    %c0_22 = arith.constant 0 : index
    %49 = tpu.strided_load %arg6[%c11, %c0_22] {strides = array<i32: 16, 1>} : memref<128x128xf32, #tpu.memory_space<vmem>>, vector<8x128xf32>
    tpu.strided_store %arg6[%c11, %c0_22], %48 {strides = array<i32: 16, 1>} : memref<128x128xf32, #tpu.memory_space<vmem>>, vector<8x128xf32>
    %50 = vector.extract_strided_slice %13 {offsets = [0, 192], sizes = [64, 16], strides = [1, 1]} : vector<64x256xf32> to vector<64x16xf32>
    %51 = vector.shape_cast %50 : vector<64x16xf32> to vector<8x128xf32>
    %c12 = arith.constant 12 : index
    %c0_23 = arith.constant 0 : index
    %52 = tpu.strided_load %arg6[%c12, %c0_23] {strides = array<i32: 16, 1>} : memref<128x128xf32, #tpu.memory_space<vmem>>, vector<8x128xf32>
    tpu.strided_store %arg6[%c12, %c0_23], %51 {strides = array<i32: 16, 1>} : memref<128x128xf32, #tpu.memory_space<vmem>>, vector<8x128xf32>
    %53 = vector.extract_strided_slice %13 {offsets = [0, 208], sizes = [64, 16], strides = [1, 1]} : vector<64x256xf32> to vector<64x16xf32>
    %54 = vector.shape_cast %53 : vector<64x16xf32> to vector<8x128xf32>
    %c13 = arith.constant 13 : index
    %c0_24 = arith.constant 0 : index
    %55 = tpu.strided_load %arg6[%c13, %c0_24] {strides = array<i32: 16, 1>} : memref<128x128xf32, #tpu.memory_space<vmem>>, vector<8x128xf32>
    tpu.strided_store %arg6[%c13, %c0_24], %54 {strides = array<i32: 16, 1>} : memref<128x128xf32, #tpu.memory_space<vmem>>, vector<8x128xf32>
    %56 = vector.extract_strided_slice %13 {offsets = [0, 224], sizes = [64, 16], strides = [1, 1]} : vector<64x256xf32> to vector<64x16xf32>
    %57 = vector.shape_cast %56 : vector<64x16xf32> to vector<8x128xf32>
    %c14 = arith.constant 14 : index
    %c0_25 = arith.constant 0 : index
    %58 = tpu.strided_load %arg6[%c14, %c0_25] {strides = array<i32: 16, 1>} : memref<128x128xf32, #tpu.memory_space<vmem>>, vector<8x128xf32>
    tpu.strided_store %arg6[%c14, %c0_25], %57 {strides = array<i32: 16, 1>} : memref<128x128xf32, #tpu.memory_space<vmem>>, vector<8x128xf32>
    %59 = vector.extract_strided_slice %13 {offsets = [0, 240], sizes = [64, 16], strides = [1, 1]} : vector<64x256xf32> to vector<64x16xf32>
    %60 = vector.shape_cast %59 : vector<64x16xf32> to vector<8x128xf32>
    %c15 = arith.constant 15 : index
    %c0_26 = arith.constant 0 : index
    %61 = tpu.strided_load %arg6[%c15, %c0_26] {strides = array<i32: 16, 1>} : memref<128x128xf32, #tpu.memory_space<vmem>>, vector<8x128xf32>
    tpu.strided_store %arg6[%c15, %c0_26], %60 {strides = array<i32: 16, 1>} : memref<128x128xf32, #tpu.memory_space<vmem>>, vector<8x128xf32>
    return
  }
  func.func @transform_0(%arg0: i32) -> (i32, i32) {
    %c0_i32 = arith.constant 0 : i32
    %c0_i32_0 = arith.constant 0 : i32
    return %arg0, %c0_i32 : i32, i32
  }
  func.func @transform_1(%arg0: i32) -> (i32, i32) {
    %c0_i32 = arith.constant 0 : i32
    %c0_i32_0 = arith.constant 0 : i32
    %c0_i32_1 = arith.constant 0 : i32
    return %c0_i32, %c0_i32_0 : i32, i32
  }
  func.func @transform_2(%arg0: i32) -> (i32, i32) {
    %c0_i32 = arith.constant 0 : i32
    %c0_i32_0 = arith.constant 0 : i32
    %c0_i32_1 = arith.constant 0 : i32
    return %c0_i32, %c0_i32_0 : i32, i32
  }
  func.func @transform_3(%arg0: i32) -> (i32, i32) {
    %c0_i32 = arith.constant 0 : i32
    %c0_i32_0 = arith.constant 0 : i32
    %c0_i32_1 = arith.constant 0 : i32
    return %c0_i32, %c0_i32_0 : i32, i32
  }
  func.func @transform_4(%arg0: i32) -> (i32, i32) {
    %c0_i32 = arith.constant 0 : i32
    %c0_i32_0 = arith.constant 0 : i32
    %c0_i32_1 = arith.constant 0 : i32
    return %c0_i32, %c0_i32_0 : i32, i32
  }
  func.func @transform_5(%arg0: i32) -> (i32, i32) {
    %c0_i32 = arith.constant 0 : i32
    %c0_i32_0 = arith.constant 0 : i32
    return %arg0, %c0_i32 : i32, i32
  }
}

module attributes {stable_mosaic.version = 11 : i64} {
  func.func @_fused_block_kernel(%arg0: i32, %arg1: memref<64x32xf32, #tpu.memory_space<vmem>>, %arg2: memref<32x64xbf16, #tpu.memory_space<vmem>>, %arg3: memref<1x64xf32, #tpu.memory_space<vmem>>, %arg4: memref<64x256xbf16, #tpu.memory_space<vmem>>, %arg5: memref<1x256xf32, #tpu.memory_space<vmem>>, %arg6: memref<128x128xf32, #tpu.memory_space<vmem>>) attributes {dimension_semantics = [#tpu.dimension_semantics<parallel>], iteration_bounds = array<i64: 4>, scalar_prefetch = 0 : i64, scratch_operands = 0 : i64, tpu.core_type = #tpu.core_type<tc>, window_params = [{transform_indices = @transform_0, window_bounds = array<i64: 64, 32>}, {pipeline_mode = #tpu.pipeline_mode<synchronous>, transform_indices = @transform_1, window_bounds = array<i64: 32, 64>}, {pipeline_mode = #tpu.pipeline_mode<synchronous>, transform_indices = @transform_2, window_bounds = array<i64: 1, 64>}, {pipeline_mode = #tpu.pipeline_mode<synchronous>, transform_indices = @transform_3, window_bounds = array<i64: 64, 256>}, {pipeline_mode = #tpu.pipeline_mode<synchronous>, transform_indices = @transform_4, window_bounds = array<i64: 1, 256>}, {transform_indices = @transform_5, window_bounds = array<i64: 128, 128>}]} {
    %c0 = arith.constant 0 : index
    %c0_0 = arith.constant 0 : index
    %0 = vector.load %arg1[%c0, %c0_0] : memref<64x32xf32, #tpu.memory_space<vmem>>, vector<64x32xf32>
    %1 = arith.truncf %0 : vector<64x32xf32> to vector<64x32xbf16>
    %c0_1 = arith.constant 0 : index
    %c0_2 = arith.constant 0 : index
    %2 = vector.load %arg2[%c0_1, %c0_2] : memref<32x64xbf16, #tpu.memory_space<vmem>>, vector<32x64xbf16>
    %cst = arith.constant dense<0.000000e+00> : vector<64x64xf32>
    %3 = tpu.matmul %1, %2, %cst {dimension_numbers = #tpu.dot_dimension_numbers<[1], [0], [0], [1], [0, 0, 1, 1], [], []>} : vector<64x32xbf16>, vector<32x64xbf16>, vector<64x64xf32> -> vector<64x64xf32>
    %c0_3 = arith.constant 0 : index
    %c0_4 = arith.constant 0 : index
    %4 = vector.load %arg3[%c0_3, %c0_4] : memref<1x64xf32, #tpu.memory_space<vmem>>, vector<1x64xf32>
    %5 = vector.broadcast %4 : vector<1x64xf32> to vector<64x64xf32>
    %6 = arith.addf %3, %5 : vector<64x64xf32>
    %7 = math.tanh %6 : vector<64x64xf32>
    %8 = arith.truncf %7 : vector<64x64xf32> to vector<64x64xbf16>
    %c0_5 = arith.constant 0 : index
    %c0_6 = arith.constant 0 : index
    %9 = vector.load %arg4[%c0_5, %c0_6] : memref<64x256xbf16, #tpu.memory_space<vmem>>, vector<64x256xbf16>
    %cst_7 = arith.constant dense<0.000000e+00> : vector<64x256xf32>
    %10 = tpu.matmul %8, %9, %cst_7 {dimension_numbers = #tpu.dot_dimension_numbers<[1], [0], [0], [1], [0, 0, 1, 1], [], []>} : vector<64x64xbf16>, vector<64x256xbf16>, vector<64x256xf32> -> vector<64x256xf32>
    %c0_8 = arith.constant 0 : index
    %c0_9 = arith.constant 0 : index
    %11 = vector.load %arg5[%c0_8, %c0_9] : memref<1x256xf32, #tpu.memory_space<vmem>>, vector<1x256xf32>
    %12 = vector.broadcast %11 : vector<1x256xf32> to vector<64x256xf32>
    %13 = arith.addf %10, %12 : vector<64x256xf32>
    %14 = vector.shape_cast %13 : vector<64x256xf32> to vector<8x8x16x16xf32>
    %15 = tpu.transpose %14, [0, 2, 1, 3] : vector<8x8x16x16xf32> -> vector<8x16x8x16xf32>
    %16 = vector.shape_cast %15 : vector<8x16x8x16xf32> to vector<128x128xf32>
    %c0_10 = arith.constant 0 : index
    %c0_11 = arith.constant 0 : index
    %17 = vector.load %arg6[%c0_10, %c0_11] : memref<128x128xf32, #tpu.memory_space<vmem>>, vector<128x128xf32>
    tpu.vector_store %arg6[%c0_10, %c0_11], %16 {strides = array<i32>} : memref<128x128xf32, #tpu.memory_space<vmem>>, vector<128x128xf32>,
    return
  }
  func.func @transform_0(%arg0: i32) -> (i32, i32) {
    %c0_i32 = arith.constant 0 : i32
    %c0_i32_0 = arith.constant 0 : i32
    return %arg0, %c0_i32 : i32, i32
  }
  func.func @transform_1(%arg0: i32) -> (i32, i32) {
    %c0_i32 = arith.constant 0 : i32
    %c0_i32_0 = arith.constant 0 : i32
    %c0_i32_1 = arith.constant 0 : i32
    return %c0_i32, %c0_i32_0 : i32, i32
  }
  func.func @transform_2(%arg0: i32) -> (i32, i32) {
    %c0_i32 = arith.constant 0 : i32
    %c0_i32_0 = arith.constant 0 : i32
    %c0_i32_1 = arith.constant 0 : i32
    return %c0_i32, %c0_i32_0 : i32, i32
  }
  func.func @transform_3(%arg0: i32) -> (i32, i32) {
    %c0_i32 = arith.constant 0 : i32
    %c0_i32_0 = arith.constant 0 : i32
    %c0_i32_1 = arith.constant 0 : i32
    return %c0_i32, %c0_i32_0 : i32, i32
  }
  func.func @transform_4(%arg0: i32) -> (i32, i32) {
    %c0_i32 = arith.constant 0 : i32
    %c0_i32_0 = arith.constant 0 : i32
    %c0_i32_1 = arith.constant 0 : i32
    return %c0_i32, %c0_i32_0 : i32, i32
  }
  func.func @transform_5(%arg0: i32) -> (i32, i32) {
    %c0_i32 = arith.constant 0 : i32
    %c0_i32_0 = arith.constant 0 : i32
    return %arg0, %c0_i32 : i32, i32
  }
}

module attributes {stable_mosaic.version = 11 : i64} {
  func.func @_flat_kernel(%arg0: i32, %arg1: memref<64x32xf32, #tpu.memory_space<vmem>>, %arg2: memref<32x64xbf16, #tpu.memory_space<vmem>>, %arg3: memref<1x64xf32, #tpu.memory_space<vmem>>, %arg4: memref<64x256xbf16, #tpu.memory_space<vmem>>, %arg5: memref<1x256xf32, #tpu.memory_space<vmem>>, %arg6: memref<64x256xf32, #tpu.memory_space<vmem>>) attributes {dimension_semantics = [#tpu.dimension_semantics<parallel>], iteration_bounds = array<i64: 4>, scalar_prefetch = 0 : i64, scratch_operands = 0 : i64, tpu.core_type = #tpu.core_type<tc>, window_params = [{transform_indices = @transform_0, window_bounds = array<i64: 64, 32>}, {pipeline_mode = #tpu.pipeline_mode<synchronous>, transform_indices = @transform_1, window_bounds = array<i64: 32, 64>}, {pipeline_mode = #tpu.pipeline_mode<synchronous>, transform_indices = @transform_2, window_bounds = array<i64: 1, 64>}, {pipeline_mode = #tpu.pipeline_mode<synchronous>, transform_indices = @transform_3, window_bounds = array<i64: 64, 256>}, {pipeline_mode = #tpu.pipeline_mode<synchronous>, transform_indices = @transform_4, window_bounds = array<i64: 1, 256>}, {transform_indices = @transform_5, window_bounds = array<i64: 64, 256>}]} {
    %c0 = arith.constant 0 : index
    %c0_0 = arith.constant 0 : index
    %0 = vector.load %arg1[%c0, %c0_0] : memref<64x32xf32, #tpu.memory_space<vmem>>, vector<64x32xf32>
    %1 = arith.truncf %0 : vector<64x32xf32> to vector<64x32xbf16>
    %c0_1 = arith.constant 0 : index
    %c0_2 = arith.constant 0 : index
    %2 = vector.load %arg2[%c0_1, %c0_2] : memref<32x64xbf16, #tpu.memory_space<vmem>>, vector<32x64xbf16>
    %cst = arith.constant dense<0.000000e+00> : vector<64x64xf32>
    %3 = tpu.matmul %1, %2, %cst {dimension_numbers = #tpu.dot_dimension_numbers<[1], [0], [0], [1], [0, 0, 1, 1], [], []>} : vector<64x32xbf16>, vector<32x64xbf16>, vector<64x64xf32> -> vector<64x64xf32>
    %c0_3 = arith.constant 0 : index
    %c0_4 = arith.constant 0 : index
    %4 = vector.load %arg3[%c0_3, %c0_4] : memref<1x64xf32, #tpu.memory_space<vmem>>, vector<1x64xf32>
    %5 = vector.broadcast %4 : vector<1x64xf32> to vector<64x64xf32>
    %6 = arith.addf %3, %5 : vector<64x64xf32>
    %7 = math.tanh %6 : vector<64x64xf32>
    %8 = arith.truncf %7 : vector<64x64xf32> to vector<64x64xbf16>
    %c0_5 = arith.constant 0 : index
    %c0_6 = arith.constant 0 : index
    %9 = vector.load %arg4[%c0_5, %c0_6] : memref<64x256xbf16, #tpu.memory_space<vmem>>, vector<64x256xbf16>
    %cst_7 = arith.constant dense<0.000000e+00> : vector<64x256xf32>
    %10 = tpu.matmul %8, %9, %cst_7 {dimension_numbers = #tpu.dot_dimension_numbers<[1], [0], [0], [1], [0, 0, 1, 1], [], []>} : vector<64x64xbf16>, vector<64x256xbf16>, vector<64x256xf32> -> vector<64x256xf32>
    %c0_8 = arith.constant 0 : index
    %c0_9 = arith.constant 0 : index
    %11 = vector.load %arg5[%c0_8, %c0_9] : memref<1x256xf32, #tpu.memory_space<vmem>>, vector<1x256xf32>
    %12 = vector.broadcast %11 : vector<1x256xf32> to vector<64x256xf32>
    %13 = arith.addf %10, %12 : vector<64x256xf32>
    %c0_10 = arith.constant 0 : index
    %c0_11 = arith.constant 0 : index
    %14 = vector.load %arg6[%c0_10, %c0_11] : memref<64x256xf32, #tpu.memory_space<vmem>>, vector<64x256xf32>
    tpu.vector_store %arg6[%c0_10, %c0_11], %13 {strides = array<i32>} : memref<64x256xf32, #tpu.memory_space<vmem>>, vector<64x256xf32>,
    return
  }
  func.func @transform_0(%arg0: i32) -> (i32, i32) {
    %c0_i32 = arith.constant 0 : i32
    %c0_i32_0 = arith.constant 0 : i32
    return %arg0, %c0_i32 : i32, i32
  }
  func.func @transform_1(%arg0: i32) -> (i32, i32) {
    %c0_i32 = arith.constant 0 : i32
    %c0_i32_0 = arith.constant 0 : i32
    %c0_i32_1 = arith.constant 0 : i32
    return %c0_i32, %c0_i32_0 : i32, i32
  }
  func.func @transform_2(%arg0: i32) -> (i32, i32) {
    %c0_i32 = arith.constant 0 : i32
    %c0_i32_0 = arith.constant 0 : i32
    %c0_i32_1 = arith.constant 0 : i32
    return %c0_i32, %c0_i32_0 : i32, i32
  }
  func.func @transform_3(%arg0: i32) -> (i32, i32) {
    %c0_i32 = arith.constant 0 : i32
    %c0_i32_0 = arith.constant 0 : i32
    %c0_i32_1 = arith.constant 0 : i32
    return %c0_i32, %c0_i32_0 : i32, i32
  }
  func.func @transform_4(%arg0: i32) -> (i32, i32) {
    %c0_i32 = arith.constant 0 : i32
    %c0_i32_0 = arith.constant 0 : i32
    %c0_i32_1 = arith.constant 0 : i32
    return %c0_i32, %c0_i32_0 : i32, i32
  }
  func.func @transform_5(%arg0: i32) -> (i32, i32) {
    %c0_i32 = arith.constant 0 : i32
    %c0_i32_0 = arith.constant 0 : i32
    return %arg0, %c0_i32 : i32, i32
  }
}

</mosaic_0001>

<llo_original>
// kernel: tpu_custom_call.1
$region0: #{tpu_custom_call.1}
  #allocation0 [shape = 'u32[]', space=smem, size = 0x4, offset = 0x4, fixed_abs, tag = 'smem constant byte address 0x4 - core index']
  #allocation1 [shape = 'u32[72,128]{1,0:T(1,128)}', space=vmem, size = 0x9000, scoped, tag = 'internal scratch']
  %s0 = inlined_call_operand.vmem [shape: f32[256,32], index: 0, kind: input, shape index: {}]
  %s1 = inlined_call_operand.vmem [shape: bf16[32,64], index: 1, kind: input, shape index: {}]
  %s2 = inlined_call_operand.vmem [shape: f32[1,64], index: 2, kind: input, shape index: {}]
  %s3 = inlined_call_operand.vmem [shape: bf16[64,256], index: 3, kind: input, shape index: {}]
  %s4 = inlined_call_operand.vmem [shape: f32[1,256], index: 4, kind: input, shape index: {}]
  %s5 = inlined_call_operand.hbm [shape: f32[512,128], index: 5, kind: output, shape index: {}]
  %s6 = sld [smem:[#allocation0]]
  $region53: #{tpu_custom_call.1} parent=0
    _
  %s8 = ssub.s32 1, %s6
  %s9 = scalar_select 0, %s8, %s6
  $region1: #{tpu_custom_call.1} parent=0
    #allocation2 [shape = 'u8[131072]{0}', space=vmem, size = 0x20000, scoped, tag = 'output window, operand 0']
    #allocation3 [shape = 's32[2]{0}', space=sflag, size = 0x8, scoped, tag = 'scoped memory for tpu_custom_call.1']
    %10 = vsyncpa [#allocation3], 0
    %s11 = scalar_lea.sflag [#allocation3], 1
    %12 = vsyncpa %s11, 0
    loop: start=0, step=1, limit=6
    $region2: #{tpu_custom_call.1} parent=1 // loop_pre_header
      _
    $region3: #{tpu_custom_call.1} parent=1 // loop_header
      %s14 = sphi 0, %s18
      %p15 = scmp.ge.s32.totalorder %s14, 6
      %s24 = sphi 0, %s26
      %s27 = sphi 0, %s24
      %s28 = sphi 0, %s27
      %s44 = sphi 0, %s28
      %s48 = sphi 0, %s48
      %s50 = sphi 0, %s48
      %s51 = sphi 0, %s50
      %s65 = sphi 0, %s51
      %s69 = sphi 0, %s69
      %s71 = sphi 0, %s69
      %s72 = sphi 0, %s71
      %s86 = sphi 0, %s72
      %s90 = sphi 0, %s90
      %s92 = sphi 0, %s90
      %s93 = sphi 0, %s92
      %s107 = sphi 0, %s93
      %s111 = sphi 0, %s111
      %s113 = sphi 0, %s111
      %s114 = sphi 0, %s113
      %s128 = sphi 0, %s114
      %s134 = sphi 0, %s136
      %s137 = sphi 0, %s134
      %s138 = sphi 0, %s137
      %s154 = sphi 0, %s138
    $region4: #{tpu_custom_call.1} parent=1 // loop_header_branch
      %17 = sbr.rel (%p15) target = $region8
    $region5: #{tpu_custom_call.1} parent=1 // loop_body
      %s19 = ssub.s32 %s14, 1
      %s20 = ssub.s32 %s14, 2
      %s21 = sadd.s32 %s14, 1
      %s22 = ssub.s32 %s14, %s21
      %p23 = scmp.eq.s32.totalorder %s22, 0
      %s25 = sadd.s32 %s24, 1
      %s26 = scalar_select %p23, %s24, %s25
      %p29 = pneg %p23
      %p30 = scmp.eq.s32.totalorder %s14, 3
      %p31 = por %p29, %p30
      %p32 = scmp.ne.s32.totalorder %s24, %s27
      %p33 = scmp.eq.s32.totalorder %s14, 0
      %p34 = por %p32, %p33
      %p35 = scmp.ne.s32.totalorder %s24, %s27
      %p36 = scmp.eq.s32.totalorder %s19, 3
      %p37 = por %p35, %p36
      %p38 = scmp.ne.s32.totalorder %s27, %s28
      %p39 = scmp.eq.s32.totalorder %s19, 0
      %p40 = por %p38, %p39
      %p41 = scmp.ne.s32.totalorder %s27, %s28
      %p42 = scmp.eq.s32.totalorder %s20, 3
      %p43 = por %p41, %p42
      %p45 = scmp.ne.s32.totalorder %s28, %s44
      %p46 = scmp.eq.s32.totalorder %s20, 0
      %p47 = por %p45, %p46
      %s49 = sadd.s32 %s48, 1
      %p52 = scmp.eq.s32.totalorder %s14, 3
      %p53 = scmp.ne.s32.totalorder %s48, %s50
      %p54 = scmp.eq.s32.totalorder %s14, 0
      %p55 = por %p53, %p54
      %p56 = scmp.ne.s32.totalorder %s48, %s50
      %p57 = scmp.eq.s32.totalorder %s19, 3
      %p58 = por %p56, %p57
      %p59 = scmp.ne.s32.totalorder %s50, %s51
      %p60 = scmp.eq.s32.totalorder %s19, 0
      %p61 = por %p59, %p60
      %p62 = scmp.ne.s32.totalorder %s50, %s51
      %p63 = scmp.eq.s32.totalorder %s20, 3
      %p64 = por %p62, %p63
      %p66 = scmp.ne.s32.totalorder %s51, %s65
      %p67 = scmp.eq.s32.totalorder %s20, 0
      %p68 = por %p66, %p67
      %s70 = sadd.s32 %s69, 1
      %p73 = scmp.eq.s32.totalorder %s14, 3
      %p74 = scmp.ne.s32.totalorder %s69, %s71
      %p75 = scmp.eq.s32.totalorder %s14, 0
      %p76 = por %p74, %p75
      %p77 = scmp.ne.s32.totalorder %s69, %s71
      %p78 = scmp.eq.s32.totalorder %s19, 3
      %p79 = por %p77, %p78
      %p80 = scmp.ne.s32.totalorder %s71, %s72
      %p81 = scmp.eq.s32.totalorder %s19, 0
      %p82 = por %p80, %p81
      %p83 = scmp.ne.s32.totalorder %s71, %s72
      %p84 = scmp.eq.s32.totalorder %s20, 3
      %p85 = por %p83, %p84
      %p87 = scmp.ne.s32.totalorder %s72, %s86
      %p88 = scmp.eq.s32.totalorder %s20, 0
      %p89 = por %p87, %p88
      %s91 = sadd.s32 %s90, 1
      %p94 = scmp.eq.s32.totalorder %s14, 3
      %p95 = scmp.ne.s32.totalorder %s90, %s92
      %p96 = scmp.eq.s32.totalorder %s14, 0
      %p97 = por %p95, %p96
      %p98 = scmp.ne.s32.totalorder %s90, %s92
      %p99 = scmp.eq.s32.totalorder %s19, 3
      %p100 = por %p98, %p99
      %p101 = scmp.ne.s32.totalorder %s92, %s93
      %p102 = scmp.eq.s32.totalorder %s19, 0
      %p103 = por %p101, %p102
      %p104 = scmp.ne.s32.totalorder %s92, %s93
      %p105 = scmp.eq.s32.totalorder %s20, 3
      %p106 = por %p104, %p105
      %p108 = scmp.ne.s32.totalorder %s93, %s107
      %p109 = scmp.eq.s32.totalorder %s20, 0
      %p110 = por %p108, %p109
      %s112 = sadd.s32 %s111, 1
      %p115 = scmp.eq.s32.totalorder %s14, 3
      %p116 = scmp.ne.s32.totalorder %s111, %s113
      %p117 = scmp.eq.s32.totalorder %s14, 0
      %p118 = por %p116, %p117
      %p119 = scmp.ne.s32.totalorder %s111, %s113
      %p120 = scmp.eq.s32.totalorder %s19, 3
      %p121 = por %p119, %p120
      %p122 = scmp.ne.s32.totalorder %s113, %s114
      %p123 = scmp.eq.s32.totalorder %s19, 0
      %p124 = por %p122, %p123
      %p125 = scmp.ne.s32.totalorder %s113, %s114
      %p126 = scmp.eq.s32.totalorder %s20, 3
      %p127 = por %p125, %p126
      %p129 = scmp.ne.s32.totalorder %s114, %s128
      %p130 = scmp.eq.s32.totalorder %s20, 0
      %p131 = por %p129, %p130
      %s132 = ssub.s32 %s14, %s21
      %p133 = scmp.eq.s32.totalorder %s132, 0
      %s135 = sadd.s32 %s134, 1
      %s136 = scalar_select %p133, %s134, %s135
      %p139 = pneg %p133
      %p140 = scmp.eq.s32.totalorder %s14, 3
      %p141 = por %p139, %p140
      %p142 = scmp.ne.s32.totalorder %s134, %s137
      %p143 = scmp.eq.s32.totalorder %s14, 0
      %p144 = por %p142, %p143
      %p145 = scmp.ne.s32.totalorder %s134, %s137
      %p146 = scmp.eq.s32.totalorder %s19, 3
      %p147 = por %p145, %p146
      %p148 = scmp.ne.s32.totalorder %s137, %s138
      %p149 = scmp.eq.s32.totalorder %s19, 0
      %p150 = por %p148, %p149
      %p151 = scmp.ne.s32.totalorder %s137, %s138
      %p152 = scmp.eq.s32.totalorder %s20, 3
      %p153 = por %p151, %p152
      %p155 = scmp.ne.s32.totalorder %s138, %s154
      %p156 = scmp.eq.s32.totalorder %s20, 0
      %p157 = por %p155, %p156
      %p158 = scmp.le.s32.totalorder 1, %s14
      %p159 = scmp.lt.s32.totalorder %s14, 5
      %p160 = pnand %p158, %p159
      %p161 = pneg %p160
      // Predicated region
      $region9: #{tpu_custom_call.1} parent=5 // pred_check
        _
      $region10: #{tpu_custom_call.1} parent=5 // pred_check_branch
        %163 = sbr.rel (%p160) target = $region12
      $region11: #{tpu_custom_call.1} parent=5 // pred_region
        %s164 = ssub.s32 %s14, 1
        // Predicated region
        $region13: #{tpu_custom_call.1} parent=11 // pred_check
          %p165 = pneg %p61
        $region14: #{tpu_custom_call.1} parent=11 // pred_check_branch
          %167 = sbr.rel (%p165) target = $region16
        $region15: #{tpu_custom_call.1} parent=11 // pred_region
          _
        $region16: #{tpu_custom_call.1} parent=11 // pred_fallthru
          _
        // Predicated region
        $region17: #{tpu_custom_call.1} parent=11 // pred_check
          %p168 = pneg %p82
        $region18: #{tpu_custom_call.1} parent=11 // pred_check_branch
          %170 = sbr.rel (%p168) target = $region20
        $region19: #{tpu_custom_call.1} parent=11 // pred_region
          _
        $region20: #{tpu_custom_call.1} parent=11 // pred_fallthru
          _
        // Predicated region
        $region21: #{tpu_custom_call.1} parent=11 // pred_check
          %p171 = pneg %p103
        $region22: #{tpu_custom_call.1} parent=11 // pred_check_branch
          %173 = sbr.rel (%p171) target = $region24
        $region23: #{tpu_custom_call.1} parent=11 // pred_region
          _
        $region24: #{tpu_custom_call.1} parent=11 // pred_fallthru
          _
        // Predicated region
        $region25: #{tpu_custom_call.1} parent=11 // pred_check
          %p174 = pneg %p124
        $region26: #{tpu_custom_call.1} parent=11 // pred_check_branch
          %176 = sbr.rel (%p174) target = $region28
        $region27: #{tpu_custom_call.1} parent=11 // pred_region
          _
        $region28: #{tpu_custom_call.1} parent=11 // pred_fallthru
          _
      $region12: #{tpu_custom_call.1} parent=5 // pred_fallthru
        _
      %p177 = scmp.lt.s32.totalorder %s14, 4
      // Predicated region
      $region29: #{tpu_custom_call.1} parent=5 // pred_check
        %p178 = pneg %p177
      $region30: #{tpu_custom_call.1} parent=5 // pred_check_branch
        %180 = sbr.rel (%p178) target = $region32
      $region31: #{tpu_custom_call.1} parent=5 // pred_region
        // Predicated region
        $region33: #{tpu_custom_call.1} parent=31 // pred_check
          %p181 = pneg %p34
        $region34: #{tpu_custom_call.1} parent=31 // pred_check_branch
          %183 = sbr.rel (%p181) target = $region36
        $region35: #{tpu_custom_call.1} parent=31 // pred_region
          %s184 = smul.u32 8, %s14
          %p185 = scmp.lt.s32.totalorder %s184, 31
          %s186 = scalar_select %p185, %s184, 31
          %s187 = smul.addr %s186, 8
          %s188 = scalar_lea.vmem %s0, %s187
          %s189 = smul.u32 8, %s14
        $region36: #{tpu_custom_call.1} parent=31 // pred_fallthru
          _
      $region32: #{tpu_custom_call.1} parent=5 // pred_fallthru
        _
      %p190 = scmp.le.s32.totalorder 1, %s14
      %p191 = scmp.lt.s32.totalorder %s14, 5
      %p192 = pnand %p190, %p191
      %p193 = pneg %p192
      // Predicated region
      $region37: #{tpu_custom_call.1} parent=5 // pred_check
        _
      $region38: #{tpu_custom_call.1} parent=5 // pred_check_branch
        %195 = sbr.rel (%p192) target = $region40
      $region39: #{tpu_custom_call.1} parent=5 // pred_region
        %s196 = ssub.s32 %s14, 1
        %s197 = smul.u32 8, %s19
        %p198 = scmp.lt.s32.totalorder %s197, 31
        %s199 = scalar_select %p198, %s197, 31
        %s200 = smul.addr %s199, 8
        %s201 = scalar_lea.vmem %s0, %s200
        %p202 = pneg %p40
        %p203 = pneg %p37
        %p204 = pneg %p61
        %p205 = pneg %p58
        %p206 = pneg %p82
        %p207 = pneg %p79
        %p208 = pneg %p103
        %p209 = pneg %p100
        %p210 = pneg %p124
        %p211 = pneg %p121
        %p212 = pneg %p150
        %p213 = pneg %p147
        %s214 = sand.u32 %s137, 1
        %s215 = scalar_lea.sflag [#allocation3], %s214
        %s216 = sand.u32 %s137, 1
        %s217 = smul.addr %s216, 128
        %s218 = scalar_lea.vmem [#allocation2], %s217
        %s219 = smul.u32 8, %s19
        %p220 = scmp.lt.s32.totalorder %s219, 31
        %s221 = scalar_select %p220, %s219, 31
        %s222 = smul.addr %s221, 8
        %s223 = scalar_lea.vmem %s0, %s222
        %s224 = smul.u32 8, %s19
        %s225 = smul.u32 16, %s19
        %v227 = vld [vmem:[%s223] sm:$0xff]
        %v228 = vld [vmem:[%s223 + $0x8] sm:$0xff]
        %v229 = vld [vmem:[%s223 + $0x10] sm:$0xff]
        %v230 = vld [vmem:[%s223 + $0x18] sm:$0xff]
        %v231 = vld [vmem:[%s223 + $0x20] sm:$0xff]
        %v232 = vld [vmem:[%s223 + $0x28] sm:$0xff]
        %v233 = vld [vmem:[%s223 + $0x30] sm:$0xff]
        %v234 = vld [vmem:[%s223 + $0x38] sm:$0xff]
        %v235 = vpack.c.bf16 %v228, %v227
        %v236 = vpack.c.bf16 %v230, %v229
        %v237 = vpack.c.bf16 %v232, %v231
        %v238 = vpack.c.bf16 %v234, %v233
        %v239 = vld [vmem:[%s1] sm:$0xf]
        %v240 = vld [vmem:[%s1 + $0x4] sm:$0xf]
        %v241 = vld [vmem:[%s1 + $0x8] sm:$0xf]
        %v242 = vld [vmem:[%s1 + $0xc] sm:$0xf]
        %v243 = vld [vmem:[%s2] sm:$0x1]
        %v245 = vperm.slane %v243, 0
        %v251 = vunpack.c.l.b16 %v239
        %v252 = vunpack.c.l.b16 %v240
        %v253 = vunpack.c.l.b16 %v241
        %v254 = vunpack.c.l.b16 %v242
        %v255 = vpack.c.b16 %v252, %v251
        %v256 = vpack.c.b16 %v254, %v253
        %vm259 = vcmask 261120
        %v261 = vsel %vm259, %v235, 0
        %v264 = vsel %vm259, %v236, 0
        %v267 = vsel %vm259, %v237, 0
        %v270 = vsel %vm259, %v238, 0
        %272 = vmatpush.bf16.msra.mxu0 0
        %273 = vmatpush.bf16.msra.mxu0 0
        %274 = vmatpush.bf16.msra.mxu0 0
        %275 = vmatpush.bf16.msra.mxu0 0
        %276 = vmatpush.bf16.msra.mxu0 0
        %277 = vmatpush.bf16.msra.mxu0 0
        %278 = vmatpush.bf16.msra.mxu0 %v256
        %279 = vmatpush.bf16.msra.mxu0 %v255
        %280 = vmatmul.bf16.gmra.mxu0 %v261
        %v281 = vpop.f32.mrf.mxu0
        %v282 = vadd.f32 %v245, %v281
        %v283 = vpop.f32.mrf.mxu0
        %v284 = vadd.f32 %v245, %v283
        %285 = vmatmul.bf16.gmra.mxu0 %v264
        %v286 = vpop.f32.mrf.mxu0
        %v287 = vadd.f32 %v245, %v286
        %v288 = vpop.f32.mrf.mxu0
        %v289 = vadd.f32 %v245, %v288
        %290 = vmatmul.bf16.gmra.mxu0 %v267
        %v291 = vpop.f32.mrf.mxu0
        %v292 = vadd.f32 %v245, %v291
        %v293 = vpop.f32.mrf.mxu0
        %v294 = vadd.f32 %v245, %v293
        %295 = vmatmul.bf16.gmra.mxu0 %v270
        %v296 = vpop.f32.mrf.mxu0
        %v297 = vadd.f32 %v245, %v296
        %v298 = vpop.f32.mrf.mxu0
        %v299 = vadd.f32 %v245, %v298
        %300 = vdwg.mxu0
        %v301 = vtanh.pop %v282
        %v302 = vtanh.pop %v284
        %v303 = vtanh.pop %v287
        %v304 = vtanh.pop %v289
        %v305 = vtanh.pop %v292
        %v306 = vtanh.pop %v294
        %v307 = vtanh.pop %v297
        %v308 = vtanh.pop %v299
        %v309 = vpack.c.bf16 %v302, %v301
        %v310 = vpack.c.bf16 %v304, %v303
        %v311 = vpack.c.bf16 %v306, %v305
        %v312 = vpack.c.bf16 %v308, %v307
        %v313 = vld [vmem:[%s3] sm:$0xff]
        %v314 = vld [vmem:[%s3 + $0x8] sm:$0xff]
        %v315 = vld [vmem:[%s3 + $0x10] sm:$0xff]
        %v316 = vld [vmem:[%s3 + $0x18] sm:$0xff]
        %v317 = vld [vmem:[%s3 + $0x20] sm:$0xff]
        %v318 = vld [vmem:[%s3 + $0x28] sm:$0xff]
        %v319 = vld [vmem:[%s3 + $0x30] sm:$0xff]
        %v320 = vld [vmem:[%s3 + $0x38] sm:$0xff]
        %v321 = vld [vmem:[%s4] sm:$0x3]
        %v323 = vperm.slane %v321, 0
        %v324 = vperm.slane %v321, 1
        %v335 = vunpack.c.l.b16 %v313
        %v336 = vunpack.c.h.b16 %v313
        %v337 = vunpack.c.l.b16 %v314
        %v338 = vunpack.c.h.b16 %v314
        %v339 = vunpack.c.l.b16 %v315
        %v340 = vunpack.c.h.b16 %v315
        %v341 = vunpack.c.l.b16 %v316
        %v342 = vunpack.c.h.b16 %v316
        %v343 = vunpack.c.l.b16 %v317
        %v344 = vunpack.c.h.b16 %v317
        %v345 = vunpack.c.l.b16 %v318
        %v346 = vunpack.c.h.b16 %v318
        %v347 = vunpack.c.l.b16 %v319
        %v348 = vunpack.c.h.b16 %v319
        %v349 = vunpack.c.l.b16 %v320
        %v350 = vunpack.c.h.b16 %v320
        %v351 = vpack.c.b16 %v337, %v335
        %v352 = vpack.c.b16 %v338, %v336
        %v353 = vpack.c.b16 %v341, %v339
        %v354 = vpack.c.b16 %v342, %v340
        %v355 = vpack.c.b16 %v345, %v343
        %v356 = vpack.c.b16 %v346, %v344
        %v357 = vpack.c.b16 %v349, %v347
        %v358 = vpack.c.b16 %v350, %v348
        %vm367 = vcmask 523264
        %v369 = vsel %vm367, %v309, 0
        %v372 = vsel %vm367, %v310, 0
        %v375 = vsel %vm367, %v311, 0
        %v378 = vsel %vm367, %v312, 0
        %380 = vmatpush.bf16.msra.mxu0 0
        %381 = vmatpush.bf16.msra.mxu0 0
        %382 = vmatpush.bf16.msra.mxu0 0
        %383 = vmatpush.bf16.msra.mxu0 0
        %384 = vmatpush.bf16.msra.mxu0 %v357
        %385 = vmatpush.bf16.msra.mxu0 %v355
        %386 = vmatpush.bf16.msra.mxu0 %v353
        %387 = vmatpush.bf16.msra.mxu0 %v351
        %388 = vmatmul.bf16.gmra.mxu0 %v369
        %v389 = vpop.f32.mrf.mxu0
        %v390 = vadd.f32 %v323, %v389
        %v391 = vpop.f32.mrf.mxu0
        %v392 = vadd.f32 %v323, %v391
        %393 = vmatmul.bf16.gmra.mxu0 %v372
        %v394 = vpop.f32.mrf.mxu0
        %v395 = vadd.f32 %v323, %v394
        %v396 = vpop.f32.mrf.mxu0
        %v397 = vadd.f32 %v323, %v396
        %398 = vmatmul.bf16.gmra.mxu0 %v375
        %v399 = vpop.f32.mrf.mxu0
        %v400 = vadd.f32 %v323, %v399
        %v401 = vpop.f32.mrf.mxu0
        %v402 = vadd.f32 %v323, %v401
        %403 = vmatmul.bf16.gmra.mxu0 %v378
        %v404 = vpop.f32.mrf.mxu0
        %v405 = vadd.f32 %v323, %v404
        %v406 = vpop.f32.mrf.mxu0
        %v407 = vadd.f32 %v323, %v406
        %408 = vdwg.mxu0
        %409 = vmatpush.bf16.msra.mxu0 0
        %410 = vmatpush.bf16.msra.mxu0 0
        %411 = vmatpush.bf16.msra.mxu0 0
        %412 = vmatpush.bf16.msra.mxu0 0
        %413 = vmatpush.bf16.msra.mxu0 %v358
        %414 = vmatpush.bf16.msra.mxu0 %v356
        %415 = vmatpush.bf16.msra.mxu0 %v354
        %416 = vmatpush.bf16.msra.mxu0 %v352
        %417 = vmatmul.bf16.gmra.mxu0 %v369
        %v418 = vpop.f32.mrf.mxu0
        %v419 = vadd.f32 %v324, %v418
        %v420 = vpop.f32.mrf.mxu0
        %v421 = vadd.f32 %v324, %v420
        %422 = vmatmul.bf16.gmra.mxu0 %v372
        %v423 = vpop.f32.mrf.mxu0
        %v424 = vadd.f32 %v324, %v423
        %v425 = vpop.f32.mrf.mxu0
        %v426 = vadd.f32 %v324, %v425
        %427 = vmatmul.bf16.gmra.mxu0 %v375
        %v428 = vpop.f32.mrf.mxu0
        %v429 = vadd.f32 %v324, %v428
        %v430 = vpop.f32.mrf.mxu0
        %v431 = vadd.f32 %v324, %v430
        %432 = vmatmul.bf16.gmra.mxu0 %v378
        %v433 = vpop.f32.mrf.mxu0
        %v434 = vadd.f32 %v324, %v433
        %v435 = vpop.f32.mrf.mxu0
        %v436 = vadd.f32 %v324, %v435
        %437 = vdwg.mxu0
        %446 = vrot.lane.b32.xlu0 %v390, 112
        %v447 = vpop.permute.xlu0 %446
        %448 = vrot.lane.b32.xlu0 %v392, 112
        %v449 = vpop.permute.xlu0 %448
        %450 = vrot.lane.b32.xlu0 %v395, 112
        %v451 = vpop.permute.xlu0 %450
        %452 = vrot.lane.b32.xlu0 %v397, 112
        %v453 = vpop.permute.xlu0 %452
        %454 = vrot.lane.b32.xlu0 %v400, 112
        %v455 = vpop.permute.xlu0 %454
        %456 = vrot.lane.b32.xlu0 %v402, 112
        %v457 = vpop.permute.xlu0 %456
        %458 = vrot.lane.b32.xlu0 %v405, 112
        %v459 = vpop.permute.xlu0 %458
        %460 = vrot.lane.b32.xlu0 %v407, 112
        %v461 = vpop.permute.xlu0 %460
        %470 = vrot.lane.b32.xlu0 %v390, 96
        %v471 = vpop.permute.xlu0 %470
        %472 = vrot.lane.b32.xlu0 %v392, 96
        %v473 = vpop.permute.xlu0 %472
        %474 = vrot.lane.b32.xlu0 %v395, 96
        %v475 = vpop.permute.xlu0 %474
        %476 = vrot.lane.b32.xlu0 %v397, 96
        %v477 = vpop.permute.xlu0 %476
        %478 = vrot.lane.b32.xlu0 %v400, 96
        %v479 = vpop.permute.xlu0 %478
        %480 = vrot.lane.b32.xlu0 %v402, 96
        %v481 = vpop.permute.xlu0 %480
        %482 = vrot.lane.b32.xlu0 %v405, 96
        %v483 = vpop.permute.xlu0 %482
        %484 = vrot.lane.b32.xlu0 %v407, 96
        %v485 = vpop.permute.xlu0 %484
        %494 = vrot.lane.b32.xlu0 %v390, 80
        %v495 = vpop.permute.xlu0 %494
        %496 = vrot.lane.b32.xlu0 %v392, 80
        %v497 = vpop.permute.xlu0 %496
        %498 = vrot.lane.b32.xlu0 %v395, 80
        %v499 = vpop.permute.xlu0 %498
        %500 = vrot.lane.b32.xlu0 %v397, 80
        %v501 = vpop.permute.xlu0 %500
        %502 = vrot.lane.b32.xlu0 %v400, 80
        %v503 = vpop.permute.xlu0 %502
        %504 = vrot.lane.b32.xlu0 %v402, 80
        %v505 = vpop.permute.xlu0 %504
        %506 = vrot.lane.b32.xlu0 %v405, 80
        %v507 = vpop.permute.xlu0 %506
        %508 = vrot.lane.b32.xlu0 %v407, 80
        %v509 = vpop.permute.xlu0 %508
        %518 = vrot.lane.b32.xlu0 %v390, 64
        %v519 = vpop.permute.xlu0 %518
        %520 = vrot.lane.b32.xlu0 %v392, 64
        %v521 = vpop.permute.xlu0 %520
        %522 = vrot.lane.b32.xlu0 %v395, 64
        %v523 = vpop.permute.xlu0 %522
        %524 = vrot.lane.b32.xlu0 %v397, 64
        %v525 = vpop.permute.xlu0 %524
        %526 = vrot.lane.b32.xlu0 %v400, 64
        %v527 = vpop.permute.xlu0 %526
        %528 = vrot.lane.b32.xlu0 %v402, 64
        %v529 = vpop.permute.xlu0 %528
        %530 = vrot.lane.b32.xlu0 %v405, 64
        %v531 = vpop.permute.xlu0 %530
        %532 = vrot.lane.b32.xlu0 %v407, 64
        %v533 = vpop.permute.xlu0 %532
        %542 = vrot.lane.b32.xlu0 %v390, 48
        %v543 = vpop.permute.xlu0 %542
        %544 = vrot.lane.b32.xlu0 %v392, 48
        %v545 = vpop.permute.xlu0 %544
        %546 = vrot.lane.b32.xlu0 %v395, 48
        %v547 = vpop.permute.xlu0 %546
        %548 = vrot.lane.b32.xlu0 %v397, 48
        %v549 = vpop.permute.xlu0 %548
        %550 = vrot.lane.b32.xlu0 %v400, 48
        %v551 = vpop.permute.xlu0 %550
        %552 = vrot.lane.b32.xlu0 %v402, 48
        %v553 = vpop.permute.xlu0 %552
        %554 = vrot.lane.b32.xlu0 %v405, 48
        %v555 = vpop.permute.xlu0 %554
        %556 = vrot.lane.b32.xlu0 %v407, 48
        %v557 = vpop.permute.xlu0 %556
        %566 = vrot.lane.b32.xlu0 %v390, 32
        %v567 = vpop.permute.xlu0 %566
        %568 = vrot.lane.b32.xlu0 %v392, 32
        %v569 = vpop.permute.xlu0 %568
        %570 = vrot.lane.b32.xlu0 %v395, 32
        %v571 = vpop.permute.xlu0 %570
        %572 = vrot.lane.b32.xlu0 %v397, 32
        %v573 = vpop.permute.xlu0 %572
        %574 = vrot.lane.b32.xlu0 %v400, 32
        %v575 = vpop.permute.xlu0 %574
        %576 = vrot.lane.b32.xlu0 %v402, 32
        %v577 = vpop.permute.xlu0 %576
        %578 = vrot.lane.b32.xlu0 %v405, 32
        %v579 = vpop.permute.xlu0 %578
        %580 = vrot.lane.b32.xlu0 %v407, 32
        %v581 = vpop.permute.xlu0 %580
        %590 = vrot.lane.b32.xlu0 %v390, 16
        %v591 = vpop.permute.xlu0 %590
        %592 = vrot.lane.b32.xlu0 %v392, 16
        %v593 = vpop.permute.xlu0 %592
        %594 = vrot.lane.b32.xlu0 %v395, 16
        %v595 = vpop.permute.xlu0 %594
        %596 = vrot.lane.b32.xlu0 %v397, 16
        %v597 = vpop.permute.xlu0 %596
        %598 = vrot.lane.b32.xlu0 %v400, 16
        %v599 = vpop.permute.xlu0 %598
        %600 = vrot.lane.b32.xlu0 %v402, 16
        %v601 = vpop.permute.xlu0 %600
        %602 = vrot.lane.b32.xlu0 %v405, 16
        %v603 = vpop.permute.xlu0 %602
        %604 = vrot.lane.b32.xlu0 %v407, 16
        %v605 = vpop.permute.xlu0 %604
        %622 = vrot.lane.b32.xlu0 %v419, 112
        %v623 = vpop.permute.xlu0 %622
        %624 = vrot.lane.b32.xlu0 %v421, 112
        %v625 = vpop.permute.xlu0 %624
        %626 = vrot.lane.b32.xlu0 %v424, 112
        %v627 = vpop.permute.xlu0 %626
        %628 = vrot.lane.b32.xlu0 %v426, 112
        %v629 = vpop.permute.xlu0 %628
        %630 = vrot.lane.b32.xlu0 %v429, 112
        %v631 = vpop.permute.xlu0 %630
        %632 = vrot.lane.b32.xlu0 %v431, 112
        %v633 = vpop.permute.xlu0 %632
        %634 = vrot.lane.b32.xlu0 %v434, 112
        %v635 = vpop.permute.xlu0 %634
        %636 = vrot.lane.b32.xlu0 %v436, 112
        %v637 = vpop.permute.xlu0 %636
        %646 = vrot.lane.b32.xlu0 %v419, 96
        %v647 = vpop.permute.xlu0 %646
        %648 = vrot.lane.b32.xlu0 %v421, 96
        %v649 = vpop.permute.xlu0 %648
        %650 = vrot.lane.b32.xlu0 %v424, 96
        %v651 = vpop.permute.xlu0 %650
        %652 = vrot.lane.b32.xlu0 %v426, 96
        %v653 = vpop.permute.xlu0 %652
        %654 = vrot.lane.b32.xlu0 %v429, 96
        %v655 = vpop.permute.xlu0 %654
        %656 = vrot.lane.b32.xlu0 %v431, 96
        %v657 = vpop.permute.xlu0 %656
        %658 = vrot.lane.b32.xlu0 %v434, 96
        %v659 = vpop.permute.xlu0 %658
        %660 = vrot.lane.b32.xlu0 %v436, 96
        %v661 = vpop.permute.xlu0 %660
        %670 = vrot.lane.b32.xlu0 %v419, 80
        %v671 = vpop.permute.xlu0 %670
        %672 = vrot.lane.b32.xlu0 %v421, 80
        %v673 = vpop.permute.xlu0 %672
        %674 = vrot.lane.b32.xlu0 %v424, 80
        %v675 = vpop.permute.xlu0 %674
        %676 = vrot.lane.b32.xlu0 %v426, 80
        %v677 = vpop.permute.xlu0 %676
        %678 = vrot.lane.b32.xlu0 %v429, 80
        %v679 = vpop.permute.xlu0 %678
        %680 = vrot.lane.b32.xlu0 %v431, 80
        %v681 = vpop.permute.xlu0 %680
        %682 = vrot.lane.b32.xlu0 %v434, 80
        %v683 = vpop.permute.xlu0 %682
        %684 = vrot.lane.b32.xlu0 %v436, 80
        %v685 = vpop.permute.xlu0 %684
        %694 = vrot.lane.b32.xlu0 %v419, 64
        %v695 = vpop.permute.xlu0 %694
        %696 = vrot.lane.b32.xlu0 %v421, 64
        %v697 = vpop.permute.xlu0 %696
        %698 = vrot.lane.b32.xlu0 %v424, 64
        %v699 = vpop.permute.xlu0 %698
        %700 = vrot.lane.b32.xlu0 %v426, 64
        %v701 = vpop.permute.xlu0 %700
        %702 = vrot.lane.b32.xlu0 %v429, 64
        %v703 = vpop.permute.xlu0 %702
        %704 = vrot.lane.b32.xlu0 %v431, 64
        %v705 = vpop.permute.xlu0 %704
        %706 = vrot.lane.b32.xlu0 %v434, 64
        %v707 = vpop.permute.xlu0 %706
        %708 = vrot.lane.b32.xlu0 %v436, 64
        %v709 = vpop.permute.xlu0 %708
        %718 = vrot.lane.b32.xlu0 %v419, 48
        %v719 = vpop.permute.xlu0 %718
        %720 = vrot.lane.b32.xlu0 %v421, 48
        %v721 = vpop.permute.xlu0 %720
        %722 = vrot.lane.b32.xlu0 %v424, 48
        %v723 = vpop.permute.xlu0 %722
        %724 = vrot.lane.b32.xlu0 %v426, 48
        %v725 = vpop.permute.xlu0 %724
        %726 = vrot.lane.b32.xlu0 %v429, 48
        %v727 = vpop.permute.xlu0 %726
        %728 = vrot.lane.b32.xlu0 %v431, 48
        %v729 = vpop.permute.xlu0 %728
        %730 = vrot.lane.b32.xlu0 %v434, 48
        %v731 = vpop.permute.xlu0 %730
        %732 = vrot.lane.b32.xlu0 %v436, 48
        %v733 = vpop.permute.xlu0 %732
        %742 = vrot.lane.b32.xlu0 %v419, 32
        %v743 = vpop.permute.xlu0 %742
        %744 = vrot.lane.b32.xlu0 %v421, 32
        %v745 = vpop.permute.xlu0 %744
        %746 = vrot.lane.b32.xlu0 %v424, 32
        %v747 = vpop.permute.xlu0 %746
        %748 = vrot.lane.b32.xlu0 %v426, 32
        %v749 = vpop.permute.xlu0 %748
        %750 = vrot.lane.b32.xlu0 %v429, 32
        %v751 = vpop.permute.xlu0 %750
        %752 = vrot.lane.b32.xlu0 %v431, 32
        %v753 = vpop.permute.xlu0 %752
        %754 = vrot.lane.b32.xlu0 %v434, 32
        %v755 = vpop.permute.xlu0 %754
        %756 = vrot.lane.b32.xlu0 %v436, 32
        %v757 = vpop.permute.xlu0 %756
        %766 = vrot.lane.b32.xlu0 %v419, 16
        %v767 = vpop.permute.xlu0 %766
        %768 = vrot.lane.b32.xlu0 %v421, 16
        %v769 = vpop.permute.xlu0 %768
        %770 = vrot.lane.b32.xlu0 %v424, 16
        %v771 = vpop.permute.xlu0 %770
        %772 = vrot.lane.b32.xlu0 %v426, 16
        %v773 = vpop.permute.xlu0 %772
        %774 = vrot.lane.b32.xlu0 %v429, 16
        %v775 = vpop.permute.xlu0 %774
        %776 = vrot.lane.b32.xlu0 %v431, 16
        %v777 = vpop.permute.xlu0 %776
        %778 = vrot.lane.b32.xlu0 %v434, 16
        %v779 = vpop.permute.xlu0 %778
        %780 = vrot.lane.b32.xlu0 %v436, 16
        %v781 = vpop.permute.xlu0 %780
        %v790 = vrot.slane %v471, 4
        %vm791 = vcmask 1047556
        %v792 = vsel %vm791, %v790, %v390
        %v793 = vrot.slane %v390, 4
        %v794 = vsel %vm791, %v471, %v793
        %v796 = vunpack.c.l.s4 1983009808
        %v797 = vunpack.c.0.s8 %v796
        %v798 = vperm.slane %v792, %v797
        %v800 = vunpack.c.l.s4 1983009808
        %v801 = vunpack.c.0.s8 %v800
        %v802 = vperm.slane %v794, %v801
        %v803 = vrot.slane %v495, 4
        %v804 = vsel %vm791, %v803, %v447
        %v805 = vrot.slane %v447, 4
        %v806 = vsel %vm791, %v495, %v805
        %v808 = vunpack.c.l.s4 1983009808
        %v809 = vunpack.c.0.s8 %v808
        %v810 = vperm.slane %v804, %v809
        %v812 = vunpack.c.l.s4 1983009808
        %v813 = vunpack.c.0.s8 %v812
        %v814 = vperm.slane %v806, %v813
        %v815 = vrot.slane %v567, 4
        %v816 = vsel %vm791, %v815, %v519
        %v817 = vrot.slane %v519, 4
        %v818 = vsel %vm791, %v567, %v817
        %v820 = vunpack.c.l.s4 1983009808
        %v821 = vunpack.c.0.s8 %v820
        %v822 = vperm.slane %v816, %v821
        %v824 = vunpack.c.l.s4 1983009808
        %v825 = vunpack.c.0.s8 %v824
        %v826 = vperm.slane %v818, %v825
        %v827 = vrot.slane %v591, 4
        %v828 = vsel %vm791, %v827, %v543
        %v829 = vrot.slane %v543, 4
        %v830 = vsel %vm791, %v591, %v829
        %v832 = vunpack.c.l.s4 1983009808
        %v833 = vunpack.c.0.s8 %v832
        %v834 = vperm.slane %v828, %v833
        %v836 = vunpack.c.l.s4 1983009808
        %v837 = vunpack.c.0.s8 %v836
        %v838 = vperm.slane %v830, %v837
        %v839 = vrot.slane %v810, 4
        %v840 = vsel %vm791, %v839, %v798
        %v841 = vrot.slane %v798, 4
        %v842 = vsel %vm791, %v810, %v841
        %v844 = vunpack.c.l.s4 1934713408
        %v845 = vunpack.c.0.s8 %v844
        %v846 = vperm.slane %v840, %v845
        %v848 = vunpack.c.l.s4 1934713408
        %v849 = vunpack.c.0.s8 %v848
        %v850 = vperm.slane %v842, %v849
        %v851 = vrot.slane %v814, 4
        %v852 = vsel %vm791, %v851, %v802
        %v853 = vrot.slane %v802, 4
        %v854 = vsel %vm791, %v814, %v853
        %v856 = vunpack.c.l.s4 1934713408
        %v857 = vunpack.c.0.s8 %v856
        %v858 = vperm.slane %v852, %v857
        %v860 = vunpack.c.l.s4 1934713408
        %v861 = vunpack.c.0.s8 %v860
        %v862 = vperm.slane %v854, %v861
        %v863 = vrot.slane %v834, 4
        %v864 = vsel %vm791, %v863, %v822
        %v865 = vrot.slane %v822, 4
        %v866 = vsel %vm791, %v834, %v865
        %v868 = vunpack.c.l.s4 1934713408
        %v869 = vunpack.c.0.s8 %v868
        %v870 = vperm.slane %v864, %v869
        %v872 = vunpack.c.l.s4 1934713408
        %v873 = vunpack.c.0.s8 %v872
        %v874 = vperm.slane %v866, %v873
        %v875 = vrot.slane %v838, 4
        %v876 = vsel %vm791, %v875, %v826
        %v877 = vrot.slane %v826, 4
        %v878 = vsel %vm791, %v838, %v877
        %v880 = vunpack.c.l.s4 1934713408
        %v881 = vunpack.c.0.s8 %v880
        %v882 = vperm.slane %v876, %v881
        %v884 = vunpack.c.l.s4 1934713408
        %v885 = vunpack.c.0.s8 %v884
        %v886 = vperm.slane %v878, %v885
        %v887 = vrot.slane %v870, 4
        %v888 = vsel %vm791, %v887, %v846
        %v889 = vrot.slane %v846, 4
        %v890 = vsel %vm791, %v870, %v889
        %v891 = vrot.slane %v874, 4
        %v892 = vsel %vm791, %v891, %v850
        %v893 = vrot.slane %v850, 4
        %v894 = vsel %vm791, %v874, %v893
        %v895 = vrot.slane %v882, 4
        %v896 = vsel %vm791, %v895, %v858
        %v897 = vrot.slane %v858, 4
        %v898 = vsel %vm791, %v882, %v897
        %v899 = vrot.slane %v886, 4
        %v900 = vsel %vm791, %v899, %v862
        %v901 = vrot.slane %v862, 4
        %v902 = vsel %vm791, %v886, %v901
        %v903 = vrot.slane %v647, 4
        %v904 = vsel %vm791, %v903, %v419
        %v905 = vrot.slane %v419, 4
        %v906 = vsel %vm791, %v647, %v905
        %v908 = vunpack.c.l.s4 1983009808
        %v909 = vunpack.c.0.s8 %v908
        %v910 = vperm.slane %v904, %v909
        %v912 = vunpack.c.l.s4 1983009808
        %v913 = vunpack.c.0.s8 %v912
        %v914 = vperm.slane %v906, %v913
        %v915 = vrot.slane %v671, 4
        %v916 = vsel %vm791, %v915, %v623
        %v917 = vrot.slane %v623, 4
        %v918 = vsel %vm791, %v671, %v917
        %v920 = vunpack.c.l.s4 1983009808
        %v921 = vunpack.c.0.s8 %v920
        %v922 = vperm.slane %v916, %v921
        %v924 = vunpack.c.l.s4 1983009808
        %v925 = vunpack.c.0.s8 %v924
        %v926 = vperm.slane %v918, %v925
        %v927 = vrot.slane %v743, 4
        %v928 = vsel %vm791, %v927, %v695
        %v929 = vrot.slane %v695, 4
        %v930 = vsel %vm791, %v743, %v929
        %v932 = vunpack.c.l.s4 1983009808
        %v933 = vunpack.c.0.s8 %v932
        %v934 = vperm.slane %v928, %v933
        %v936 = vunpack.c.l.s4 1983009808
        %v937 = vunpack.c.0.s8 %v936
        %v938 = vperm.slane %v930, %v937
        %v939 = vrot.slane %v767, 4
        %v940 = vsel %vm791, %v939, %v719
        %v941 = vrot.slane %v719, 4
        %v942 = vsel %vm791, %v767, %v941
        %v944 = vunpack.c.l.s4 1983009808
        %v945 = vunpack.c.0.s8 %v944
        %v946 = vperm.slane %v940, %v945
        %v948 = vunpack.c.l.s4 1983009808
        %v949 = vunpack.c.0.s8 %v948
        %v950 = vperm.slane %v942, %v949
        %v951 = vrot.slane %v922, 4
        %v952 = vsel %vm791, %v951, %v910
        %v953 = vrot.slane %v910, 4
        %v954 = vsel %vm791, %v922, %v953
        %v956 = vunpack.c.l.s4 1934713408
        %v957 = vunpack.c.0.s8 %v956
        %v958 = vperm.slane %v952, %v957
        %v960 = vunpack.c.l.s4 1934713408
        %v961 = vunpack.c.0.s8 %v960
        %v962 = vperm.slane %v954, %v961
        %v963 = vrot.slane %v926, 4
        %v964 = vsel %vm791, %v963, %v914
        %v965 = vrot.slane %v914, 4
        %v966 = vsel %vm791, %v926, %v965
        %v968 = vunpack.c.l.s4 1934713408
        %v969 = vunpack.c.0.s8 %v968
        %v970 = vperm.slane %v964, %v969
        %v972 = vunpack.c.l.s4 1934713408
        %v973 = vunpack.c.0.s8 %v972
        %v974 = vperm.slane %v966, %v973
        %v975 = vrot.slane %v946, 4
        %v976 = vsel %vm791, %v975, %v934
        %v977 = vrot.slane %v934, 4
        %v978 = vsel %vm791, %v946, %v977
        %v980 = vunpack.c.l.s4 1934713408
        %v981 = vunpack.c.0.s8 %v980
        %v982 = vperm.slane %v976, %v981
        %v984 = vunpack.c.l.s4 1934713408
        %v985 = vunpack.c.0.s8 %v984
        %v986 = vperm.slane %v978, %v985
        %v987 = vrot.slane %v950, 4
        %v988 = vsel %vm791, %v987, %v938
        %v989 = vrot.slane %v938, 4
        %v990 = vsel %vm791, %v950, %v989
        %v992 = vunpack.c.l.s4 1934713408
        %v993 = vunpack.c.0.s8 %v992
        %v994 = vperm.slane %v988, %v993
        %v996 = vunpack.c.l.s4 1934713408
        %v997 = vunpack.c.0.s8 %v996
        %v998 = vperm.slane %v990, %v997
        %v999 = vrot.slane %v982, 4
        %v1000 = vsel %vm791, %v999, %v958
        %v1001 = vrot.slane %v958, 4
        %v1002 = vsel %vm791, %v982, %v1001
        %v1003 = vrot.slane %v986, 4
        %v1004 = vsel %vm791, %v1003, %v962
        %v1005 = vrot.slane %v962, 4
        %v1006 = vsel %vm791, %v986, %v1005
        %v1007 = vrot.slane %v994, 4
        %v1008 = vsel %vm791, %v1007, %v970
        %v1009 = vrot.slane %v970, 4
        %v1010 = vsel %vm791, %v994, %v1009
        %v1011 = vrot.slane %v998, 4
        %v1012 = vsel %vm791, %v1011, %v974
        %v1013 = vrot.slane %v974, 4
        %v1014 = vsel %vm791, %v998, %v1013
        %v1015 = vrot.slane %v473, 4
        %v1016 = vsel %vm791, %v1015, %v392
        %v1017 = vrot.slane %v392, 4
        %v1018 = vsel %vm791, %v473, %v1017
        %v1020 = vunpack.c.l.s4 1983009808
        %v1021 = vunpack.c.0.s8 %v1020
        %v1022 = vperm.slane %v1016, %v1021
        %v1024 = vunpack.c.l.s4 1983009808
        %v1025 = vunpack.c.0.s8 %v1024
        %v1026 = vperm.slane %v1018, %v1025
        %v1027 = vrot.slane %v497, 4
        %v1028 = vsel %vm791, %v1027, %v449
        %v1029 = vrot.slane %v449, 4
        %v1030 = vsel %vm791, %v497, %v1029
        %v1032 = vunpack.c.l.s4 1983009808
        %v1033 = vunpack.c.0.s8 %v1032
        %v1034 = vperm.slane %v1028, %v1033
        %v1036 = vunpack.c.l.s4 1983009808
        %v1037 = vunpack.c.0.s8 %v1036
        %v1038 = vperm.slane %v1030, %v1037
        %v1039 = vrot.slane %v569, 4
        %v1040 = vsel %vm791, %v1039, %v521
        %v1041 = vrot.slane %v521, 4
        %v1042 = vsel %vm791, %v569, %v1041
        %v1044 = vunpack.c.l.s4 1983009808
        %v1045 = vunpack.c.0.s8 %v1044
        %v1046 = vperm.slane %v1040, %v1045
        %v1048 = vunpack.c.l.s4 1983009808
        %v1049 = vunpack.c.0.s8 %v1048
        %v1050 = vperm.slane %v1042, %v1049
        %v1051 = vrot.slane %v593, 4
        %v1052 = vsel %vm791, %v1051, %v545
        %v1053 = vrot.slane %v545, 4
        %v1054 = vsel %vm791, %v593, %v1053
        %v1056 = vunpack.c.l.s4 1983009808
        %v1057 = vunpack.c.0.s8 %v1056
        %v1058 = vperm.slane %v1052, %v1057
        %v1060 = vunpack.c.l.s4 1983009808
        %v1061 = vunpack.c.0.s8 %v1060
        %v1062 = vperm.slane %v1054, %v1061
        %v1063 = vrot.slane %v1034, 4
        %v1064 = vsel %vm791, %v1063, %v1022
        %v1065 = vrot.slane %v1022, 4
        %v1066 = vsel %vm791, %v1034, %v1065
        %v1068 = vunpack.c.l.s4 1934713408
        %v1069 = vunpack.c.0.s8 %v1068
        %v1070 = vperm.slane %v1064, %v1069
        %v1072 = vunpack.c.l.s4 1934713408
        %v1073 = vunpack.c.0.s8 %v1072
        %v1074 = vperm.slane %v1066, %v1073
        %v1075 = vrot.slane %v1038, 4
        %v1076 = vsel %vm791, %v1075, %v1026
        %v1077 = vrot.slane %v1026, 4
        %v1078 = vsel %vm791, %v1038, %v1077
        %v1080 = vunpack.c.l.s4 1934713408
        %v1081 = vunpack.c.0.s8 %v1080
        %v1082 = vperm.slane %v1076, %v1081
        %v1084 = vunpack.c.l.s4 1934713408
        %v1085 = vunpack.c.0.s8 %v1084
        %v1086 = vperm.slane %v1078, %v1085
        %v1087 = vrot.slane %v1058, 4
        %v1088 = vsel %vm791, %v1087, %v1046
        %v1089 = vrot.slane %v1046, 4
        %v1090 = vsel %vm791, %v1058, %v1089
        %v1092 = vunpack.c.l.s4 1934713408
        %v1093 = vunpack.c.0.s8 %v1092
        %v1094 = vperm.slane %v1088, %v1093
        %v1096 = vunpack.c.l.s4 1934713408
        %v1097 = vunpack.c.0.s8 %v1096
        %v1098 = vperm.slane %v1090, %v1097
        %v1099 = vrot.slane %v1062, 4
        %v1100 = vsel %vm791, %v1099, %v1050
        %v1101 = vrot.slane %v1050, 4
        %v1102 = vsel %vm791, %v1062, %v1101
        %v1104 = vunpack.c.l.s4 1934713408
        %v1105 = vunpack.c.0.s8 %v1104
        %v1106 = vperm.slane %v1100, %v1105
        %v1108 = vunpack.c.l.s4 1934713408
        %v1109 = vunpack.c.0.s8 %v1108
        %v1110 = vperm.slane %v1102, %v1109
        %v1111 = vrot.slane %v1094, 4
        %v1112 = vsel %vm791, %v1111, %v1070
        %v1113 = vrot.slane %v1070, 4
        %v1114 = vsel %vm791, %v1094, %v1113
        %v1115 = vrot.slane %v1098, 4
        %v1116 = vsel %vm791, %v1115, %v1074
        %v1117 = vrot.slane %v1074, 4
        %v1118 = vsel %vm791, %v1098, %v1117
        %v1119 = vrot.slane %v1106, 4
        %v1120 = vsel %vm791, %v1119, %v1082
        %v1121 = vrot.slane %v1082, 4
        %v1122 = vsel %vm791, %v1106, %v1121
        %v1123 = vrot.slane %v1110, 4
        %v1124 = vsel %vm791, %v1123, %v1086
        %v1125 = vrot.slane %v1086, 4
        %v1126 = vsel %vm791, %v1110, %v1125
        %v1127 = vrot.slane %v649, 4
        %v1128 = vsel %vm791, %v1127, %v421
        %v1129 = vrot.slane %v421, 4
        %v1130 = vsel %vm791, %v649, %v1129
        %v1132 = vunpack.c.l.s4 1983009808
        %v1133 = vunpack.c.0.s8 %v1132
        %v1134 = vperm.slane %v1128, %v1133
        %v1136 = vunpack.c.l.s4 1983009808
        %v1137 = vunpack.c.0.s8 %v1136
        %v1138 = vperm.slane %v1130, %v1137
        %v1139 = vrot.slane %v673, 4
        %v1140 = vsel %vm791, %v1139, %v625
        %v1141 = vrot.slane %v625, 4
        %v1142 = vsel %vm791, %v673, %v1141
        %v1144 = vunpack.c.l.s4 1983009808
        %v1145 = vunpack.c.0.s8 %v1144
        %v1146 = vperm.slane %v1140, %v1145
        %v1148 = vunpack.c.l.s4 1983009808
        %v1149 = vunpack.c.0.s8 %v1148
        %v1150 = vperm.slane %v1142, %v1149
        %v1151 = vrot.slane %v745, 4
        %v1152 = vsel %vm791, %v1151, %v697
        %v1153 = vrot.slane %v697, 4
        %v1154 = vsel %vm791, %v745, %v1153
        %v1156 = vunpack.c.l.s4 1983009808
        %v1157 = vunpack.c.0.s8 %v1156
        %v1158 = vperm.slane %v1152, %v1157
        %v1160 = vunpack.c.l.s4 1983009808
        %v1161 = vunpack.c.0.s8 %v1160
        %v1162 = vperm.slane %v1154, %v1161
        %v1163 = vrot.slane %v769, 4
        %v1164 = vsel %vm791, %v1163, %v721
        %v1165 = vrot.slane %v721, 4
        %v1166 = vsel %vm791, %v769, %v1165
        %v1168 = vunpack.c.l.s4 1983009808
        %v1169 = vunpack.c.0.s8 %v1168
        %v1170 = vperm.slane %v1164, %v1169
        %v1172 = vunpack.c.l.s4 1983009808
        %v1173 = vunpack.c.0.s8 %v1172
        %v1174 = vperm.slane %v1166, %v1173
        %v1175 = vrot.slane %v1146, 4
        %v1176 = vsel %vm791, %v1175, %v1134
        %v1177 = vrot.slane %v1134, 4
        %v1178 = vsel %vm791, %v1146, %v1177
        %v1180 = vunpack.c.l.s4 1934713408
        %v1181 = vunpack.c.0.s8 %v1180
        %v1182 = vperm.slane %v1176, %v1181
        %v1184 = vunpack.c.l.s4 1934713408
        %v1185 = vunpack.c.0.s8 %v1184
        %v1186 = vperm.slane %v1178, %v1185
        %v1187 = vrot.slane %v1150, 4
        %v1188 = vsel %vm791, %v1187, %v1138
        %v1189 = vrot.slane %v1138, 4
        %v1190 = vsel %vm791, %v1150, %v1189
        %v1192 = vunpack.c.l.s4 1934713408
        %v1193 = vunpack.c.0.s8 %v1192
        %v1194 = vperm.slane %v1188, %v1193
        %v1196 = vunpack.c.l.s4 1934713408
        %v1197 = vunpack.c.0.s8 %v1196
        %v1198 = vperm.slane %v1190, %v1197
        %v1199 = vrot.slane %v1170, 4
        %v1200 = vsel %vm791, %v1199, %v1158
        %v1201 = vrot.slane %v1158, 4
        %v1202 = vsel %vm791, %v1170, %v1201
        %v1204 = vunpack.c.l.s4 1934713408
        %v1205 = vunpack.c.0.s8 %v1204
        %v1206 = vperm.slane %v1200, %v1205
        %v1208 = vunpack.c.l.s4 1934713408
        %v1209 = vunpack.c.0.s8 %v1208
        %v1210 = vperm.slane %v1202, %v1209
        %v1211 = vrot.slane %v1174, 4
        %v1212 = vsel %vm791, %v1211, %v1162
        %v1213 = vrot.slane %v1162, 4
        %v1214 = vsel %vm791, %v1174, %v1213
        %v1216 = vunpack.c.l.s4 1934713408
        %v1217 = vunpack.c.0.s8 %v1216
        %v1218 = vperm.slane %v1212, %v1217
        %v1220 = vunpack.c.l.s4 1934713408
        %v1221 = vunpack.c.0.s8 %v1220
        %v1222 = vperm.slane %v1214, %v1221
        %v1223 = vrot.slane %v1206, 4
        %v1224 = vsel %vm791, %v1223, %v1182
        %v1225 = vrot.slane %v1182, 4
        %v1226 = vsel %vm791, %v1206, %v1225
        %v1227 = vrot.slane %v1210, 4
        %v1228 = vsel %vm791, %v1227, %v1186
        %v1229 = vrot.slane %v1186, 4
        %v1230 = vsel %vm791, %v1210, %v1229
        %v1231 = vrot.slane %v1218, 4
        %v1232 = vsel %vm791, %v1231, %v1194
        %v1233 = vrot.slane %v1194, 4
        %v1234 = vsel %vm791, %v1218, %v1233
        %v1235 = vrot.slane %v1222, 4
        %v1236 = vsel %vm791, %v1235, %v1198
        %v1237 = vrot.slane %v1198, 4
        %v1238 = vsel %vm791, %v1222, %v1237
        %v1239 = vrot.slane %v475, 4
        %v1240 = vsel %vm791, %v1239, %v395
        %v1241 = vrot.slane %v395, 4
        %v1242 = vsel %vm791, %v475, %v1241
        %v1244 = vunpack.c.l.s4 1983009808
        %v1245 = vunpack.c.0.s8 %v1244
        %v1246 = vperm.slane %v1240, %v1245
        %v1248 = vunpack.c.l.s4 1983009808
        %v1249 = vunpack.c.0.s8 %v1248
        %v1250 = vperm.slane %v1242, %v1249
        %v1251 = vrot.slane %v499, 4
        %v1252 = vsel %vm791, %v1251, %v451
        %v1253 = vrot.slane %v451, 4
        %v1254 = vsel %vm791, %v499, %v1253
        %v1256 = vunpack.c.l.s4 1983009808
        %v1257 = vunpack.c.0.s8 %v1256
        %v1258 = vperm.slane %v1252, %v1257
        %v1260 = vunpack.c.l.s4 1983009808
        %v1261 = vunpack.c.0.s8 %v1260
        %v1262 = vperm.slane %v1254, %v1261
        %v1263 = vrot.slane %v571, 4
        %v1264 = vsel %vm791, %v1263, %v523
        %v1265 = vrot.slane %v523, 4
        %v1266 = vsel %vm791, %v571, %v1265
        %v1268 = vunpack.c.l.s4 1983009808
        %v1269 = vunpack.c.0.s8 %v1268
        %v1270 = vperm.slane %v1264, %v1269
        %v1272 = vunpack.c.l.s4 1983009808
        %v1273 = vunpack.c.0.s8 %v1272
        %v1274 = vperm.slane %v1266, %v1273
        %v1275 = vrot.slane %v595, 4
        %v1276 = vsel %vm791, %v1275, %v547
        %v1277 = vrot.slane %v547, 4
        %v1278 = vsel %vm791, %v595, %v1277
        %v1280 = vunpack.c.l.s4 1983009808
        %v1281 = vunpack.c.0.s8 %v1280
        %v1282 = vperm.slane %v1276, %v1281
        %v1284 = vunpack.c.l.s4 1983009808
        %v1285 = vunpack.c.0.s8 %v1284
        %v1286 = vperm.slane %v1278, %v1285
        %v1287 = vrot.slane %v1258, 4
        %v1288 = vsel %vm791, %v1287, %v1246
        %v1289 = vrot.slane %v1246, 4
        %v1290 = vsel %vm791, %v1258, %v1289
        %v1292 = vunpack.c.l.s4 1934713408
        %v1293 = vunpack.c.0.s8 %v1292
        %v1294 = vperm.slane %v1288, %v1293
        %v1296 = vunpack.c.l.s4 1934713408
        %v1297 = vunpack.c.0.s8 %v1296
        %v1298 = vperm.slane %v1290, %v1297
        %v1299 = vrot.slane %v1262, 4
        %v1300 = vsel %vm791, %v1299, %v1250
        %v1301 = vrot.slane %v1250, 4
        %v1302 = vsel %vm791, %v1262, %v1301
        %v1304 = vunpack.c.l.s4 1934713408
        %v1305 = vunpack.c.0.s8 %v1304
        %v1306 = vperm.slane %v1300, %v1305
        %v1308 = vunpack.c.l.s4 1934713408
        %v1309 = vunpack.c.0.s8 %v1308
        %v1310 = vperm.slane %v1302, %v1309
        %v1311 = vrot.slane %v1282, 4
        %v1312 = vsel %vm791, %v1311, %v1270
        %v1313 = vrot.slane %v1270, 4
        %v1314 = vsel %vm791, %v1282, %v1313
        %v1316 = vunpack.c.l.s4 1934713408
        %v1317 = vunpack.c.0.s8 %v1316
        %v1318 = vperm.slane %v1312, %v1317
        %v1320 = vunpack.c.l.s4 1934713408
        %v1321 = vunpack.c.0.s8 %v1320
        %v1322 = vperm.slane %v1314, %v1321
        %v1323 = vrot.slane %v1286, 4
        %v1324 = vsel %vm791, %v1323, %v1274
        %v1325 = vrot.slane %v1274, 4
        %v1326 = vsel %vm791, %v1286, %v1325
        %v1328 = vunpack.c.l.s4 1934713408
        %v1329 = vunpack.c.0.s8 %v1328
        %v1330 = vperm.slane %v1324, %v1329
        %v1332 = vunpack.c.l.s4 1934713408
        %v1333 = vunpack.c.0.s8 %v1332
        %v1334 = vperm.slane %v1326, %v1333
        %v1335 = vrot.slane %v1318, 4
        %v1336 = vsel %vm791, %v1335, %v1294
        %v1337 = vrot.slane %v1294, 4
        %v1338 = vsel %vm791, %v1318, %v1337
        %v1339 = vrot.slane %v1322, 4
        %v1340 = vsel %vm791, %v1339, %v1298
        %v1341 = vrot.slane %v1298, 4
        %v1342 = vsel %vm791, %v1322, %v1341
        %v1343 = vrot.slane %v1330, 4
        %v1344 = vsel %vm791, %v1343, %v1306
        %v1345 = vrot.slane %v1306, 4
        %v1346 = vsel %vm791, %v1330, %v1345
        %v1347 = vrot.slane %v1334, 4
        %v1348 = vsel %vm791, %v1347, %v1310
        %v1349 = vrot.slane %v1310, 4
        %v1350 = vsel %vm791, %v1334, %v1349
        %v1351 = vrot.slane %v651, 4
        %v1352 = vsel %vm791, %v1351, %v424
        %v1353 = vrot.slane %v424, 4
        %v1354 = vsel %vm791, %v651, %v1353
        %v1356 = vunpack.c.l.s4 1983009808
        %v1357 = vunpack.c.0.s8 %v1356
        %v1358 = vperm.slane %v1352, %v1357
        %v1360 = vunpack.c.l.s4 1983009808
        %v1361 = vunpack.c.0.s8 %v1360
        %v1362 = vperm.slane %v1354, %v1361
        %v1363 = vrot.slane %v675, 4
        %v1364 = vsel %vm791, %v1363, %v627
        %v1365 = vrot.slane %v627, 4
        %v1366 = vsel %vm791, %v675, %v1365
        %v1368 = vunpack.c.l.s4 1983009808
        %v1369 = vunpack.c.0.s8 %v1368
        %v1370 = vperm.slane %v1364, %v1369
        %v1372 = vunpack.c.l.s4 1983009808
        %v1373 = vunpack.c.0.s8 %v1372
        %v1374 = vperm.slane %v1366, %v1373
        %v1375 = vrot.slane %v747, 4
        %v1376 = vsel %vm791, %v1375, %v699
        %v1377 = vrot.slane %v699, 4
        %v1378 = vsel %vm791, %v747, %v1377
        %v1380 = vunpack.c.l.s4 1983009808
        %v1381 = vunpack.c.0.s8 %v1380
        %v1382 = vperm.slane %v1376, %v1381
        %v1384 = vunpack.c.l.s4 1983009808
        %v1385 = vunpack.c.0.s8 %v1384
        %v1386 = vperm.slane %v1378, %v1385
        %v1387 = vrot.slane %v771, 4
        %v1388 = vsel %vm791, %v1387, %v723
        %v1389 = vrot.slane %v723, 4
        %v1390 = vsel %vm791, %v771, %v1389
        %v1392 = vunpack.c.l.s4 1983009808
        %v1393 = vunpack.c.0.s8 %v1392
        %v1394 = vperm.slane %v1388, %v1393
        %v1396 = vunpack.c.l.s4 1983009808
        %v1397 = vunpack.c.0.s8 %v1396
        %v1398 = vperm.slane %v1390, %v1397
        %v1399 = vrot.slane %v1370, 4
        %v1400 = vsel %vm791, %v1399, %v1358
        %v1401 = vrot.slane %v1358, 4
        %v1402 = vsel %vm791, %v1370, %v1401
        %v1404 = vunpack.c.l.s4 1934713408
        %v1405 = vunpack.c.0.s8 %v1404
        %v1406 = vperm.slane %v1400, %v1405
        %v1408 = vunpack.c.l.s4 1934713408
        %v1409 = vunpack.c.0.s8 %v1408
        %v1410 = vperm.slane %v1402, %v1409
        %v1411 = vrot.slane %v1374, 4
        %v1412 = vsel %vm791, %v1411, %v1362
        %v1413 = vrot.slane %v1362, 4
        %v1414 = vsel %vm791, %v1374, %v1413
        %v1416 = vunpack.c.l.s4 1934713408
        %v1417 = vunpack.c.0.s8 %v1416
        %v1418 = vperm.slane %v1412, %v1417
        %v1420 = vunpack.c.l.s4 1934713408
        %v1421 = vunpack.c.0.s8 %v1420
        %v1422 = vperm.slane %v1414, %v1421
        %v1423 = vrot.slane %v1394, 4
        %v1424 = vsel %vm791, %v1423, %v1382
        %v1425 = vrot.slane %v1382, 4
        %v1426 = vsel %vm791, %v1394, %v1425
        %v1428 = vunpack.c.l.s4 1934713408
        %v1429 = vunpack.c.0.s8 %v1428
        %v1430 = vperm.slane %v1424, %v1429
        %v1432 = vunpack.c.l.s4 1934713408
        %v1433 = vunpack.c.0.s8 %v1432
        %v1434 = vperm.slane %v1426, %v1433
        %v1435 = vrot.slane %v1398, 4
        %v1436 = vsel %vm791, %v1435, %v1386
        %v1437 = vrot.slane %v1386, 4
        %v1438 = vsel %vm791, %v1398, %v1437
        %v1440 = vunpack.c.l.s4 1934713408
        %v1441 = vunpack.c.0.s8 %v1440
        %v1442 = vperm.slane %v1436, %v1441
        %v1444 = vunpack.c.l.s4 1934713408
        %v1445 = vunpack.c.0.s8 %v1444
        %v1446 = vperm.slane %v1438, %v1445
        %v1447 = vrot.slane %v1430, 4
        %v1448 = vsel %vm791, %v1447, %v1406
        %v1449 = vrot.slane %v1406, 4
        %v1450 = vsel %vm791, %v1430, %v1449
        %v1451 = vrot.slane %v1434, 4
        %v1452 = vsel %vm791, %v1451, %v1410
        %v1453 = vrot.slane %v1410, 4
        %v1454 = vsel %vm791, %v1434, %v1453
        %v1455 = vrot.slane %v1442, 4
        %v1456 = vsel %vm791, %v1455, %v1418
        %v1457 = vrot.slane %v1418, 4
        %v1458 = vsel %vm791, %v1442, %v1457
        %v1459 = vrot.slane %v1446, 4
        %v1460 = vsel %vm791, %v1459, %v1422
        %v1461 = vrot.slane %v1422, 4
        %v1462 = vsel %vm791, %v1446, %v1461
        %v1463 = vrot.slane %v477, 4
        %v1464 = vsel %vm791, %v1463, %v397
        %v1465 = vrot.slane %v397, 4
        %v1466 = vsel %vm791, %v477, %v1465
        %v1468 = vunpack.c.l.s4 1983009808
        %v1469 = vunpack.c.0.s8 %v1468
        %v1470 = vperm.slane %v1464, %v1469
        %v1472 = vunpack.c.l.s4 1983009808
        %v1473 = vunpack.c.0.s8 %v1472
        %v1474 = vperm.slane %v1466, %v1473
        %v1475 = vrot.slane %v501, 4
        %v1476 = vsel %vm791, %v1475, %v453
        %v1477 = vrot.slane %v453, 4
        %v1478 = vsel %vm791, %v501, %v1477
        %v1480 = vunpack.c.l.s4 1983009808
        %v1481 = vunpack.c.0.s8 %v1480
        %v1482 = vperm.slane %v1476, %v1481
        %v1484 = vunpack.c.l.s4 1983009808
        %v1485 = vunpack.c.0.s8 %v1484
        %v1486 = vperm.slane %v1478, %v1485
        %v1487 = vrot.slane %v573, 4
        %v1488 = vsel %vm791, %v1487, %v525
        %v1489 = vrot.slane %v525, 4
        %v1490 = vsel %vm791, %v573, %v1489
        %v1492 = vunpack.c.l.s4 1983009808
        %v1493 = vunpack.c.0.s8 %v1492
        %v1494 = vperm.slane %v1488, %v1493
        %v1496 = vunpack.c.l.s4 1983009808
        %v1497 = vunpack.c.0.s8 %v1496
        %v1498 = vperm.slane %v1490, %v1497
        %v1499 = vrot.slane %v597, 4
        %v1500 = vsel %vm791, %v1499, %v549
        %v1501 = vrot.slane %v549, 4
        %v1502 = vsel %vm791, %v597, %v1501
        %v1504 = vunpack.c.l.s4 1983009808
        %v1505 = vunpack.c.0.s8 %v1504
        %v1506 = vperm.slane %v1500, %v1505
        %v1508 = vunpack.c.l.s4 1983009808
        %v1509 = vunpack.c.0.s8 %v1508
        %v1510 = vperm.slane %v1502, %v1509
        %v1511 = vrot.slane %v1482, 4
        %v1512 = vsel %vm791, %v1511, %v1470
        %v1513 = vrot.slane %v1470, 4
        %v1514 = vsel %vm791, %v1482, %v1513
        %v1516 = vunpack.c.l.s4 1934713408
        %v1517 = vunpack.c.0.s8 %v1516
        %v1518 = vperm.slane %v1512, %v1517
        %v1520 = vunpack.c.l.s4 1934713408
        %v1521 = vunpack.c.0.s8 %v1520
        %v1522 = vperm.slane %v1514, %v1521
        %v1523 = vrot.slane %v1486, 4
        %v1524 = vsel %vm791, %v1523, %v1474
        %v1525 = vrot.slane %v1474, 4
        %v1526 = vsel %vm791, %v1486, %v1525
        %v1528 = vunpack.c.l.s4 1934713408
        %v1529 = vunpack.c.0.s8 %v1528
        %v1530 = vperm.slane %v1524, %v1529
        %v1532 = vunpack.c.l.s4 1934713408
        %v1533 = vunpack.c.0.s8 %v1532
        %v1534 = vperm.slane %v1526, %v1533
        %v1535 = vrot.slane %v1506, 4
        %v1536 = vsel %vm791, %v1535, %v1494
        %v1537 = vrot.slane %v1494, 4
        %v1538 = vsel %vm791, %v1506, %v1537
        %v1540 = vunpack.c.l.s4 1934713408
        %v1541 = vunpack.c.0.s8 %v1540
        %v1542 = vperm.slane %v1536, %v1541
        %v1544 = vunpack.c.l.s4 1934713408
        %v1545 = vunpack.c.0.s8 %v1544
        %v1546 = vperm.slane %v1538, %v1545
        %v1547 = vrot.slane %v1510, 4
        %v1548 = vsel %vm791, %v1547, %v1498
        %v1549 = vrot.slane %v1498, 4
        %v1550 = vsel %vm791, %v1510, %v1549
        %v1552 = vunpack.c.l.s4 1934713408
        %v1553 = vunpack.c.0.s8 %v1552
        %v1554 = vperm.slane %v1548, %v1553
        %v1556 = vunpack.c.l.s4 1934713408
        %v1557 = vunpack.c.0.s8 %v1556
        %v1558 = vperm.slane %v1550, %v1557
        %v1559 = vrot.slane %v1542, 4
        %v1560 = vsel %vm791, %v1559, %v1518
        %v1561 = vrot.slane %v1518, 4
        %v1562 = vsel %vm791, %v1542, %v1561
        %v1563 = vrot.slane %v1546, 4
        %v1564 = vsel %vm791, %v1563, %v1522
        %v1565 = vrot.slane %v1522, 4
        %v1566 = vsel %vm791, %v1546, %v1565
        %v1567 = vrot.slane %v1554, 4
        %v1568 = vsel %vm791, %v1567, %v1530
        %v1569 = vrot.slane %v1530, 4
        %v1570 = vsel %vm791, %v1554, %v1569
        %v1571 = vrot.slane %v1558, 4
        %v1572 = vsel %vm791, %v1571, %v1534
        %v1573 = vrot.slane %v1534, 4
        %v1574 = vsel %vm791, %v1558, %v1573
        %v1575 = vrot.slane %v653, 4
        %v1576 = vsel %vm791, %v1575, %v426
        %v1577 = vrot.slane %v426, 4
        %v1578 = vsel %vm791, %v653, %v1577
        %v1580 = vunpack.c.l.s4 1983009808
        %v1581 = vunpack.c.0.s8 %v1580
        %v1582 = vperm.slane %v1576, %v1581
        %v1584 = vunpack.c.l.s4 1983009808
        %v1585 = vunpack.c.0.s8 %v1584
        %v1586 = vperm.slane %v1578, %v1585
        %v1587 = vrot.slane %v677, 4
        %v1588 = vsel %vm791, %v1587, %v629
        %v1589 = vrot.slane %v629, 4
        %v1590 = vsel %vm791, %v677, %v1589
        %v1592 = vunpack.c.l.s4 1983009808
        %v1593 = vunpack.c.0.s8 %v1592
        %v1594 = vperm.slane %v1588, %v1593
        %v1596 = vunpack.c.l.s4 1983009808
        %v1597 = vunpack.c.0.s8 %v1596
        %v1598 = vperm.slane %v1590, %v1597
        %v1599 = vrot.slane %v749, 4
        %v1600 = vsel %vm791, %v1599, %v701
        %v1601 = vrot.slane %v701, 4
        %v1602 = vsel %vm791, %v749, %v1601
        %v1604 = vunpack.c.l.s4 1983009808
        %v1605 = vunpack.c.0.s8 %v1604
        %v1606 = vperm.slane %v1600, %v1605
        %v1608 = vunpack.c.l.s4 1983009808
        %v1609 = vunpack.c.0.s8 %v1608
        %v1610 = vperm.slane %v1602, %v1609
        %v1611 = vrot.slane %v773, 4
        %v1612 = vsel %vm791, %v1611, %v725
        %v1613 = vrot.slane %v725, 4
        %v1614 = vsel %vm791, %v773, %v1613
        %v1616 = vunpack.c.l.s4 1983009808
        %v1617 = vunpack.c.0.s8 %v1616
        %v1618 = vperm.slane %v1612, %v1617
        %v1620 = vunpack.c.l.s4 1983009808
        %v1621 = vunpack.c.0.s8 %v1620
        %v1622 = vperm.slane %v1614, %v1621
        %v1623 = vrot.slane %v1594, 4
        %v1624 = vsel %vm791, %v1623, %v1582
        %v1625 = vrot.slane %v1582, 4
        %v1626 = vsel %vm791, %v1594, %v1625
        %v1628 = vunpack.c.l.s4 1934713408
        %v1629 = vunpack.c.0.s8 %v1628
        %v1630 = vperm.slane %v1624, %v1629
        %v1632 = vunpack.c.l.s4 1934713408
        %v1633 = vunpack.c.0.s8 %v1632
        %v1634 = vperm.slane %v1626, %v1633
        %v1635 = vrot.slane %v1598, 4
        %v1636 = vsel %vm791, %v1635, %v1586
        %v1637 = vrot.slane %v1586, 4
        %v1638 = vsel %vm791, %v1598, %v1637
        %v1640 = vunpack.c.l.s4 1934713408
        %v1641 = vunpack.c.0.s8 %v1640
        %v1642 = vperm.slane %v1636, %v1641
        %v1644 = vunpack.c.l.s4 1934713408
        %v1645 = vunpack.c.0.s8 %v1644
        %v1646 = vperm.slane %v1638, %v1645
        %v1647 = vrot.slane %v1618, 4
        %v1648 = vsel %vm791, %v1647, %v1606
        %v1649 = vrot.slane %v1606, 4
        %v1650 = vsel %vm791, %v1618, %v1649
        %v1652 = vunpack.c.l.s4 1934713408
        %v1653 = vunpack.c.0.s8 %v1652
        %v1654 = vperm.slane %v1648, %v1653
        %v1656 = vunpack.c.l.s4 1934713408
        %v1657 = vunpack.c.0.s8 %v1656
        %v1658 = vperm.slane %v1650, %v1657
        %v1659 = vrot.slane %v1622, 4
        %v1660 = vsel %vm791, %v1659, %v1610
        %v1661 = vrot.slane %v1610, 4
        %v1662 = vsel %vm791, %v1622, %v1661
        %v1664 = vunpack.c.l.s4 1934713408
        %v1665 = vunpack.c.0.s8 %v1664
        %v1666 = vperm.slane %v1660, %v1665
        %v1668 = vunpack.c.l.s4 1934713408
        %v1669 = vunpack.c.0.s8 %v1668
        %v1670 = vperm.slane %v1662, %v1669
        %v1671 = vrot.slane %v1654, 4
        %v1672 = vsel %vm791, %v1671, %v1630
        %v1673 = vrot.slane %v1630, 4
        %v1674 = vsel %vm791, %v1654, %v1673
        %v1675 = vrot.slane %v1658, 4
        %v1676 = vsel %vm791, %v1675, %v1634
        %v1677 = vrot.slane %v1634, 4
        %v1678 = vsel %vm791, %v1658, %v1677
        %v1679 = vrot.slane %v1666, 4
        %v1680 = vsel %vm791, %v1679, %v1642
        %v1681 = vrot.slane %v1642, 4
        %v1682 = vsel %vm791, %v1666, %v1681
        %v1683 = vrot.slane %v1670, 4
        %v1684 = vsel %vm791, %v1683, %v1646
        %v1685 = vrot.slane %v1646, 4
        %v1686 = vsel %vm791, %v1670, %v1685
        %v1687 = vrot.slane %v479, 4
        %v1688 = vsel %vm791, %v1687, %v400
        %v1689 = vrot.slane %v400, 4
        %v1690 = vsel %vm791, %v479, %v1689
        %v1692 = vunpack.c.l.s4 1983009808
        %v1693 = vunpack.c.0.s8 %v1692
        %v1694 = vperm.slane %v1688, %v1693
        %v1696 = vunpack.c.l.s4 1983009808
        %v1697 = vunpack.c.0.s8 %v1696
        %v1698 = vperm.slane %v1690, %v1697
        %v1699 = vrot.slane %v503, 4
        %v1700 = vsel %vm791, %v1699, %v455
        %v1701 = vrot.slane %v455, 4
        %v1702 = vsel %vm791, %v503, %v1701
        %v1704 = vunpack.c.l.s4 1983009808
        %v1705 = vunpack.c.0.s8 %v1704
        %v1706 = vperm.slane %v1700, %v1705
        %v1708 = vunpack.c.l.s4 1983009808
        %v1709 = vunpack.c.0.s8 %v1708
        %v1710 = vperm.slane %v1702, %v1709
        %v1711 = vrot.slane %v575, 4
        %v1712 = vsel %vm791, %v1711, %v527
        %v1713 = vrot.slane %v527, 4
        %v1714 = vsel %vm791, %v575, %v1713
        %v1716 = vunpack.c.l.s4 1983009808
        %v1717 = vunpack.c.0.s8 %v1716
        %v1718 = vperm.slane %v1712, %v1717
        %v1720 = vunpack.c.l.s4 1983009808
        %v1721 = vunpack.c.0.s8 %v1720
        %v1722 = vperm.slane %v1714, %v1721
        %v1723 = vrot.slane %v599, 4
        %v1724 = vsel %vm791, %v1723, %v551
        %v1725 = vrot.slane %v551, 4
        %v1726 = vsel %vm791, %v599, %v1725
        %v1728 = vunpack.c.l.s4 1983009808
        %v1729 = vunpack.c.0.s8 %v1728
        %v1730 = vperm.slane %v1724, %v1729
        %v1732 = vunpack.c.l.s4 1983009808
        %v1733 = vunpack.c.0.s8 %v1732
        %v1734 = vperm.slane %v1726, %v1733
        %v1735 = vrot.slane %v1706, 4
        %v1736 = vsel %vm791, %v1735, %v1694
        %v1737 = vrot.slane %v1694, 4
        %v1738 = vsel %vm791, %v1706, %v1737
        %v1740 = vunpack.c.l.s4 1934713408
        %v1741 = vunpack.c.0.s8 %v1740
        %v1742 = vperm.slane %v1736, %v1741
        %v1744 = vunpack.c.l.s4 1934713408
        %v1745 = vunpack.c.0.s8 %v1744
        %v1746 = vperm.slane %v1738, %v1745
        %v1747 = vrot.slane %v1710, 4
        %v1748 = vsel %vm791, %v1747, %v1698
        %v1749 = vrot.slane %v1698, 4
        %v1750 = vsel %vm791, %v1710, %v1749
        %v1752 = vunpack.c.l.s4 1934713408
        %v1753 = vunpack.c.0.s8 %v1752
        %v1754 = vperm.slane %v1748, %v1753
        %v1756 = vunpack.c.l.s4 1934713408
        %v1757 = vunpack.c.0.s8 %v1756
        %v1758 = vperm.slane %v1750, %v1757
        %v1759 = vrot.slane %v1730, 4
        %v1760 = vsel %vm791, %v1759, %v1718
        %v1761 = vrot.slane %v1718, 4
        %v1762 = vsel %vm791, %v1730, %v1761
        %v1764 = vunpack.c.l.s4 1934713408
        %v1765 = vunpack.c.0.s8 %v1764
        %v1766 = vperm.slane %v1760, %v1765
        %v1768 = vunpack.c.l.s4 1934713408
        %v1769 = vunpack.c.0.s8 %v1768
        %v1770 = vperm.slane %v1762, %v1769
        %v1771 = vrot.slane %v1734, 4
        %v1772 = vsel %vm791, %v1771, %v1722
        %v1773 = vrot.slane %v1722, 4
        %v1774 = vsel %vm791, %v1734, %v1773
        %v1776 = vunpack.c.l.s4 1934713408
        %v1777 = vunpack.c.0.s8 %v1776
        %v1778 = vperm.slane %v1772, %v1777
        %v1780 = vunpack.c.l.s4 1934713408
        %v1781 = vunpack.c.0.s8 %v1780
        %v1782 = vperm.slane %v1774, %v1781
        %v1783 = vrot.slane %v1766, 4
        %v1784 = vsel %vm791, %v1783, %v1742
        %v1785 = vrot.slane %v1742, 4
        %v1786 = vsel %vm791, %v1766, %v1785
        %v1787 = vrot.slane %v1770, 4
        %v1788 = vsel %vm791, %v1787, %v1746
        %v1789 = vrot.slane %v1746, 4
        %v1790 = vsel %vm791, %v1770, %v1789
        %v1791 = vrot.slane %v1778, 4
        %v1792 = vsel %vm791, %v1791, %v1754
        %v1793 = vrot.slane %v1754, 4
        %v1794 = vsel %vm791, %v1778, %v1793
        %v1795 = vrot.slane %v1782, 4
        %v1796 = vsel %vm791, %v1795, %v1758
        %v1797 = vrot.slane %v1758, 4
        %v1798 = vsel %vm791, %v1782, %v1797
        %v1799 = vrot.slane %v655, 4
        %v1800 = vsel %vm791, %v1799, %v429
        %v1801 = vrot.slane %v429, 4
        %v1802 = vsel %vm791, %v655, %v1801
        %v1804 = vunpack.c.l.s4 1983009808
        %v1805 = vunpack.c.0.s8 %v1804
        %v1806 = vperm.slane %v1800, %v1805
        %v1808 = vunpack.c.l.s4 1983009808
        %v1809 = vunpack.c.0.s8 %v1808
        %v1810 = vperm.slane %v1802, %v1809
        %v1811 = vrot.slane %v679, 4
        %v1812 = vsel %vm791, %v1811, %v631
        %v1813 = vrot.slane %v631, 4
        %v1814 = vsel %vm791, %v679, %v1813
        %v1816 = vunpack.c.l.s4 1983009808
        %v1817 = vunpack.c.0.s8 %v1816
        %v1818 = vperm.slane %v1812, %v1817
        %v1820 = vunpack.c.l.s4 1983009808
        %v1821 = vunpack.c.0.s8 %v1820
        %v1822 = vperm.slane %v1814, %v1821
        %v1823 = vrot.slane %v751, 4
        %v1824 = vsel %vm791, %v1823, %v703
        %v1825 = vrot.slane %v703, 4
        %v1826 = vsel %vm791, %v751, %v1825
        %v1828 = vunpack.c.l.s4 1983009808
        %v1829 = vunpack.c.0.s8 %v1828
        %v1830 = vperm.slane %v1824, %v1829
        %v1832 = vunpack.c.l.s4 1983009808
        %v1833 = vunpack.c.0.s8 %v1832
        %v1834 = vperm.slane %v1826, %v1833
        %v1835 = vrot.slane %v775, 4
        %v1836 = vsel %vm791, %v1835, %v727
        %v1837 = vrot.slane %v727, 4
        %v1838 = vsel %vm791, %v775, %v1837
        %v1840 = vunpack.c.l.s4 1983009808
        %v1841 = vunpack.c.0.s8 %v1840
        %v1842 = vperm.slane %v1836, %v1841
        %v1844 = vunpack.c.l.s4 1983009808
        %v1845 = vunpack.c.0.s8 %v1844
        %v1846 = vperm.slane %v1838, %v1845
        %v1847 = vrot.slane %v1818, 4
        %v1848 = vsel %vm791, %v1847, %v1806
        %v1849 = vrot.slane %v1806, 4
        %v1850 = vsel %vm791, %v1818, %v1849
        %v1852 = vunpack.c.l.s4 1934713408
        %v1853 = vunpack.c.0.s8 %v1852
        %v1854 = vperm.slane %v1848, %v1853
        %v1856 = vunpack.c.l.s4 1934713408
        %v1857 = vunpack.c.0.s8 %v1856
        %v1858 = vperm.slane %v1850, %v1857
        %v1859 = vrot.slane %v1822, 4
        %v1860 = vsel %vm791, %v1859, %v1810
        %v1861 = vrot.slane %v1810, 4
        %v1862 = vsel %vm791, %v1822, %v1861
        %v1864 = vunpack.c.l.s4 1934713408
        %v1865 = vunpack.c.0.s8 %v1864
        %v1866 = vperm.slane %v1860, %v1865
        %v1868 = vunpack.c.l.s4 1934713408
        %v1869 = vunpack.c.0.s8 %v1868
        %v1870 = vperm.slane %v1862, %v1869
        %v1871 = vrot.slane %v1842, 4
        %v1872 = vsel %vm791, %v1871, %v1830
        %v1873 = vrot.slane %v1830, 4
        %v1874 = vsel %vm791, %v1842, %v1873
        %v1876 = vunpack.c.l.s4 1934713408
        %v1877 = vunpack.c.0.s8 %v1876
        %v1878 = vperm.slane %v1872, %v1877
        %v1880 = vunpack.c.l.s4 1934713408
        %v1881 = vunpack.c.0.s8 %v1880
        %v1882 = vperm.slane %v1874, %v1881
        %v1883 = vrot.slane %v1846, 4
        %v1884 = vsel %vm791, %v1883, %v1834
        %v1885 = vrot.slane %v1834, 4
        %v1886 = vsel %vm791, %v1846, %v1885
        %v1888 = vunpack.c.l.s4 1934713408
        %v1889 = vunpack.c.0.s8 %v1888
        %v1890 = vperm.slane %v1884, %v1889
        %v1892 = vunpack.c.l.s4 1934713408
        %v1893 = vunpack.c.0.s8 %v1892
        %v1894 = vperm.slane %v1886, %v1893
        %v1895 = vrot.slane %v1878, 4
        %v1896 = vsel %vm791, %v1895, %v1854
        %v1897 = vrot.slane %v1854, 4
        %v1898 = vsel %vm791, %v1878, %v1897
        %v1899 = vrot.slane %v1882, 4
        %v1900 = vsel %vm791, %v1899, %v1858
        %v1901 = vrot.slane %v1858, 4
        %v1902 = vsel %vm791, %v1882, %v1901
        %v1903 = vrot.slane %v1890, 4
        %v1904 = vsel %vm791, %v1903, %v1866
        %v1905 = vrot.slane %v1866, 4
        %v1906 = vsel %vm791, %v1890, %v1905
        %v1907 = vrot.slane %v1894, 4
        %v1908 = vsel %vm791, %v1907, %v1870
        %v1909 = vrot.slane %v1870, 4
        %v1910 = vsel %vm791, %v1894, %v1909
        %v1911 = vrot.slane %v481, 4
        %v1912 = vsel %vm791, %v1911, %v402
        %v1913 = vrot.slane %v402, 4
        %v1914 = vsel %vm791, %v481, %v1913
        %v1916 = vunpack.c.l.s4 1983009808
        %v1917 = vunpack.c.0.s8 %v1916
        %v1918 = vperm.slane %v1912, %v1917
        %v1920 = vunpack.c.l.s4 1983009808
        %v1921 = vunpack.c.0.s8 %v1920
        %v1922 = vperm.slane %v1914, %v1921
        %v1923 = vrot.slane %v505, 4
        %v1924 = vsel %vm791, %v1923, %v457
        %v1925 = vrot.slane %v457, 4
        %v1926 = vsel %vm791, %v505, %v1925
        %v1928 = vunpack.c.l.s4 1983009808
        %v1929 = vunpack.c.0.s8 %v1928
        %v1930 = vperm.slane %v1924, %v1929
        %v1932 = vunpack.c.l.s4 1983009808
        %v1933 = vunpack.c.0.s8 %v1932
        %v1934 = vperm.slane %v1926, %v1933
        %v1935 = vrot.slane %v577, 4
        %v1936 = vsel %vm791, %v1935, %v529
        %v1937 = vrot.slane %v529, 4
        %v1938 = vsel %vm791, %v577, %v1937
        %v1940 = vunpack.c.l.s4 1983009808
        %v1941 = vunpack.c.0.s8 %v1940
        %v1942 = vperm.slane %v1936, %v1941
        %v1944 = vunpack.c.l.s4 1983009808
        %v1945 = vunpack.c.0.s8 %v1944
        %v1946 = vperm.slane %v1938, %v1945
        %v1947 = vrot.slane %v601, 4
        %v1948 = vsel %vm791, %v1947, %v553
        %v1949 = vrot.slane %v553, 4
        %v1950 = vsel %vm791, %v601, %v1949
        %v1952 = vunpack.c.l.s4 1983009808
        %v1953 = vunpack.c.0.s8 %v1952
        %v1954 = vperm.slane %v1948, %v1953
        %v1956 = vunpack.c.l.s4 1983009808
        %v1957 = vunpack.c.0.s8 %v1956
        %v1958 = vperm.slane %v1950, %v1957
        %v1959 = vrot.slane %v1930, 4
        %v1960 = vsel %vm791, %v1959, %v1918
        %v1961 = vrot.slane %v1918, 4
        %v1962 = vsel %vm791, %v1930, %v1961
        %v1964 = vunpack.c.l.s4 1934713408
        %v1965 = vunpack.c.0.s8 %v1964
        %v1966 = vperm.slane %v1960, %v1965
        %v1968 = vunpack.c.l.s4 1934713408
        %v1969 = vunpack.c.0.s8 %v1968
        %v1970 = vperm.slane %v1962, %v1969
        %v1971 = vrot.slane %v1934, 4
        %v1972 = vsel %vm791, %v1971, %v1922
        %v1973 = vrot.slane %v1922, 4
        %v1974 = vsel %vm791, %v1934, %v1973
        %v1976 = vunpack.c.l.s4 1934713408
        %v1977 = vunpack.c.0.s8 %v1976
        %v1978 = vperm.slane %v1972, %v1977
        %v1980 = vunpack.c.l.s4 1934713408
        %v1981 = vunpack.c.0.s8 %v1980
        %v1982 = vperm.slane %v1974, %v1981
        %v1983 = vrot.slane %v1954, 4
        %v1984 = vsel %vm791, %v1983, %v1942
        %v1985 = vrot.slane %v1942, 4
        %v1986 = vsel %vm791, %v1954, %v1985
        %v1988 = vunpack.c.l.s4 1934713408
        %v1989 = vunpack.c.0.s8 %v1988
        %v1990 = vperm.slane %v1984, %v1989
        %v1992 = vunpack.c.l.s4 1934713408
        %v1993 = vunpack.c.0.s8 %v1992
        %v1994 = vperm.slane %v1986, %v1993
        %v1995 = vrot.slane %v1958, 4
        %v1996 = vsel %vm791, %v1995, %v1946
        %v1997 = vrot.slane %v1946, 4
        %v1998 = vsel %vm791, %v1958, %v1997
        %v2000 = vunpack.c.l.s4 1934713408
        %v2001 = vunpack.c.0.s8 %v2000
        %v2002 = vperm.slane %v1996, %v2001
        %v2004 = vunpack.c.l.s4 1934713408
        %v2005 = vunpack.c.0.s8 %v2004
        %v2006 = vperm.slane %v1998, %v2005
        %v2007 = vrot.slane %v1990, 4
        %v2008 = vsel %vm791, %v2007, %v1966
        %v2009 = vrot.slane %v1966, 4
        %v2010 = vsel %vm791, %v1990, %v2009
        %v2011 = vrot.slane %v1994, 4
        %v2012 = vsel %vm791, %v2011, %v1970
        %v2013 = vrot.slane %v1970, 4
        %v2014 = vsel %vm791, %v1994, %v2013
        %v2015 = vrot.slane %v2002, 4
        %v2016 = vsel %vm791, %v2015, %v1978
        %v2017 = vrot.slane %v1978, 4
        %v2018 = vsel %vm791, %v2002, %v2017
        %v2019 = vrot.slane %v2006, 4
        %v2020 = vsel %vm791, %v2019, %v1982
        %v2021 = vrot.slane %v1982, 4
        %v2022 = vsel %vm791, %v2006, %v2021
        %v2023 = vrot.slane %v657, 4
        %v2024 = vsel %vm791, %v2023, %v431
        %v2025 = vrot.slane %v431, 4
        %v2026 = vsel %vm791, %v657, %v2025
        %v2028 = vunpack.c.l.s4 1983009808
        %v2029 = vunpack.c.0.s8 %v2028
        %v2030 = vperm.slane %v2024, %v2029
        %v2032 = vunpack.c.l.s4 1983009808
        %v2033 = vunpack.c.0.s8 %v2032
        %v2034 = vperm.slane %v2026, %v2033
        %v2035 = vrot.slane %v681, 4
        %v2036 = vsel %vm791, %v2035, %v633
        %v2037 = vrot.slane %v633, 4
        %v2038 = vsel %vm791, %v681, %v2037
        %v2040 = vunpack.c.l.s4 1983009808
        %v2041 = vunpack.c.0.s8 %v2040
        %v2042 = vperm.slane %v2036, %v2041
        %v2044 = vunpack.c.l.s4 1983009808
        %v2045 = vunpack.c.0.s8 %v2044
        %v2046 = vperm.slane %v2038, %v2045
        %v2047 = vrot.slane %v753, 4
        %v2048 = vsel %vm791, %v2047, %v705
        %v2049 = vrot.slane %v705, 4
        %v2050 = vsel %vm791, %v753, %v2049
        %v2052 = vunpack.c.l.s4 1983009808
        %v2053 = vunpack.c.0.s8 %v2052
        %v2054 = vperm.slane %v2048, %v2053
        %v2056 = vunpack.c.l.s4 1983009808
        %v2057 = vunpack.c.0.s8 %v2056
        %v2058 = vperm.slane %v2050, %v2057
        %v2059 = vrot.slane %v777, 4
        %v2060 = vsel %vm791, %v2059, %v729
        %v2061 = vrot.slane %v729, 4
        %v2062 = vsel %vm791, %v777, %v2061
        %v2064 = vunpack.c.l.s4 1983009808
        %v2065 = vunpack.c.0.s8 %v2064
        %v2066 = vperm.slane %v2060, %v2065
        %v2068 = vunpack.c.l.s4 1983009808
        %v2069 = vunpack.c.0.s8 %v2068
        %v2070 = vperm.slane %v2062, %v2069
        %v2071 = vrot.slane %v2042, 4
        %v2072 = vsel %vm791, %v2071, %v2030
        %v2073 = vrot.slane %v2030, 4
        %v2074 = vsel %vm791, %v2042, %v2073
        %v2076 = vunpack.c.l.s4 1934713408
        %v2077 = vunpack.c.0.s8 %v2076
        %v2078 = vperm.slane %v2072, %v2077
        %v2080 = vunpack.c.l.s4 1934713408
        %v2081 = vunpack.c.0.s8 %v2080
        %v2082 = vperm.slane %v2074, %v2081
        %v2083 = vrot.slane %v2046, 4
        %v2084 = vsel %vm791, %v2083, %v2034
        %v2085 = vrot.slane %v2034, 4
        %v2086 = vsel %vm791, %v2046, %v2085
        %v2088 = vunpack.c.l.s4 1934713408
        %v2089 = vunpack.c.0.s8 %v2088
        %v2090 = vperm.slane %v2084, %v2089
        %v2092 = vunpack.c.l.s4 1934713408
        %v2093 = vunpack.c.0.s8 %v2092
        %v2094 = vperm.slane %v2086, %v2093
        %v2095 = vrot.slane %v2066, 4
        %v2096 = vsel %vm791, %v2095, %v2054
        %v2097 = vrot.slane %v2054, 4
        %v2098 = vsel %vm791, %v2066, %v2097
        %v2100 = vunpack.c.l.s4 1934713408
        %v2101 = vunpack.c.0.s8 %v2100
        %v2102 = vperm.slane %v2096, %v2101
        %v2104 = vunpack.c.l.s4 1934713408
        %v2105 = vunpack.c.0.s8 %v2104
        %v2106 = vperm.slane %v2098, %v2105
        %v2107 = vrot.slane %v2070, 4
        %v2108 = vsel %vm791, %v2107, %v2058
        %v2109 = vrot.slane %v2058, 4
        %v2110 = vsel %vm791, %v2070, %v2109
        %v2112 = vunpack.c.l.s4 1934713408
        %v2113 = vunpack.c.0.s8 %v2112
        %v2114 = vperm.slane %v2108, %v2113
        %v2116 = vunpack.c.l.s4 1934713408
        %v2117 = vunpack.c.0.s8 %v2116
        %v2118 = vperm.slane %v2110, %v2117
        %v2119 = vrot.slane %v2102, 4
        %v2120 = vsel %vm791, %v2119, %v2078
        %v2121 = vrot.slane %v2078, 4
        %v2122 = vsel %vm791, %v2102, %v2121
        %v2123 = vrot.slane %v2106, 4
        %v2124 = vsel %vm791, %v2123, %v2082
        %v2125 = vrot.slane %v2082, 4
        %v2126 = vsel %vm791, %v2106, %v2125
        %v2127 = vrot.slane %v2114, 4
        %v2128 = vsel %vm791, %v2127, %v2090
        %v2129 = vrot.slane %v2090, 4
        %v2130 = vsel %vm791, %v2114, %v2129
        %v2131 = vrot.slane %v2118, 4
        %v2132 = vsel %vm791, %v2131, %v2094
        %v2133 = vrot.slane %v2094, 4
        %v2134 = vsel %vm791, %v2118, %v2133
        %v2135 = vrot.slane %v483, 4
        %v2136 = vsel %vm791, %v2135, %v405
        %v2137 = vrot.slane %v405, 4
        %v2138 = vsel %vm791, %v483, %v2137
        %v2140 = vunpack.c.l.s4 1983009808
        %v2141 = vunpack.c.0.s8 %v2140
        %v2142 = vperm.slane %v2136, %v2141
        %v2144 = vunpack.c.l.s4 1983009808
        %v2145 = vunpack.c.0.s8 %v2144
        %v2146 = vperm.slane %v2138, %v2145
        %v2147 = vrot.slane %v507, 4
        %v2148 = vsel %vm791, %v2147, %v459
        %v2149 = vrot.slane %v459, 4
        %v2150 = vsel %vm791, %v507, %v2149
        %v2152 = vunpack.c.l.s4 1983009808
        %v2153 = vunpack.c.0.s8 %v2152
        %v2154 = vperm.slane %v2148, %v2153
        %v2156 = vunpack.c.l.s4 1983009808
        %v2157 = vunpack.c.0.s8 %v2156
        %v2158 = vperm.slane %v2150, %v2157
        %v2159 = vrot.slane %v579, 4
        %v2160 = vsel %vm791, %v2159, %v531
        %v2161 = vrot.slane %v531, 4
        %v2162 = vsel %vm791, %v579, %v2161
        %v2164 = vunpack.c.l.s4 1983009808
        %v2165 = vunpack.c.0.s8 %v2164
        %v2166 = vperm.slane %v2160, %v2165
        %v2168 = vunpack.c.l.s4 1983009808
        %v2169 = vunpack.c.0.s8 %v2168
        %v2170 = vperm.slane %v2162, %v2169
        %v2171 = vrot.slane %v603, 4
        %v2172 = vsel %vm791, %v2171, %v555
        %v2173 = vrot.slane %v555, 4
        %v2174 = vsel %vm791, %v603, %v2173
        %v2176 = vunpack.c.l.s4 1983009808
        %v2177 = vunpack.c.0.s8 %v2176
        %v2178 = vperm.slane %v2172, %v2177
        %v2180 = vunpack.c.l.s4 1983009808
        %v2181 = vunpack.c.0.s8 %v2180
        %v2182 = vperm.slane %v2174, %v2181
        %v2183 = vrot.slane %v2154, 4
        %v2184 = vsel %vm791, %v2183, %v2142
        %v2185 = vrot.slane %v2142, 4
        %v2186 = vsel %vm791, %v2154, %v2185
        %v2188 = vunpack.c.l.s4 1934713408
        %v2189 = vunpack.c.0.s8 %v2188
        %v2190 = vperm.slane %v2184, %v2189
        %v2192 = vunpack.c.l.s4 1934713408
        %v2193 = vunpack.c.0.s8 %v2192
        %v2194 = vperm.slane %v2186, %v2193
        %v2195 = vrot.slane %v2158, 4
        %v2196 = vsel %vm791, %v2195, %v2146
        %v2197 = vrot.slane %v2146, 4
        %v2198 = vsel %vm791, %v2158, %v2197
        %v2200 = vunpack.c.l.s4 1934713408
        %v2201 = vunpack.c.0.s8 %v2200
        %v2202 = vperm.slane %v2196, %v2201
        %v2204 = vunpack.c.l.s4 1934713408
        %v2205 = vunpack.c.0.s8 %v2204
        %v2206 = vperm.slane %v2198, %v2205
        %v2207 = vrot.slane %v2178, 4
        %v2208 = vsel %vm791, %v2207, %v2166
        %v2209 = vrot.slane %v2166, 4
        %v2210 = vsel %vm791, %v2178, %v2209
        %v2212 = vunpack.c.l.s4 1934713408
        %v2213 = vunpack.c.0.s8 %v2212
        %v2214 = vperm.slane %v2208, %v2213
        %v2216 = vunpack.c.l.s4 1934713408
        %v2217 = vunpack.c.0.s8 %v2216
        %v2218 = vperm.slane %v2210, %v2217
        %v2219 = vrot.slane %v2182, 4
        %v2220 = vsel %vm791, %v2219, %v2170
        %v2221 = vrot.slane %v2170, 4
        %v2222 = vsel %vm791, %v2182, %v2221
        %v2224 = vunpack.c.l.s4 1934713408
        %v2225 = vunpack.c.0.s8 %v2224
        %v2226 = vperm.slane %v2220, %v2225
        %v2228 = vunpack.c.l.s4 1934713408
        %v2229 = vunpack.c.0.s8 %v2228
        %v2230 = vperm.slane %v2222, %v2229
        %v2231 = vrot.slane %v2214, 4
        %v2232 = vsel %vm791, %v2231, %v2190
        %v2233 = vrot.slane %v2190, 4
        %v2234 = vsel %vm791, %v2214, %v2233
        %v2235 = vrot.slane %v2218, 4
        %v2236 = vsel %vm791, %v2235, %v2194
        %v2237 = vrot.slane %v2194, 4
        %v2238 = vsel %vm791, %v2218, %v2237
        %v2239 = vrot.slane %v2226, 4
        %v2240 = vsel %vm791, %v2239, %v2202
        %v2241 = vrot.slane %v2202, 4
        %v2242 = vsel %vm791, %v2226, %v2241
        %v2243 = vrot.slane %v2230, 4
        %v2244 = vsel %vm791, %v2243, %v2206
        %v2245 = vrot.slane %v2206, 4
        %v2246 = vsel %vm791, %v2230, %v2245
        %v2247 = vrot.slane %v659, 4
        %v2248 = vsel %vm791, %v2247, %v434
        %v2249 = vrot.slane %v434, 4
        %v2250 = vsel %vm791, %v659, %v2249
        %v2252 = vunpack.c.l.s4 1983009808
        %v2253 = vunpack.c.0.s8 %v2252
        %v2254 = vperm.slane %v2248, %v2253
        %v2256 = vunpack.c.l.s4 1983009808
        %v2257 = vunpack.c.0.s8 %v2256
        %v2258 = vperm.slane %v2250, %v2257
        %v2259 = vrot.slane %v683, 4
        %v2260 = vsel %vm791, %v2259, %v635
        %v2261 = vrot.slane %v635, 4
        %v2262 = vsel %vm791, %v683, %v2261
        %v2264 = vunpack.c.l.s4 1983009808
        %v2265 = vunpack.c.0.s8 %v2264
        %v2266 = vperm.slane %v2260, %v2265
        %v2268 = vunpack.c.l.s4 1983009808
        %v2269 = vunpack.c.0.s8 %v2268
        %v2270 = vperm.slane %v2262, %v2269
        %v2271 = vrot.slane %v755, 4
        %v2272 = vsel %vm791, %v2271, %v707
        %v2273 = vrot.slane %v707, 4
        %v2274 = vsel %vm791, %v755, %v2273
        %v2276 = vunpack.c.l.s4 1983009808
        %v2277 = vunpack.c.0.s8 %v2276
        %v2278 = vperm.slane %v2272, %v2277
        %v2280 = vunpack.c.l.s4 1983009808
        %v2281 = vunpack.c.0.s8 %v2280
        %v2282 = vperm.slane %v2274, %v2281
        %v2283 = vrot.slane %v779, 4
        %v2284 = vsel %vm791, %v2283, %v731
        %v2285 = vrot.slane %v731, 4
        %v2286 = vsel %vm791, %v779, %v2285
        %v2288 = vunpack.c.l.s4 1983009808
        %v2289 = vunpack.c.0.s8 %v2288
        %v2290 = vperm.slane %v2284, %v2289
        %v2292 = vunpack.c.l.s4 1983009808
        %v2293 = vunpack.c.0.s8 %v2292
        %v2294 = vperm.slane %v2286, %v2293
        %v2295 = vrot.slane %v2266, 4
        %v2296 = vsel %vm791, %v2295, %v2254
        %v2297 = vrot.slane %v2254, 4
        %v2298 = vsel %vm791, %v2266, %v2297
        %v2300 = vunpack.c.l.s4 1934713408
        %v2301 = vunpack.c.0.s8 %v2300
        %v2302 = vperm.slane %v2296, %v2301
        %v2304 = vunpack.c.l.s4 1934713408
        %v2305 = vunpack.c.0.s8 %v2304
        %v2306 = vperm.slane %v2298, %v2305
        %v2307 = vrot.slane %v2270, 4
        %v2308 = vsel %vm791, %v2307, %v2258
        %v2309 = vrot.slane %v2258, 4
        %v2310 = vsel %vm791, %v2270, %v2309
        %v2312 = vunpack.c.l.s4 1934713408
        %v2313 = vunpack.c.0.s8 %v2312
        %v2314 = vperm.slane %v2308, %v2313
        %v2316 = vunpack.c.l.s4 1934713408
        %v2317 = vunpack.c.0.s8 %v2316
        %v2318 = vperm.slane %v2310, %v2317
        %v2319 = vrot.slane %v2290, 4
        %v2320 = vsel %vm791, %v2319, %v2278
        %v2321 = vrot.slane %v2278, 4
        %v2322 = vsel %vm791, %v2290, %v2321
        %v2324 = vunpack.c.l.s4 1934713408
        %v2325 = vunpack.c.0.s8 %v2324
        %v2326 = vperm.slane %v2320, %v2325
        %v2328 = vunpack.c.l.s4 1934713408
        %v2329 = vunpack.c.0.s8 %v2328
        %v2330 = vperm.slane %v2322, %v2329
        %v2331 = vrot.slane %v2294, 4
        %v2332 = vsel %vm791, %v2331, %v2282
        %v2333 = vrot.slane %v2282, 4
        %v2334 = vsel %vm791, %v2294, %v2333
        %v2336 = vunpack.c.l.s4 1934713408
        %v2337 = vunpack.c.0.s8 %v2336
        %v2338 = vperm.slane %v2332, %v2337
        %v2340 = vunpack.c.l.s4 1934713408
        %v2341 = vunpack.c.0.s8 %v2340
        %v2342 = vperm.slane %v2334, %v2341
        %v2343 = vrot.slane %v2326, 4
        %v2344 = vsel %vm791, %v2343, %v2302
        %v2345 = vrot.slane %v2302, 4
        %v2346 = vsel %vm791, %v2326, %v2345
        %v2347 = vrot.slane %v2330, 4
        %v2348 = vsel %vm791, %v2347, %v2306
        %v2349 = vrot.slane %v2306, 4
        %v2350 = vsel %vm791, %v2330, %v2349
        %v2351 = vrot.slane %v2338, 4
        %v2352 = vsel %vm791, %v2351, %v2314
        %v2353 = vrot.slane %v2314, 4
        %v2354 = vsel %vm791, %v2338, %v2353
        %v2355 = vrot.slane %v2342, 4
        %v2356 = vsel %vm791, %v2355, %v2318
        %v2357 = vrot.slane %v2318, 4
        %v2358 = vsel %vm791, %v2342, %v2357
        %v2359 = vrot.slane %v485, 4
        %v2360 = vsel %vm791, %v2359, %v407
        %v2361 = vrot.slane %v407, 4
        %v2362 = vsel %vm791, %v485, %v2361
        %v2364 = vunpack.c.l.s4 1983009808
        %v2365 = vunpack.c.0.s8 %v2364
        %v2366 = vperm.slane %v2360, %v2365
        %v2368 = vunpack.c.l.s4 1983009808
        %v2369 = vunpack.c.0.s8 %v2368
        %v2370 = vperm.slane %v2362, %v2369
        %v2371 = vrot.slane %v509, 4
        %v2372 = vsel %vm791, %v2371, %v461
        %v2373 = vrot.slane %v461, 4
        %v2374 = vsel %vm791, %v509, %v2373
        %v2376 = vunpack.c.l.s4 1983009808
        %v2377 = vunpack.c.0.s8 %v2376
        %v2378 = vperm.slane %v2372, %v2377
        %v2380 = vunpack.c.l.s4 1983009808
        %v2381 = vunpack.c.0.s8 %v2380
        %v2382 = vperm.slane %v2374, %v2381
        %v2383 = vrot.slane %v581, 4
        %v2384 = vsel %vm791, %v2383, %v533
        %v2385 = vrot.slane %v533, 4
        %v2386 = vsel %vm791, %v581, %v2385
        %v2388 = vunpack.c.l.s4 1983009808
        %v2389 = vunpack.c.0.s8 %v2388
        %v2390 = vperm.slane %v2384, %v2389
        %v2392 = vunpack.c.l.s4 1983009808
        %v2393 = vunpack.c.0.s8 %v2392
        %v2394 = vperm.slane %v2386, %v2393
        %v2395 = vrot.slane %v605, 4
        %v2396 = vsel %vm791, %v2395, %v557
        %v2397 = vrot.slane %v557, 4
        %v2398 = vsel %vm791, %v605, %v2397
        %v2400 = vunpack.c.l.s4 1983009808
        %v2401 = vunpack.c.0.s8 %v2400
        %v2402 = vperm.slane %v2396, %v2401
        %v2404 = vunpack.c.l.s4 1983009808
        %v2405 = vunpack.c.0.s8 %v2404
        %v2406 = vperm.slane %v2398, %v2405
        %v2407 = vrot.slane %v2378, 4
        %v2408 = vsel %vm791, %v2407, %v2366
        %v2409 = vrot.slane %v2366, 4
        %v2410 = vsel %vm791, %v2378, %v2409
        %v2412 = vunpack.c.l.s4 1934713408
        %v2413 = vunpack.c.0.s8 %v2412
        %v2414 = vperm.slane %v2408, %v2413
        %v2416 = vunpack.c.l.s4 1934713408
        %v2417 = vunpack.c.0.s8 %v2416
        %v2418 = vperm.slane %v2410, %v2417
        %v2419 = vrot.slane %v2382, 4
        %v2420 = vsel %vm791, %v2419, %v2370
        %v2421 = vrot.slane %v2370, 4
        %v2422 = vsel %vm791, %v2382, %v2421
        %v2424 = vunpack.c.l.s4 1934713408
        %v2425 = vunpack.c.0.s8 %v2424
        %v2426 = vperm.slane %v2420, %v2425
        %v2428 = vunpack.c.l.s4 1934713408
        %v2429 = vunpack.c.0.s8 %v2428
        %v2430 = vperm.slane %v2422, %v2429
        %v2431 = vrot.slane %v2402, 4
        %v2432 = vsel %vm791, %v2431, %v2390
        %v2433 = vrot.slane %v2390, 4
        %v2434 = vsel %vm791, %v2402, %v2433
        %v2436 = vunpack.c.l.s4 1934713408
        %v2437 = vunpack.c.0.s8 %v2436
        %v2438 = vperm.slane %v2432, %v2437
        %v2440 = vunpack.c.l.s4 1934713408
        %v2441 = vunpack.c.0.s8 %v2440
        %v2442 = vperm.slane %v2434, %v2441
        %v2443 = vrot.slane %v2406, 4
        %v2444 = vsel %vm791, %v2443, %v2394
        %v2445 = vrot.slane %v2394, 4
        %v2446 = vsel %vm791, %v2406, %v2445
        %v2448 = vunpack.c.l.s4 1934713408
        %v2449 = vunpack.c.0.s8 %v2448
        %v2450 = vperm.slane %v2444, %v2449
        %v2452 = vunpack.c.l.s4 1934713408
        %v2453 = vunpack.c.0.s8 %v2452
        %v2454 = vperm.slane %v2446, %v2453
        %v2455 = vrot.slane %v2438, 4
        %v2456 = vsel %vm791, %v2455, %v2414
        %v2457 = vrot.slane %v2414, 4
        %v2458 = vsel %vm791, %v2438, %v2457
        %v2459 = vrot.slane %v2442, 4
        %v2460 = vsel %vm791, %v2459, %v2418
        %v2461 = vrot.slane %v2418, 4
        %v2462 = vsel %vm791, %v2442, %v2461
        %v2463 = vrot.slane %v2450, 4
        %v2464 = vsel %vm791, %v2463, %v2426
        %v2465 = vrot.slane %v2426, 4
        %v2466 = vsel %vm791, %v2450, %v2465
        %v2467 = vrot.slane %v2454, 4
        %v2468 = vsel %vm791, %v2467, %v2430
        %v2469 = vrot.slane %v2430, 4
        %v2470 = vsel %vm791, %v2454, %v2469
        %v2471 = vrot.slane %v661, 4
        %v2472 = vsel %vm791, %v2471, %v436
        %v2473 = vrot.slane %v436, 4
        %v2474 = vsel %vm791, %v661, %v2473
        %v2476 = vunpack.c.l.s4 1983009808
        %v2477 = vunpack.c.0.s8 %v2476
        %v2478 = vperm.slane %v2472, %v2477
        %v2480 = vunpack.c.l.s4 1983009808
        %v2481 = vunpack.c.0.s8 %v2480
        %v2482 = vperm.slane %v2474, %v2481
        %v2483 = vrot.slane %v685, 4
        %v2484 = vsel %vm791, %v2483, %v637
        %v2485 = vrot.slane %v637, 4
        %v2486 = vsel %vm791, %v685, %v2485
        %v2488 = vunpack.c.l.s4 1983009808
        %v2489 = vunpack.c.0.s8 %v2488
        %v2490 = vperm.slane %v2484, %v2489
        %v2492 = vunpack.c.l.s4 1983009808
        %v2493 = vunpack.c.0.s8 %v2492
        %v2494 = vperm.slane %v2486, %v2493
        %v2495 = vrot.slane %v757, 4
        %v2496 = vsel %vm791, %v2495, %v709
        %v2497 = vrot.slane %v709, 4
        %v2498 = vsel %vm791, %v757, %v2497
        %v2500 = vunpack.c.l.s4 1983009808
        %v2501 = vunpack.c.0.s8 %v2500
        %v2502 = vperm.slane %v2496, %v2501
        %v2504 = vunpack.c.l.s4 1983009808
        %v2505 = vunpack.c.0.s8 %v2504
        %v2506 = vperm.slane %v2498, %v2505
        %v2507 = vrot.slane %v781, 4
        %v2508 = vsel %vm791, %v2507, %v733
        %v2509 = vrot.slane %v733, 4
        %v2510 = vsel %vm791, %v781, %v2509
        %v2512 = vunpack.c.l.s4 1983009808
        %v2513 = vunpack.c.0.s8 %v2512
        %v2514 = vperm.slane %v2508, %v2513
        %v2516 = vunpack.c.l.s4 1983009808
        %v2517 = vunpack.c.0.s8 %v2516
        %v2518 = vperm.slane %v2510, %v2517
        %v2519 = vrot.slane %v2490, 4
        %v2520 = vsel %vm791, %v2519, %v2478
        %v2521 = vrot.slane %v2478, 4
        %v2522 = vsel %vm791, %v2490, %v2521
        %v2524 = vunpack.c.l.s4 1934713408
        %v2525 = vunpack.c.0.s8 %v2524
        %v2526 = vperm.slane %v2520, %v2525
        %v2528 = vunpack.c.l.s4 1934713408
        %v2529 = vunpack.c.0.s8 %v2528
        %v2530 = vperm.slane %v2522, %v2529
        %v2531 = vrot.slane %v2494, 4
        %v2532 = vsel %vm791, %v2531, %v2482
        %v2533 = vrot.slane %v2482, 4
        %v2534 = vsel %vm791, %v2494, %v2533
        %v2536 = vunpack.c.l.s4 1934713408
        %v2537 = vunpack.c.0.s8 %v2536
        %v2538 = vperm.slane %v2532, %v2537
        %v2540 = vunpack.c.l.s4 1934713408
        %v2541 = vunpack.c.0.s8 %v2540
        %v2542 = vperm.slane %v2534, %v2541
        %v2543 = vrot.slane %v2514, 4
        %v2544 = vsel %vm791, %v2543, %v2502
        %v2545 = vrot.slane %v2502, 4
        %v2546 = vsel %vm791, %v2514, %v2545
        %v2548 = vunpack.c.l.s4 1934713408
        %v2549 = vunpack.c.0.s8 %v2548
        %v2550 = vperm.slane %v2544, %v2549
        %v2552 = vunpack.c.l.s4 1934713408
        %v2553 = vunpack.c.0.s8 %v2552
        %v2554 = vperm.slane %v2546, %v2553
        %v2555 = vrot.slane %v2518, 4
        %v2556 = vsel %vm791, %v2555, %v2506
        %v2557 = vrot.slane %v2506, 4
        %v2558 = vsel %vm791, %v2518, %v2557
        %v2560 = vunpack.c.l.s4 1934713408
        %v2561 = vunpack.c.0.s8 %v2560
        %v2562 = vperm.slane %v2556, %v2561
        %v2564 = vunpack.c.l.s4 1934713408
        %v2565 = vunpack.c.0.s8 %v2564
        %v2566 = vperm.slane %v2558, %v2565
        %v2567 = vrot.slane %v2550, 4
        %v2568 = vsel %vm791, %v2567, %v2526
        %v2569 = vrot.slane %v2526, 4
        %v2570 = vsel %vm791, %v2550, %v2569
        %v2571 = vrot.slane %v2554, 4
        %v2572 = vsel %vm791, %v2571, %v2530
        %v2573 = vrot.slane %v2530, 4
        %v2574 = vsel %vm791, %v2554, %v2573
        %v2575 = vrot.slane %v2562, 4
        %v2576 = vsel %vm791, %v2575, %v2538
        %v2577 = vrot.slane %v2538, 4
        %v2578 = vsel %vm791, %v2562, %v2577
        %v2579 = vrot.slane %v2566, 4
        %v2580 = vsel %vm791, %v2579, %v2542
        %v2581 = vrot.slane %v2542, 4
        %v2582 = vsel %vm791, %v2566, %v2581
        %v2583 = vrot.slane %v892, 4
        %v2584 = vsel %vm791, %v2583, %v888
        %v2585 = vrot.slane %v888, 4
        %v2586 = vsel %vm791, %v892, %v2585
        %v2588 = vunpack.c.l.s4 1983009808
        %v2589 = vunpack.c.0.s8 %v2588
        %v2590 = vperm.slane %v2584, %v2589
        %v2592 = vunpack.c.l.s4 1983009808
        %v2593 = vunpack.c.0.s8 %v2592
        %v2594 = vperm.slane %v2586, %v2593
        %v2595 = vrot.slane %v894, 4
        %v2596 = vsel %vm791, %v2595, %v890
        %v2597 = vrot.slane %v890, 4
        %v2598 = vsel %vm791, %v894, %v2597
        %v2600 = vunpack.c.l.s4 1983009808
        %v2601 = vunpack.c.0.s8 %v2600
        %v2602 = vperm.slane %v2596, %v2601
        %v2604 = vunpack.c.l.s4 1983009808
        %v2605 = vunpack.c.0.s8 %v2604
        %v2606 = vperm.slane %v2598, %v2605
        %v2607 = vrot.slane %v900, 4
        %v2608 = vsel %vm791, %v2607, %v896
        %v2609 = vrot.slane %v896, 4
        %v2610 = vsel %vm791, %v900, %v2609
        %v2612 = vunpack.c.l.s4 1983009808
        %v2613 = vunpack.c.0.s8 %v2612
        %v2614 = vperm.slane %v2608, %v2613
        %v2616 = vunpack.c.l.s4 1983009808
        %v2617 = vunpack.c.0.s8 %v2616
        %v2618 = vperm.slane %v2610, %v2617
        %v2619 = vrot.slane %v902, 4
        %v2620 = vsel %vm791, %v2619, %v898
        %v2621 = vrot.slane %v898, 4
        %v2622 = vsel %vm791, %v902, %v2621
        %v2624 = vunpack.c.l.s4 1983009808
        %v2625 = vunpack.c.0.s8 %v2624
        %v2626 = vperm.slane %v2620, %v2625
        %v2628 = vunpack.c.l.s4 1983009808
        %v2629 = vunpack.c.0.s8 %v2628
        %v2630 = vperm.slane %v2622, %v2629
        %v2631 = vrot.slane %v2602, 4
        %v2632 = vsel %vm791, %v2631, %v2590
        %v2633 = vrot.slane %v2590, 4
        %v2634 = vsel %vm791, %v2602, %v2633
        %v2636 = vunpack.c.l.s4 1934713408
        %v2637 = vunpack.c.0.s8 %v2636
        %v2638 = vperm.slane %v2632, %v2637
        %v2640 = vunpack.c.l.s4 1934713408
        %v2641 = vunpack.c.0.s8 %v2640
        %v2642 = vperm.slane %v2634, %v2641
        %v2643 = vrot.slane %v2606, 4
        %v2644 = vsel %vm791, %v2643, %v2594
        %v2645 = vrot.slane %v2594, 4
        %v2646 = vsel %vm791, %v2606, %v2645
        %v2648 = vunpack.c.l.s4 1934713408
        %v2649 = vunpack.c.0.s8 %v2648
        %v2650 = vperm.slane %v2644, %v2649
        %v2652 = vunpack.c.l.s4 1934713408
        %v2653 = vunpack.c.0.s8 %v2652
        %v2654 = vperm.slane %v2646, %v2653
        %v2655 = vrot.slane %v2626, 4
        %v2656 = vsel %vm791, %v2655, %v2614
        %v2657 = vrot.slane %v2614, 4
        %v2658 = vsel %vm791, %v2626, %v2657
        %v2660 = vunpack.c.l.s4 1934713408
        %v2661 = vunpack.c.0.s8 %v2660
        %v2662 = vperm.slane %v2656, %v2661
        %v2664 = vunpack.c.l.s4 1934713408
        %v2665 = vunpack.c.0.s8 %v2664
        %v2666 = vperm.slane %v2658, %v2665
        %v2667 = vrot.slane %v2630, 4
        %v2668 = vsel %vm791, %v2667, %v2618
        %v2669 = vrot.slane %v2618, 4
        %v2670 = vsel %vm791, %v2630, %v2669
        %v2672 = vunpack.c.l.s4 1934713408
        %v2673 = vunpack.c.0.s8 %v2672
        %v2674 = vperm.slane %v2668, %v2673
        %v2676 = vunpack.c.l.s4 1934713408
        %v2677 = vunpack.c.0.s8 %v2676
        %v2678 = vperm.slane %v2670, %v2677
        %v2679 = vrot.slane %v2662, 4
        %v2680 = vsel %vm791, %v2679, %v2638
        %v2681 = vrot.slane %v2638, 4
        %v2682 = vsel %vm791, %v2662, %v2681
        %v2683 = vrot.slane %v2666, 4
        %v2684 = vsel %vm791, %v2683, %v2642
        %v2685 = vrot.slane %v2642, 4
        %v2686 = vsel %vm791, %v2666, %v2685
        %v2687 = vrot.slane %v2674, 4
        %v2688 = vsel %vm791, %v2687, %v2650
        %v2689 = vrot.slane %v2650, 4
        %v2690 = vsel %vm791, %v2674, %v2689
        %v2691 = vrot.slane %v2678, 4
        %v2692 = vsel %vm791, %v2691, %v2654
        %v2693 = vrot.slane %v2654, 4
        %v2694 = vsel %vm791, %v2678, %v2693
        %v2695 = vrot.slane %v1004, 4
        %v2696 = vsel %vm791, %v2695, %v1000
        %v2697 = vrot.slane %v1000, 4
        %v2698 = vsel %vm791, %v1004, %v2697
        %v2700 = vunpack.c.l.s4 1983009808
        %v2701 = vunpack.c.0.s8 %v2700
        %v2702 = vperm.slane %v2696, %v2701
        %v2704 = vunpack.c.l.s4 1983009808
        %v2705 = vunpack.c.0.s8 %v2704
        %v2706 = vperm.slane %v2698, %v2705
        %v2707 = vrot.slane %v1006, 4
        %v2708 = vsel %vm791, %v2707, %v1002
        %v2709 = vrot.slane %v1002, 4
        %v2710 = vsel %vm791, %v1006, %v2709
        %v2712 = vunpack.c.l.s4 1983009808
        %v2713 = vunpack.c.0.s8 %v2712
        %v2714 = vperm.slane %v2708, %v2713
        %v2716 = vunpack.c.l.s4 1983009808
        %v2717 = vunpack.c.0.s8 %v2716
        %v2718 = vperm.slane %v2710, %v2717
        %v2719 = vrot.slane %v1012, 4
        %v2720 = vsel %vm791, %v2719, %v1008
        %v2721 = vrot.slane %v1008, 4
        %v2722 = vsel %vm791, %v1012, %v2721
        %v2724 = vunpack.c.l.s4 1983009808
        %v2725 = vunpack.c.0.s8 %v2724
        %v2726 = vperm.slane %v2720, %v2725
        %v2728 = vunpack.c.l.s4 1983009808
        %v2729 = vunpack.c.0.s8 %v2728
        %v2730 = vperm.slane %v2722, %v2729
        %v2731 = vrot.slane %v1014, 4
        %v2732 = vsel %vm791, %v2731, %v1010
        %v2733 = vrot.slane %v1010, 4
        %v2734 = vsel %vm791, %v1014, %v2733
        %v2736 = vunpack.c.l.s4 1983009808
        %v2737 = vunpack.c.0.s8 %v2736
        %v2738 = vperm.slane %v2732, %v2737
        %v2740 = vunpack.c.l.s4 1983009808
        %v2741 = vunpack.c.0.s8 %v2740
        %v2742 = vperm.slane %v2734, %v2741
        %v2743 = vrot.slane %v2714, 4
        %v2744 = vsel %vm791, %v2743, %v2702
        %v2745 = vrot.slane %v2702, 4
        %v2746 = vsel %vm791, %v2714, %v2745
        %v2748 = vunpack.c.l.s4 1934713408
        %v2749 = vunpack.c.0.s8 %v2748
        %v2750 = vperm.slane %v2744, %v2749
        %v2752 = vunpack.c.l.s4 1934713408
        %v2753 = vunpack.c.0.s8 %v2752
        %v2754 = vperm.slane %v2746, %v2753
        %v2755 = vrot.slane %v2718, 4
        %v2756 = vsel %vm791, %v2755, %v2706
        %v2757 = vrot.slane %v2706, 4
        %v2758 = vsel %vm791, %v2718, %v2757
        %v2760 = vunpack.c.l.s4 1934713408
        %v2761 = vunpack.c.0.s8 %v2760
        %v2762 = vperm.slane %v2756, %v2761
        %v2764 = vunpack.c.l.s4 1934713408
        %v2765 = vunpack.c.0.s8 %v2764
        %v2766 = vperm.slane %v2758, %v2765
        %v2767 = vrot.slane %v2738, 4
        %v2768 = vsel %vm791, %v2767, %v2726
        %v2769 = vrot.slane %v2726, 4
        %v2770 = vsel %vm791, %v2738, %v2769
        %v2772 = vunpack.c.l.s4 1934713408
        %v2773 = vunpack.c.0.s8 %v2772
        %v2774 = vperm.slane %v2768, %v2773
        %v2776 = vunpack.c.l.s4 1934713408
        %v2777 = vunpack.c.0.s8 %v2776
        %v2778 = vperm.slane %v2770, %v2777
        %v2779 = vrot.slane %v2742, 4
        %v2780 = vsel %vm791, %v2779, %v2730
        %v2781 = vrot.slane %v2730, 4
        %v2782 = vsel %vm791, %v2742, %v2781
        %v2784 = vunpack.c.l.s4 1934713408
        %v2785 = vunpack.c.0.s8 %v2784
        %v2786 = vperm.slane %v2780, %v2785
        %v2788 = vunpack.c.l.s4 1934713408
        %v2789 = vunpack.c.0.s8 %v2788
        %v2790 = vperm.slane %v2782, %v2789
        %v2791 = vrot.slane %v2774, 4
        %v2792 = vsel %vm791, %v2791, %v2750
        %v2793 = vrot.slane %v2750, 4
        %v2794 = vsel %vm791, %v2774, %v2793
        %v2795 = vrot.slane %v2778, 4
        %v2796 = vsel %vm791, %v2795, %v2754
        %v2797 = vrot.slane %v2754, 4
        %v2798 = vsel %vm791, %v2778, %v2797
        %v2799 = vrot.slane %v2786, 4
        %v2800 = vsel %vm791, %v2799, %v2762
        %v2801 = vrot.slane %v2762, 4
        %v2802 = vsel %vm791, %v2786, %v2801
        %v2803 = vrot.slane %v2790, 4
        %v2804 = vsel %vm791, %v2803, %v2766
        %v2805 = vrot.slane %v2766, 4
        %v2806 = vsel %vm791, %v2790, %v2805
        %v2807 = vrot.slane %v1116, 4
        %v2808 = vsel %vm791, %v2807, %v1112
        %v2809 = vrot.slane %v1112, 4
        %v2810 = vsel %vm791, %v1116, %v2809
        %v2812 = vunpack.c.l.s4 1983009808
        %v2813 = vunpack.c.0.s8 %v2812
        %v2814 = vperm.slane %v2808, %v2813
        %v2816 = vunpack.c.l.s4 1983009808
        %v2817 = vunpack.c.0.s8 %v2816
        %v2818 = vperm.slane %v2810, %v2817
        %v2819 = vrot.slane %v1118, 4
        %v2820 = vsel %vm791, %v2819, %v1114
        %v2821 = vrot.slane %v1114, 4
        %v2822 = vsel %vm791, %v1118, %v2821
        %v2824 = vunpack.c.l.s4 1983009808
        %v2825 = vunpack.c.0.s8 %v2824
        %v2826 = vperm.slane %v2820, %v2825
        %v2828 = vunpack.c.l.s4 1983009808
        %v2829 = vunpack.c.0.s8 %v2828
        %v2830 = vperm.slane %v2822, %v2829
        %v2831 = vrot.slane %v1124, 4
        %v2832 = vsel %vm791, %v2831, %v1120
        %v2833 = vrot.slane %v1120, 4
        %v2834 = vsel %vm791, %v1124, %v2833
        %v2836 = vunpack.c.l.s4 1983009808
        %v2837 = vunpack.c.0.s8 %v2836
        %v2838 = vperm.slane %v2832, %v2837
        %v2840 = vunpack.c.l.s4 1983009808
        %v2841 = vunpack.c.0.s8 %v2840
        %v2842 = vperm.slane %v2834, %v2841
        %v2843 = vrot.slane %v1126, 4
        %v2844 = vsel %vm791, %v2843, %v1122
        %v2845 = vrot.slane %v1122, 4
        %v2846 = vsel %vm791, %v1126, %v2845
        %v2848 = vunpack.c.l.s4 1983009808
        %v2849 = vunpack.c.0.s8 %v2848
        %v2850 = vperm.slane %v2844, %v2849
        %v2852 = vunpack.c.l.s4 1983009808
        %v2853 = vunpack.c.0.s8 %v2852
        %v2854 = vperm.slane %v2846, %v2853
        %v2855 = vrot.slane %v2826, 4
        %v2856 = vsel %vm791, %v2855, %v2814
        %v2857 = vrot.slane %v2814, 4
        %v2858 = vsel %vm791, %v2826, %v2857
        %v2860 = vunpack.c.l.s4 1934713408
        %v2861 = vunpack.c.0.s8 %v2860
        %v2862 = vperm.slane %v2856, %v2861
        %v2864 = vunpack.c.l.s4 1934713408
        %v2865 = vunpack.c.0.s8 %v2864
        %v2866 = vperm.slane %v2858, %v2865
        %v2867 = vrot.slane %v2830, 4
        %v2868 = vsel %vm791, %v2867, %v2818
        %v2869 = vrot.slane %v2818, 4
        %v2870 = vsel %vm791, %v2830, %v2869
        %v2872 = vunpack.c.l.s4 1934713408
        %v2873 = vunpack.c.0.s8 %v2872
        %v2874 = vperm.slane %v2868, %v2873
        %v2876 = vunpack.c.l.s4 1934713408
        %v2877 = vunpack.c.0.s8 %v2876
        %v2878 = vperm.slane %v2870, %v2877
        %v2879 = vrot.slane %v2850, 4
        %v2880 = vsel %vm791, %v2879, %v2838
        %v2881 = vrot.slane %v2838, 4
        %v2882 = vsel %vm791, %v2850, %v2881
        %v2884 = vunpack.c.l.s4 1934713408
        %v2885 = vunpack.c.0.s8 %v2884
        %v2886 = vperm.slane %v2880, %v2885
        %v2888 = vunpack.c.l.s4 1934713408
        %v2889 = vunpack.c.0.s8 %v2888
        %v2890 = vperm.slane %v2882, %v2889
        %v2891 = vrot.slane %v2854, 4
        %v2892 = vsel %vm791, %v2891, %v2842
        %v2893 = vrot.slane %v2842, 4
        %v2894 = vsel %vm791, %v2854, %v2893
        %v2896 = vunpack.c.l.s4 1934713408
        %v2897 = vunpack.c.0.s8 %v2896
        %v2898 = vperm.slane %v2892, %v2897
        %v2900 = vunpack.c.l.s4 1934713408
        %v2901 = vunpack.c.0.s8 %v2900
        %v2902 = vperm.slane %v2894, %v2901
        %v2903 = vrot.slane %v2886, 4
        %v2904 = vsel %vm791, %v2903, %v2862
        %v2905 = vrot.slane %v2862, 4
        %v2906 = vsel %vm791, %v2886, %v2905
        %v2907 = vrot.slane %v2890, 4
        %v2908 = vsel %vm791, %v2907, %v2866
        %v2909 = vrot.slane %v2866, 4
        %v2910 = vsel %vm791, %v2890, %v2909
        %v2911 = vrot.slane %v2898, 4
        %v2912 = vsel %vm791, %v2911, %v2874
        %v2913 = vrot.slane %v2874, 4
        %v2914 = vsel %vm791, %v2898, %v2913
        %v2915 = vrot.slane %v2902, 4
        %v2916 = vsel %vm791, %v2915, %v2878
        %v2917 = vrot.slane %v2878, 4
        %v2918 = vsel %vm791, %v2902, %v2917
        %v2919 = vrot.slane %v1228, 4
        %v2920 = vsel %vm791, %v2919, %v1224
        %v2921 = vrot.slane %v1224, 4
        %v2922 = vsel %vm791, %v1228, %v2921
        %v2924 = vunpack.c.l.s4 1983009808
        %v2925 = vunpack.c.0.s8 %v2924
        %v2926 = vperm.slane %v2920, %v2925
        %v2928 = vunpack.c.l.s4 1983009808
        %v2929 = vunpack.c.0.s8 %v2928
        %v2930 = vperm.slane %v2922, %v2929
        %v2931 = vrot.slane %v1230, 4
        %v2932 = vsel %vm791, %v2931, %v1226
        %v2933 = vrot.slane %v1226, 4
        %v2934 = vsel %vm791, %v1230, %v2933
        %v2936 = vunpack.c.l.s4 1983009808
        %v2937 = vunpack.c.0.s8 %v2936
        %v2938 = vperm.slane %v2932, %v2937
        %v2940 = vunpack.c.l.s4 1983009808
        %v2941 = vunpack.c.0.s8 %v2940
        %v2942 = vperm.slane %v2934, %v2941
        %v2943 = vrot.slane %v1236, 4
        %v2944 = vsel %vm791, %v2943, %v1232
        %v2945 = vrot.slane %v1232, 4
        %v2946 = vsel %vm791, %v1236, %v2945
        %v2948 = vunpack.c.l.s4 1983009808
        %v2949 = vunpack.c.0.s8 %v2948
        %v2950 = vperm.slane %v2944, %v2949
        %v2952 = vunpack.c.l.s4 1983009808
        %v2953 = vunpack.c.0.s8 %v2952
        %v2954 = vperm.slane %v2946, %v2953
        %v2955 = vrot.slane %v1238, 4
        %v2956 = vsel %vm791, %v2955, %v1234
        %v2957 = vrot.slane %v1234, 4
        %v2958 = vsel %vm791, %v1238, %v2957
        %v2960 = vunpack.c.l.s4 1983009808
        %v2961 = vunpack.c.0.s8 %v2960
        %v2962 = vperm.slane %v2956, %v2961
        %v2964 = vunpack.c.l.s4 1983009808
        %v2965 = vunpack.c.0.s8 %v2964
        %v2966 = vperm.slane %v2958, %v2965
        %v2967 = vrot.slane %v2938, 4
        %v2968 = vsel %vm791, %v2967, %v2926
        %v2969 = vrot.slane %v2926, 4
        %v2970 = vsel %vm791, %v2938, %v2969
        %v2972 = vunpack.c.l.s4 1934713408
        %v2973 = vunpack.c.0.s8 %v2972
        %v2974 = vperm.slane %v2968, %v2973
        %v2976 = vunpack.c.l.s4 1934713408
        %v2977 = vunpack.c.0.s8 %v2976
        %v2978 = vperm.slane %v2970, %v2977
        %v2979 = vrot.slane %v2942, 4
        %v2980 = vsel %vm791, %v2979, %v2930
        %v2981 = vrot.slane %v2930, 4
        %v2982 = vsel %vm791, %v2942, %v2981
        %v2984 = vunpack.c.l.s4 1934713408
        %v2985 = vunpack.c.0.s8 %v2984
        %v2986 = vperm.slane %v2980, %v2985
        %v2988 = vunpack.c.l.s4 1934713408
        %v2989 = vunpack.c.0.s8 %v2988
        %v2990 = vperm.slane %v2982, %v2989
        %v2991 = vrot.slane %v2962, 4
        %v2992 = vsel %vm791, %v2991, %v2950
        %v2993 = vrot.slane %v2950, 4
        %v2994 = vsel %vm791, %v2962, %v2993
        %v2996 = vunpack.c.l.s4 1934713408
        %v2997 = vunpack.c.0.s8 %v2996
        %v2998 = vperm.slane %v2992, %v2997
        %v3000 = vunpack.c.l.s4 1934713408
        %v3001 = vunpack.c.0.s8 %v3000
        %v3002 = vperm.slane %v2994, %v3001
        %v3003 = vrot.slane %v2966, 4
        %v3004 = vsel %vm791, %v3003, %v2954
        %v3005 = vrot.slane %v2954, 4
        %v3006 = vsel %vm791, %v2966, %v3005
        %v3008 = vunpack.c.l.s4 1934713408
        %v3009 = vunpack.c.0.s8 %v3008
        %v3010 = vperm.slane %v3004, %v3009
        %v3012 = vunpack.c.l.s4 1934713408
        %v3013 = vunpack.c.0.s8 %v3012
        %v3014 = vperm.slane %v3006, %v3013
        %v3015 = vrot.slane %v2998, 4
        %v3016 = vsel %vm791, %v3015, %v2974
        %v3017 = vrot.slane %v2974, 4
        %v3018 = vsel %vm791, %v2998, %v3017
        %v3019 = vrot.slane %v3002, 4
        %v3020 = vsel %vm791, %v3019, %v2978
        %v3021 = vrot.slane %v2978, 4
        %v3022 = vsel %vm791, %v3002, %v3021
        %v3023 = vrot.slane %v3010, 4
        %v3024 = vsel %vm791, %v3023, %v2986
        %v3025 = vrot.slane %v2986, 4
        %v3026 = vsel %vm791, %v3010, %v3025
        %v3027 = vrot.slane %v3014, 4
        %v3028 = vsel %vm791, %v3027, %v2990
        %v3029 = vrot.slane %v2990, 4
        %v3030 = vsel %vm791, %v3014, %v3029
        %v3031 = vrot.slane %v1340, 4
        %v3032 = vsel %vm791, %v3031, %v1336
        %v3033 = vrot.slane %v1336, 4
        %v3034 = vsel %vm791, %v1340, %v3033
        %v3036 = vunpack.c.l.s4 1983009808
        %v3037 = vunpack.c.0.s8 %v3036
        %v3038 = vperm.slane %v3032, %v3037
        %v3040 = vunpack.c.l.s4 1983009808
        %v3041 = vunpack.c.0.s8 %v3040
        %v3042 = vperm.slane %v3034, %v3041
        %v3043 = vrot.slane %v1342, 4
        %v3044 = vsel %vm791, %v3043, %v1338
        %v3045 = vrot.slane %v1338, 4
        %v3046 = vsel %vm791, %v1342, %v3045
        %v3048 = vunpack.c.l.s4 1983009808
        %v3049 = vunpack.c.0.s8 %v3048
        %v3050 = vperm.slane %v3044, %v3049
        %v3052 = vunpack.c.l.s4 1983009808
        %v3053 = vunpack.c.0.s8 %v3052
        %v3054 = vperm.slane %v3046, %v3053
        %v3055 = vrot.slane %v1348, 4
        %v3056 = vsel %vm791, %v3055, %v1344
        %v3057 = vrot.slane %v1344, 4
        %v3058 = vsel %vm791, %v1348, %v3057
        %v3060 = vunpack.c.l.s4 1983009808
        %v3061 = vunpack.c.0.s8 %v3060
        %v3062 = vperm.slane %v3056, %v3061
        %v3064 = vunpack.c.l.s4 1983009808
        %v3065 = vunpack.c.0.s8 %v3064
        %v3066 = vperm.slane %v3058, %v3065
        %v3067 = vrot.slane %v1350, 4
        %v3068 = vsel %vm791, %v3067, %v1346
        %v3069 = vrot.slane %v1346, 4
        %v3070 = vsel %vm791, %v1350, %v3069
        %v3072 = vunpack.c.l.s4 1983009808
        %v3073 = vunpack.c.0.s8 %v3072
        %v3074 = vperm.slane %v3068, %v3073
        %v3076 = vunpack.c.l.s4 1983009808
        %v3077 = vunpack.c.0.s8 %v3076
        %v3078 = vperm.slane %v3070, %v3077
        %v3079 = vrot.slane %v3050, 4
        %v3080 = vsel %vm791, %v3079, %v3038
        %v3081 = vrot.slane %v3038, 4
        %v3082 = vsel %vm791, %v3050, %v3081
        %v3084 = vunpack.c.l.s4 1934713408
        %v3085 = vunpack.c.0.s8 %v3084
        %v3086 = vperm.slane %v3080, %v3085
        %v3088 = vunpack.c.l.s4 1934713408
        %v3089 = vunpack.c.0.s8 %v3088
        %v3090 = vperm.slane %v3082, %v3089
        %v3091 = vrot.slane %v3054, 4
        %v3092 = vsel %vm791, %v3091, %v3042
        %v3093 = vrot.slane %v3042, 4
        %v3094 = vsel %vm791, %v3054, %v3093
        %v3096 = vunpack.c.l.s4 1934713408
        %v3097 = vunpack.c.0.s8 %v3096
        %v3098 = vperm.slane %v3092, %v3097
        %v3100 = vunpack.c.l.s4 1934713408
        %v3101 = vunpack.c.0.s8 %v3100
        %v3102 = vperm.slane %v3094, %v3101
        %v3103 = vrot.slane %v3074, 4
        %v3104 = vsel %vm791, %v3103, %v3062
        %v3105 = vrot.slane %v3062, 4
        %v3106 = vsel %vm791, %v3074, %v3105
        %v3108 = vunpack.c.l.s4 1934713408
        %v3109 = vunpack.c.0.s8 %v3108
        %v3110 = vperm.slane %v3104, %v3109
        %v3112 = vunpack.c.l.s4 1934713408
        %v3113 = vunpack.c.0.s8 %v3112
        %v3114 = vperm.slane %v3106, %v3113
        %v3115 = vrot.slane %v3078, 4
        %v3116 = vsel %vm791, %v3115, %v3066
        %v3117 = vrot.slane %v3066, 4
        %v3118 = vsel %vm791, %v3078, %v3117
        %v3120 = vunpack.c.l.s4 1934713408
        %v3121 = vunpack.c.0.s8 %v3120
        %v3122 = vperm.slane %v3116, %v3121
        %v3124 = vunpack.c.l.s4 1934713408
        %v3125 = vunpack.c.0.s8 %v3124
        %v3126 = vperm.slane %v3118, %v3125
        %v3127 = vrot.slane %v3110, 4
        %v3128 = vsel %vm791, %v3127, %v3086
        %v3129 = vrot.slane %v3086, 4
        %v3130 = vsel %vm791, %v3110, %v3129
        %v3131 = vrot.slane %v3114, 4
        %v3132 = vsel %vm791, %v3131, %v3090
        %v3133 = vrot.slane %v3090, 4
        %v3134 = vsel %vm791, %v3114, %v3133
        %v3135 = vrot.slane %v3122, 4
        %v3136 = vsel %vm791, %v3135, %v3098
        %v3137 = vrot.slane %v3098, 4
        %v3138 = vsel %vm791, %v3122, %v3137
        %v3139 = vrot.slane %v3126, 4
        %v3140 = vsel %vm791, %v3139, %v3102
        %v3141 = vrot.slane %v3102, 4
        %v3142 = vsel %vm791, %v3126, %v3141
        %v3143 = vrot.slane %v1452, 4
        %v3144 = vsel %vm791, %v3143, %v1448
        %v3145 = vrot.slane %v1448, 4
        %v3146 = vsel %vm791, %v1452, %v3145
        %v3148 = vunpack.c.l.s4 1983009808
        %v3149 = vunpack.c.0.s8 %v3148
        %v3150 = vperm.slane %v3144, %v3149
        %v3152 = vunpack.c.l.s4 1983009808
        %v3153 = vunpack.c.0.s8 %v3152
        %v3154 = vperm.slane %v3146, %v3153
        %v3155 = vrot.slane %v1454, 4
        %v3156 = vsel %vm791, %v3155, %v1450
        %v3157 = vrot.slane %v1450, 4
        %v3158 = vsel %vm791, %v1454, %v3157
        %v3160 = vunpack.c.l.s4 1983009808
        %v3161 = vunpack.c.0.s8 %v3160
        %v3162 = vperm.slane %v3156, %v3161
        %v3164 = vunpack.c.l.s4 1983009808
        %v3165 = vunpack.c.0.s8 %v3164
        %v3166 = vperm.slane %v3158, %v3165
        %v3167 = vrot.slane %v1460, 4
        %v3168 = vsel %vm791, %v3167, %v1456
        %v3169 = vrot.slane %v1456, 4
        %v3170 = vsel %vm791, %v1460, %v3169
        %v3172 = vunpack.c.l.s4 1983009808
        %v3173 = vunpack.c.0.s8 %v3172
        %v3174 = vperm.slane %v3168, %v3173
        %v3176 = vunpack.c.l.s4 1983009808
        %v3177 = vunpack.c.0.s8 %v3176
        %v3178 = vperm.slane %v3170, %v3177
        %v3179 = vrot.slane %v1462, 4
        %v3180 = vsel %vm791, %v3179, %v1458
        %v3181 = vrot.slane %v1458, 4
        %v3182 = vsel %vm791, %v1462, %v3181
        %v3184 = vunpack.c.l.s4 1983009808
        %v3185 = vunpack.c.0.s8 %v3184
        %v3186 = vperm.slane %v3180, %v3185
        %v3188 = vunpack.c.l.s4 1983009808
        %v3189 = vunpack.c.0.s8 %v3188
        %v3190 = vperm.slane %v3182, %v3189
        %v3191 = vrot.slane %v3162, 4
        %v3192 = vsel %vm791, %v3191, %v3150
        %v3193 = vrot.slane %v3150, 4
        %v3194 = vsel %vm791, %v3162, %v3193
        %v3196 = vunpack.c.l.s4 1934713408
        %v3197 = vunpack.c.0.s8 %v3196
        %v3198 = vperm.slane %v3192, %v3197
        %v3200 = vunpack.c.l.s4 1934713408
        %v3201 = vunpack.c.0.s8 %v3200
        %v3202 = vperm.slane %v3194, %v3201
        %v3203 = vrot.slane %v3166, 4
        %v3204 = vsel %vm791, %v3203, %v3154
        %v3205 = vrot.slane %v3154, 4
        %v3206 = vsel %vm791, %v3166, %v3205
        %v3208 = vunpack.c.l.s4 1934713408
        %v3209 = vunpack.c.0.s8 %v3208
        %v3210 = vperm.slane %v3204, %v3209
        %v3212 = vunpack.c.l.s4 1934713408
        %v3213 = vunpack.c.0.s8 %v3212
        %v3214 = vperm.slane %v3206, %v3213
        %v3215 = vrot.slane %v3186, 4
        %v3216 = vsel %vm791, %v3215, %v3174
        %v3217 = vrot.slane %v3174, 4
        %v3218 = vsel %vm791, %v3186, %v3217
        %v3220 = vunpack.c.l.s4 1934713408
        %v3221 = vunpack.c.0.s8 %v3220
        %v3222 = vperm.slane %v3216, %v3221
        %v3224 = vunpack.c.l.s4 1934713408
        %v3225 = vunpack.c.0.s8 %v3224
        %v3226 = vperm.slane %v3218, %v3225
        %v3227 = vrot.slane %v3190, 4
        %v3228 = vsel %vm791, %v3227, %v3178
        %v3229 = vrot.slane %v3178, 4
        %v3230 = vsel %vm791, %v3190, %v3229
        %v3232 = vunpack.c.l.s4 1934713408
        %v3233 = vunpack.c.0.s8 %v3232
        %v3234 = vperm.slane %v3228, %v3233
        %v3236 = vunpack.c.l.s4 1934713408
        %v3237 = vunpack.c.0.s8 %v3236
        %v3238 = vperm.slane %v3230, %v3237
        %v3239 = vrot.slane %v3222, 4
        %v3240 = vsel %vm791, %v3239, %v3198
        %v3241 = vrot.slane %v3198, 4
        %v3242 = vsel %vm791, %v3222, %v3241
        %v3243 = vrot.slane %v3226, 4
        %v3244 = vsel %vm791, %v3243, %v3202
        %v3245 = vrot.slane %v3202, 4
        %v3246 = vsel %vm791, %v3226, %v3245
        %v3247 = vrot.slane %v3234, 4
        %v3248 = vsel %vm791, %v3247, %v3210
        %v3249 = vrot.slane %v3210, 4
        %v3250 = vsel %vm791, %v3234, %v3249
        %v3251 = vrot.slane %v3238, 4
        %v3252 = vsel %vm791, %v3251, %v3214
        %v3253 = vrot.slane %v3214, 4
        %v3254 = vsel %vm791, %v3238, %v3253
        %v3255 = vrot.slane %v1564, 4
        %v3256 = vsel %vm791, %v3255, %v1560
        %v3257 = vrot.slane %v1560, 4
        %v3258 = vsel %vm791, %v1564, %v3257
        %v3260 = vunpack.c.l.s4 1983009808
        %v3261 = vunpack.c.0.s8 %v3260
        %v3262 = vperm.slane %v3256, %v3261
        %v3264 = vunpack.c.l.s4 1983009808
        %v3265 = vunpack.c.0.s8 %v3264
        %v3266 = vperm.slane %v3258, %v3265
        %v3267 = vrot.slane %v1566, 4
        %v3268 = vsel %vm791, %v3267, %v1562
        %v3269 = vrot.slane %v1562, 4
        %v3270 = vsel %vm791, %v1566, %v3269
        %v3272 = vunpack.c.l.s4 1983009808
        %v3273 = vunpack.c.0.s8 %v3272
        %v3274 = vperm.slane %v3268, %v3273
        %v3276 = vunpack.c.l.s4 1983009808
        %v3277 = vunpack.c.0.s8 %v3276
        %v3278 = vperm.slane %v3270, %v3277
        %v3279 = vrot.slane %v1572, 4
        %v3280 = vsel %vm791, %v3279, %v1568
        %v3281 = vrot.slane %v1568, 4
        %v3282 = vsel %vm791, %v1572, %v3281
        %v3284 = vunpack.c.l.s4 1983009808
        %v3285 = vunpack.c.0.s8 %v3284
        %v3286 = vperm.slane %v3280, %v3285
        %v3288 = vunpack.c.l.s4 1983009808
        %v3289 = vunpack.c.0.s8 %v3288
        %v3290 = vperm.slane %v3282, %v3289
        %v3291 = vrot.slane %v1574, 4
        %v3292 = vsel %vm791, %v3291, %v1570
        %v3293 = vrot.slane %v1570, 4
        %v3294 = vsel %vm791, %v1574, %v3293
        %v3296 = vunpack.c.l.s4 1983009808
        %v3297 = vunpack.c.0.s8 %v3296
        %v3298 = vperm.slane %v3292, %v3297
        %v3300 = vunpack.c.l.s4 1983009808
        %v3301 = vunpack.c.0.s8 %v3300
        %v3302 = vperm.slane %v3294, %v3301
        %v3303 = vrot.slane %v3274, 4
        %v3304 = vsel %vm791, %v3303, %v3262
        %v3305 = vrot.slane %v3262, 4
        %v3306 = vsel %vm791, %v3274, %v3305
        %v3308 = vunpack.c.l.s4 1934713408
        %v3309 = vunpack.c.0.s8 %v3308
        %v3310 = vperm.slane %v3304, %v3309
        %v3312 = vunpack.c.l.s4 1934713408
        %v3313 = vunpack.c.0.s8 %v3312
        %v3314 = vperm.slane %v3306, %v3313
        %v3315 = vrot.slane %v3278, 4
        %v3316 = vsel %vm791, %v3315, %v3266
        %v3317 = vrot.slane %v3266, 4
        %v3318 = vsel %vm791, %v3278, %v3317
        %v3320 = vunpack.c.l.s4 1934713408
        %v3321 = vunpack.c.0.s8 %v3320
        %v3322 = vperm.slane %v3316, %v3321
        %v3324 = vunpack.c.l.s4 1934713408
        %v3325 = vunpack.c.0.s8 %v3324
        %v3326 = vperm.slane %v3318, %v3325
        %v3327 = vrot.slane %v3298, 4
        %v3328 = vsel %vm791, %v3327, %v3286
        %v3329 = vrot.slane %v3286, 4
        %v3330 = vsel %vm791, %v3298, %v3329
        %v3332 = vunpack.c.l.s4 1934713408
        %v3333 = vunpack.c.0.s8 %v3332
        %v3334 = vperm.slane %v3328, %v3333
        %v3336 = vunpack.c.l.s4 1934713408
        %v3337 = vunpack.c.0.s8 %v3336
        %v3338 = vperm.slane %v3330, %v3337
        %v3339 = vrot.slane %v3302, 4
        %v3340 = vsel %vm791, %v3339, %v3290
        %v3341 = vrot.slane %v3290, 4
        %v3342 = vsel %vm791, %v3302, %v3341
        %v3344 = vunpack.c.l.s4 1934713408
        %v3345 = vunpack.c.0.s8 %v3344
        %v3346 = vperm.slane %v3340, %v3345
        %v3348 = vunpack.c.l.s4 1934713408
        %v3349 = vunpack.c.0.s8 %v3348
        %v3350 = vperm.slane %v3342, %v3349
        %v3351 = vrot.slane %v3334, 4
        %v3352 = vsel %vm791, %v3351, %v3310
        %v3353 = vrot.slane %v3310, 4
        %v3354 = vsel %vm791, %v3334, %v3353
        %v3355 = vrot.slane %v3338, 4
        %v3356 = vsel %vm791, %v3355, %v3314
        %v3357 = vrot.slane %v3314, 4
        %v3358 = vsel %vm791, %v3338, %v3357
        %v3359 = vrot.slane %v3346, 4
        %v3360 = vsel %vm791, %v3359, %v3322
        %v3361 = vrot.slane %v3322, 4
        %v3362 = vsel %vm791, %v3346, %v3361
        %v3363 = vrot.slane %v3350, 4
        %v3364 = vsel %vm791, %v3363, %v3326
        %v3365 = vrot.slane %v3326, 4
        %v3366 = vsel %vm791, %v3350, %v3365
        %v3367 = vrot.slane %v1676, 4
        %v3368 = vsel %vm791, %v3367, %v1672
        %v3369 = vrot.slane %v1672, 4
        %v3370 = vsel %vm791, %v1676, %v3369
        %v3372 = vunpack.c.l.s4 1983009808
        %v3373 = vunpack.c.0.s8 %v3372
        %v3374 = vperm.slane %v3368, %v3373
        %v3376 = vunpack.c.l.s4 1983009808
        %v3377 = vunpack.c.0.s8 %v3376
        %v3378 = vperm.slane %v3370, %v3377
        %v3379 = vrot.slane %v1678, 4
        %v3380 = vsel %vm791, %v3379, %v1674
        %v3381 = vrot.slane %v1674, 4
        %v3382 = vsel %vm791, %v1678, %v3381
        %v3384 = vunpack.c.l.s4 1983009808
        %v3385 = vunpack.c.0.s8 %v3384
        %v3386 = vperm.slane %v3380, %v3385
        %v3388 = vunpack.c.l.s4 1983009808
        %v3389 = vunpack.c.0.s8 %v3388
        %v3390 = vperm.slane %v3382, %v3389
        %v3391 = vrot.slane %v1684, 4
        %v3392 = vsel %vm791, %v3391, %v1680
        %v3393 = vrot.slane %v1680, 4
        %v3394 = vsel %vm791, %v1684, %v3393
        %v3396 = vunpack.c.l.s4 1983009808
        %v3397 = vunpack.c.0.s8 %v3396
        %v3398 = vperm.slane %v3392, %v3397
        %v3400 = vunpack.c.l.s4 1983009808
        %v3401 = vunpack.c.0.s8 %v3400
        %v3402 = vperm.slane %v3394, %v3401
        %v3403 = vrot.slane %v1686, 4
        %v3404 = vsel %vm791, %v3403, %v1682
        %v3405 = vrot.slane %v1682, 4
        %v3406 = vsel %vm791, %v1686, %v3405
        %v3408 = vunpack.c.l.s4 1983009808
        %v3409 = vunpack.c.0.s8 %v3408
        %v3410 = vperm.slane %v3404, %v3409
        %v3412 = vunpack.c.l.s4 1983009808
        %v3413 = vunpack.c.0.s8 %v3412
        %v3414 = vperm.slane %v3406, %v3413
        %v3415 = vrot.slane %v3386, 4
        %v3416 = vsel %vm791, %v3415, %v3374
        %v3417 = vrot.slane %v3374, 4
        %v3418 = vsel %vm791, %v3386, %v3417
        %v3420 = vunpack.c.l.s4 1934713408
        %v3421 = vunpack.c.0.s8 %v3420
        %v3422 = vperm.slane %v3416, %v3421
        %v3424 = vunpack.c.l.s4 1934713408
        %v3425 = vunpack.c.0.s8 %v3424
        %v3426 = vperm.slane %v3418, %v3425
        %v3427 = vrot.slane %v3390, 4
        %v3428 = vsel %vm791, %v3427, %v3378
        %v3429 = vrot.slane %v3378, 4
        %v3430 = vsel %vm791, %v3390, %v3429
        %v3432 = vunpack.c.l.s4 1934713408
        %v3433 = vunpack.c.0.s8 %v3432
        %v3434 = vperm.slane %v3428, %v3433
        %v3436 = vunpack.c.l.s4 1934713408
        %v3437 = vunpack.c.0.s8 %v3436
        %v3438 = vperm.slane %v3430, %v3437
        %v3439 = vrot.slane %v3410, 4
        %v3440 = vsel %vm791, %v3439, %v3398
        %v3441 = vrot.slane %v3398, 4
        %v3442 = vsel %vm791, %v3410, %v3441
        %v3444 = vunpack.c.l.s4 1934713408
        %v3445 = vunpack.c.0.s8 %v3444
        %v3446 = vperm.slane %v3440, %v3445
        %v3448 = vunpack.c.l.s4 1934713408
        %v3449 = vunpack.c.0.s8 %v3448
        %v3450 = vperm.slane %v3442, %v3449
        %v3451 = vrot.slane %v3414, 4
        %v3452 = vsel %vm791, %v3451, %v3402
        %v3453 = vrot.slane %v3402, 4
        %v3454 = vsel %vm791, %v3414, %v3453
        %v3456 = vunpack.c.l.s4 1934713408
        %v3457 = vunpack.c.0.s8 %v3456
        %v3458 = vperm.slane %v3452, %v3457
        %v3460 = vunpack.c.l.s4 1934713408
        %v3461 = vunpack.c.0.s8 %v3460
        %v3462 = vperm.slane %v3454, %v3461
        %v3463 = vrot.slane %v3446, 4
        %v3464 = vsel %vm791, %v3463, %v3422
        %v3465 = vrot.slane %v3422, 4
        %v3466 = vsel %vm791, %v3446, %v3465
        %v3467 = vrot.slane %v3450, 4
        %v3468 = vsel %vm791, %v3467, %v3426
        %v3469 = vrot.slane %v3426, 4
        %v3470 = vsel %vm791, %v3450, %v3469
        %v3471 = vrot.slane %v3458, 4
        %v3472 = vsel %vm791, %v3471, %v3434
        %v3473 = vrot.slane %v3434, 4
        %v3474 = vsel %vm791, %v3458, %v3473
        %v3475 = vrot.slane %v3462, 4
        %v3476 = vsel %vm791, %v3475, %v3438
        %v3477 = vrot.slane %v3438, 4
        %v3478 = vsel %vm791, %v3462, %v3477
        %v3479 = vrot.slane %v1788, 4
        %v3480 = vsel %vm791, %v3479, %v1784
        %v3481 = vrot.slane %v1784, 4
        %v3482 = vsel %vm791, %v1788, %v3481
        %v3484 = vunpack.c.l.s4 1983009808
        %v3485 = vunpack.c.0.s8 %v3484
        %v3486 = vperm.slane %v3480, %v3485
        %v3488 = vunpack.c.l.s4 1983009808
        %v3489 = vunpack.c.0.s8 %v3488
        %v3490 = vperm.slane %v3482, %v3489
        %v3491 = vrot.slane %v1790, 4
        %v3492 = vsel %vm791, %v3491, %v1786
        %v3493 = vrot.slane %v1786, 4
        %v3494 = vsel %vm791, %v1790, %v3493
        %v3496 = vunpack.c.l.s4 1983009808
        %v3497 = vunpack.c.0.s8 %v3496
        %v3498 = vperm.slane %v3492, %v3497
        %v3500 = vunpack.c.l.s4 1983009808
        %v3501 = vunpack.c.0.s8 %v3500
        %v3502 = vperm.slane %v3494, %v3501
        %v3503 = vrot.slane %v1796, 4
        %v3504 = vsel %vm791, %v3503, %v1792
        %v3505 = vrot.slane %v1792, 4
        %v3506 = vsel %vm791, %v1796, %v3505
        %v3508 = vunpack.c.l.s4 1983009808
        %v3509 = vunpack.c.0.s8 %v3508
        %v3510 = vperm.slane %v3504, %v3509
        %v3512 = vunpack.c.l.s4 1983009808
        %v3513 = vunpack.c.0.s8 %v3512
        %v3514 = vperm.slane %v3506, %v3513
        %v3515 = vrot.slane %v1798, 4
        %v3516 = vsel %vm791, %v3515, %v1794
        %v3517 = vrot.slane %v1794, 4
        %v3518 = vsel %vm791, %v1798, %v3517
        %v3520 = vunpack.c.l.s4 1983009808
        %v3521 = vunpack.c.0.s8 %v3520
        %v3522 = vperm.slane %v3516, %v3521
        %v3524 = vunpack.c.l.s4 1983009808
        %v3525 = vunpack.c.0.s8 %v3524
        %v3526 = vperm.slane %v3518, %v3525
        %v3527 = vrot.slane %v3498, 4
        %v3528 = vsel %vm791, %v3527, %v3486
        %v3529 = vrot.slane %v3486, 4
        %v3530 = vsel %vm791, %v3498, %v3529
        %v3532 = vunpack.c.l.s4 1934713408
        %v3533 = vunpack.c.0.s8 %v3532
        %v3534 = vperm.slane %v3528, %v3533
        %v3536 = vunpack.c.l.s4 1934713408
        %v3537 = vunpack.c.0.s8 %v3536
        %v3538 = vperm.slane %v3530, %v3537
        %v3539 = vrot.slane %v3502, 4
        %v3540 = vsel %vm791, %v3539, %v3490
        %v3541 = vrot.slane %v3490, 4
        %v3542 = vsel %vm791, %v3502, %v3541
        %v3544 = vunpack.c.l.s4 1934713408
        %v3545 = vunpack.c.0.s8 %v3544
        %v3546 = vperm.slane %v3540, %v3545
        %v3548 = vunpack.c.l.s4 1934713408
        %v3549 = vunpack.c.0.s8 %v3548
        %v3550 = vperm.slane %v3542, %v3549
        %v3551 = vrot.slane %v3522, 4
        %v3552 = vsel %vm791, %v3551, %v3510
        %v3553 = vrot.slane %v3510, 4
        %v3554 = vsel %vm791, %v3522, %v3553
        %v3556 = vunpack.c.l.s4 1934713408
        %v3557 = vunpack.c.0.s8 %v3556
        %v3558 = vperm.slane %v3552, %v3557
        %v3560 = vunpack.c.l.s4 1934713408
        %v3561 = vunpack.c.0.s8 %v3560
        %v3562 = vperm.slane %v3554, %v3561
        %v3563 = vrot.slane %v3526, 4
        %v3564 = vsel %vm791, %v3563, %v3514
        %v3565 = vrot.slane %v3514, 4
        %v3566 = vsel %vm791, %v3526, %v3565
        %v3568 = vunpack.c.l.s4 1934713408
        %v3569 = vunpack.c.0.s8 %v3568
        %v3570 = vperm.slane %v3564, %v3569
        %v3572 = vunpack.c.l.s4 1934713408
        %v3573 = vunpack.c.0.s8 %v3572
        %v3574 = vperm.slane %v3566, %v3573
        %v3575 = vrot.slane %v3558, 4
        %v3576 = vsel %vm791, %v3575, %v3534
        %v3577 = vrot.slane %v3534, 4
        %v3578 = vsel %vm791, %v3558, %v3577
        %v3579 = vrot.slane %v3562, 4
        %v3580 = vsel %vm791, %v3579, %v3538
        %v3581 = vrot.slane %v3538, 4
        %v3582 = vsel %vm791, %v3562, %v3581
        %v3583 = vrot.slane %v3570, 4
        %v3584 = vsel %vm791, %v3583, %v3546
        %v3585 = vrot.slane %v3546, 4
        %v3586 = vsel %vm791, %v3570, %v3585
        %v3587 = vrot.slane %v3574, 4
        %v3588 = vsel %vm791, %v3587, %v3550
        %v3589 = vrot.slane %v3550, 4
        %v3590 = vsel %vm791, %v3574, %v3589
        %v3591 = vrot.slane %v1900, 4
        %v3592 = vsel %vm791, %v3591, %v1896
        %v3593 = vrot.slane %v1896, 4
        %v3594 = vsel %vm791, %v1900, %v3593
        %v3596 = vunpack.c.l.s4 1983009808
        %v3597 = vunpack.c.0.s8 %v3596
        %v3598 = vperm.slane %v3592, %v3597
        %v3600 = vunpack.c.l.s4 1983009808
        %v3601 = vunpack.c.0.s8 %v3600
        %v3602 = vperm.slane %v3594, %v3601
        %v3603 = vrot.slane %v1902, 4
        %v3604 = vsel %vm791, %v3603, %v1898
        %v3605 = vrot.slane %v1898, 4
        %v3606 = vsel %vm791, %v1902, %v3605
        %v3608 = vunpack.c.l.s4 1983009808
        %v3609 = vunpack.c.0.s8 %v3608
        %v3610 = vperm.slane %v3604, %v3609
        %v3612 = vunpack.c.l.s4 1983009808
        %v3613 = vunpack.c.0.s8 %v3612
        %v3614 = vperm.slane %v3606, %v3613
        %v3615 = vrot.slane %v1908, 4
        %v3616 = vsel %vm791, %v3615, %v1904
        %v3617 = vrot.slane %v1904, 4
        %v3618 = vsel %vm791, %v1908, %v3617
        %v3620 = vunpack.c.l.s4 1983009808
        %v3621 = vunpack.c.0.s8 %v3620
        %v3622 = vperm.slane %v3616, %v3621
        %v3624 = vunpack.c.l.s4 1983009808
        %v3625 = vunpack.c.0.s8 %v3624
        %v3626 = vperm.slane %v3618, %v3625
        %v3627 = vrot.slane %v1910, 4
        %v3628 = vsel %vm791, %v3627, %v1906
        %v3629 = vrot.slane %v1906, 4
        %v3630 = vsel %vm791, %v1910, %v3629
        %v3632 = vunpack.c.l.s4 1983009808
        %v3633 = vunpack.c.0.s8 %v3632
        %v3634 = vperm.slane %v3628, %v3633
        %v3636 = vunpack.c.l.s4 1983009808
        %v3637 = vunpack.c.0.s8 %v3636
        %v3638 = vperm.slane %v3630, %v3637
        %v3639 = vrot.slane %v3610, 4
        %v3640 = vsel %vm791, %v3639, %v3598
        %v3641 = vrot.slane %v3598, 4
        %v3642 = vsel %vm791, %v3610, %v3641
        %v3644 = vunpack.c.l.s4 1934713408
        %v3645 = vunpack.c.0.s8 %v3644
        %v3646 = vperm.slane %v3640, %v3645
        %v3648 = vunpack.c.l.s4 1934713408
        %v3649 = vunpack.c.0.s8 %v3648
        %v3650 = vperm.slane %v3642, %v3649
        %v3651 = vrot.slane %v3614, 4
        %v3652 = vsel %vm791, %v3651, %v3602
        %v3653 = vrot.slane %v3602, 4
        %v3654 = vsel %vm791, %v3614, %v3653
        %v3656 = vunpack.c.l.s4 1934713408
        %v3657 = vunpack.c.0.s8 %v3656
        %v3658 = vperm.slane %v3652, %v3657
        %v3660 = vunpack.c.l.s4 1934713408
        %v3661 = vunpack.c.0.s8 %v3660
        %v3662 = vperm.slane %v3654, %v3661
        %v3663 = vrot.slane %v3634, 4
        %v3664 = vsel %vm791, %v3663, %v3622
        %v3665 = vrot.slane %v3622, 4
        %v3666 = vsel %vm791, %v3634, %v3665
        %v3668 = vunpack.c.l.s4 1934713408
        %v3669 = vunpack.c.0.s8 %v3668
        %v3670 = vperm.slane %v3664, %v3669
        %v3672 = vunpack.c.l.s4 1934713408
        %v3673 = vunpack.c.0.s8 %v3672
        %v3674 = vperm.slane %v3666, %v3673
        %v3675 = vrot.slane %v3638, 4
        %v3676 = vsel %vm791, %v3675, %v3626
        %v3677 = vrot.slane %v3626, 4
        %v3678 = vsel %vm791, %v3638, %v3677
        %v3680 = vunpack.c.l.s4 1934713408
        %v3681 = vunpack.c.0.s8 %v3680
        %v3682 = vperm.slane %v3676, %v3681
        %v3684 = vunpack.c.l.s4 1934713408
        %v3685 = vunpack.c.0.s8 %v3684
        %v3686 = vperm.slane %v3678, %v3685
        %v3687 = vrot.slane %v3670, 4
        %v3688 = vsel %vm791, %v3687, %v3646
        %v3689 = vrot.slane %v3646, 4
        %v3690 = vsel %vm791, %v3670, %v3689
        %v3691 = vrot.slane %v3674, 4
        %v3692 = vsel %vm791, %v3691, %v3650
        %v3693 = vrot.slane %v3650, 4
        %v3694 = vsel %vm791, %v3674, %v3693
        %v3695 = vrot.slane %v3682, 4
        %v3696 = vsel %vm791, %v3695, %v3658
        %v3697 = vrot.slane %v3658, 4
        %v3698 = vsel %vm791, %v3682, %v3697
        %v3699 = vrot.slane %v3686, 4
        %v3700 = vsel %vm791, %v3699, %v3662
        %v3701 = vrot.slane %v3662, 4
        %v3702 = vsel %vm791, %v3686, %v3701
        %v3703 = vrot.slane %v2012, 4
        %v3704 = vsel %vm791, %v3703, %v2008
        %v3705 = vrot.slane %v2008, 4
        %v3706 = vsel %vm791, %v2012, %v3705
        %v3708 = vunpack.c.l.s4 1983009808
        %v3709 = vunpack.c.0.s8 %v3708
        %v3710 = vperm.slane %v3704, %v3709
        %v3712 = vunpack.c.l.s4 1983009808
        %v3713 = vunpack.c.0.s8 %v3712
        %v3714 = vperm.slane %v3706, %v3713
        %v3715 = vrot.slane %v2014, 4
        %v3716 = vsel %vm791, %v3715, %v2010
        %v3717 = vrot.slane %v2010, 4
        %v3718 = vsel %vm791, %v2014, %v3717
        %v3720 = vunpack.c.l.s4 1983009808
        %v3721 = vunpack.c.0.s8 %v3720
        %v3722 = vperm.slane %v3716, %v3721
        %v3724 = vunpack.c.l.s4 1983009808
        %v3725 = vunpack.c.0.s8 %v3724
        %v3726 = vperm.slane %v3718, %v3725
        %v3727 = vrot.slane %v2020, 4
        %v3728 = vsel %vm791, %v3727, %v2016
        %v3729 = vrot.slane %v2016, 4
        %v3730 = vsel %vm791, %v2020, %v3729
        %v3732 = vunpack.c.l.s4 1983009808
        %v3733 = vunpack.c.0.s8 %v3732
        %v3734 = vperm.slane %v3728, %v3733
        %v3736 = vunpack.c.l.s4 1983009808
        %v3737 = vunpack.c.0.s8 %v3736
        %v3738 = vperm.slane %v3730, %v3737
        %v3739 = vrot.slane %v2022, 4
        %v3740 = vsel %vm791, %v3739, %v2018
        %v3741 = vrot.slane %v2018, 4
        %v3742 = vsel %vm791, %v2022, %v3741
        %v3744 = vunpack.c.l.s4 1983009808
        %v3745 = vunpack.c.0.s8 %v3744
        %v3746 = vperm.slane %v3740, %v3745
        %v3748 = vunpack.c.l.s4 1983009808
        %v3749 = vunpack.c.0.s8 %v3748
        %v3750 = vperm.slane %v3742, %v3749
        %v3751 = vrot.slane %v3722, 4
        %v3752 = vsel %vm791, %v3751, %v3710
        %v3753 = vrot.slane %v3710, 4
        %v3754 = vsel %vm791, %v3722, %v3753
        %v3756 = vunpack.c.l.s4 1934713408
        %v3757 = vunpack.c.0.s8 %v3756
        %v3758 = vperm.slane %v3752, %v3757
        %v3760 = vunpack.c.l.s4 1934713408
        %v3761 = vunpack.c.0.s8 %v3760
        %v3762 = vperm.slane %v3754, %v3761
        %v3763 = vrot.slane %v3726, 4
        %v3764 = vsel %vm791, %v3763, %v3714
        %v3765 = vrot.slane %v3714, 4
        %v3766 = vsel %vm791, %v3726, %v3765
        %v3768 = vunpack.c.l.s4 1934713408
        %v3769 = vunpack.c.0.s8 %v3768
        %v3770 = vperm.slane %v3764, %v3769
        %v3772 = vunpack.c.l.s4 1934713408
        %v3773 = vunpack.c.0.s8 %v3772
        %v3774 = vperm.slane %v3766, %v3773
        %v3775 = vrot.slane %v3746, 4
        %v3776 = vsel %vm791, %v3775, %v3734
        %v3777 = vrot.slane %v3734, 4
        %v3778 = vsel %vm791, %v3746, %v3777
        %v3780 = vunpack.c.l.s4 1934713408
        %v3781 = vunpack.c.0.s8 %v3780
        %v3782 = vperm.slane %v3776, %v3781
        %v3784 = vunpack.c.l.s4 1934713408
        %v3785 = vunpack.c.0.s8 %v3784
        %v3786 = vperm.slane %v3778, %v3785
        %v3787 = vrot.slane %v3750, 4
        %v3788 = vsel %vm791, %v3787, %v3738
        %v3789 = vrot.slane %v3738, 4
        %v3790 = vsel %vm791, %v3750, %v3789
        %v3792 = vunpack.c.l.s4 1934713408
        %v3793 = vunpack.c.0.s8 %v3792
        %v3794 = vperm.slane %v3788, %v3793
        %v3796 = vunpack.c.l.s4 1934713408
        %v3797 = vunpack.c.0.s8 %v3796
        %v3798 = vperm.slane %v3790, %v3797
        %v3799 = vrot.slane %v3782, 4
        %v3800 = vsel %vm791, %v3799, %v3758
        %v3801 = vrot.slane %v3758, 4
        %v3802 = vsel %vm791, %v3782, %v3801
        %v3803 = vrot.slane %v3786, 4
        %v3804 = vsel %vm791, %v3803, %v3762
        %v3805 = vrot.slane %v3762, 4
        %v3806 = vsel %vm791, %v3786, %v3805
        %v3807 = vrot.slane %v3794, 4
        %v3808 = vsel %vm791, %v3807, %v3770
        %v3809 = vrot.slane %v3770, 4
        %v3810 = vsel %vm791, %v3794, %v3809
        %v3811 = vrot.slane %v3798, 4
        %v3812 = vsel %vm791, %v3811, %v3774
        %v3813 = vrot.slane %v3774, 4
        %v3814 = vsel %vm791, %v3798, %v3813
        %v3815 = vrot.slane %v2124, 4
        %v3816 = vsel %vm791, %v3815, %v2120
        %v3817 = vrot.slane %v2120, 4
        %v3818 = vsel %vm791, %v2124, %v3817
        %v3820 = vunpack.c.l.s4 1983009808
        %v3821 = vunpack.c.0.s8 %v3820
        %v3822 = vperm.slane %v3816, %v3821
        %v3824 = vunpack.c.l.s4 1983009808
        %v3825 = vunpack.c.0.s8 %v3824
        %v3826 = vperm.slane %v3818, %v3825
        %v3827 = vrot.slane %v2126, 4
        %v3828 = vsel %vm791, %v3827, %v2122
        %v3829 = vrot.slane %v2122, 4
        %v3830 = vsel %vm791, %v2126, %v3829
        %v3832 = vunpack.c.l.s4 1983009808
        %v3833 = vunpack.c.0.s8 %v3832
        %v3834 = vperm.slane %v3828, %v3833
        %v3836 = vunpack.c.l.s4 1983009808
        %v3837 = vunpack.c.0.s8 %v3836
        %v3838 = vperm.slane %v3830, %v3837
        %v3839 = vrot.slane %v2132, 4
        %v3840 = vsel %vm791, %v3839, %v2128
        %v3841 = vrot.slane %v2128, 4
        %v3842 = vsel %vm791, %v2132, %v3841
        %v3844 = vunpack.c.l.s4 1983009808
        %v3845 = vunpack.c.0.s8 %v3844
        %v3846 = vperm.slane %v3840, %v3845
        %v3848 = vunpack.c.l.s4 1983009808
        %v3849 = vunpack.c.0.s8 %v3848
        %v3850 = vperm.slane %v3842, %v3849
        %v3851 = vrot.slane %v2134, 4
        %v3852 = vsel %vm791, %v3851, %v2130
        %v3853 = vrot.slane %v2130, 4
        %v3854 = vsel %vm791, %v2134, %v3853
        %v3856 = vunpack.c.l.s4 1983009808
        %v3857 = vunpack.c.0.s8 %v3856
        %v3858 = vperm.slane %v3852, %v3857
        %v3860 = vunpack.c.l.s4 1983009808
        %v3861 = vunpack.c.0.s8 %v3860
        %v3862 = vperm.slane %v3854, %v3861
        %v3863 = vrot.slane %v3834, 4
        %v3864 = vsel %vm791, %v3863, %v3822
        %v3865 = vrot.slane %v3822, 4
        %v3866 = vsel %vm791, %v3834, %v3865
        %v3868 = vunpack.c.l.s4 1934713408
        %v3869 = vunpack.c.0.s8 %v3868
        %v3870 = vperm.slane %v3864, %v3869
        %v3872 = vunpack.c.l.s4 1934713408
        %v3873 = vunpack.c.0.s8 %v3872
        %v3874 = vperm.slane %v3866, %v3873
        %v3875 = vrot.slane %v3838, 4
        %v3876 = vsel %vm791, %v3875, %v3826
        %v3877 = vrot.slane %v3826, 4
        %v3878 = vsel %vm791, %v3838, %v3877
        %v3880 = vunpack.c.l.s4 1934713408
        %v3881 = vunpack.c.0.s8 %v3880
        %v3882 = vperm.slane %v3876, %v3881
        %v3884 = vunpack.c.l.s4 1934713408
        %v3885 = vunpack.c.0.s8 %v3884
        %v3886 = vperm.slane %v3878, %v3885
        %v3887 = vrot.slane %v3858, 4
        %v3888 = vsel %vm791, %v3887, %v3846
        %v3889 = vrot.slane %v3846, 4
        %v3890 = vsel %vm791, %v3858, %v3889
        %v3892 = vunpack.c.l.s4 1934713408
        %v3893 = vunpack.c.0.s8 %v3892
        %v3894 = vperm.slane %v3888, %v3893
        %v3896 = vunpack.c.l.s4 1934713408
        %v3897 = vunpack.c.0.s8 %v3896
        %v3898 = vperm.slane %v3890, %v3897
        %v3899 = vrot.slane %v3862, 4
        %v3900 = vsel %vm791, %v3899, %v3850
        %v3901 = vrot.slane %v3850, 4
        %v3902 = vsel %vm791, %v3862, %v3901
        %v3904 = vunpack.c.l.s4 1934713408
        %v3905 = vunpack.c.0.s8 %v3904
        %v3906 = vperm.slane %v3900, %v3905
        %v3908 = vunpack.c.l.s4 1934713408
        %v3909 = vunpack.c.0.s8 %v3908
        %v3910 = vperm.slane %v3902, %v3909
        %v3911 = vrot.slane %v3894, 4
        %v3912 = vsel %vm791, %v3911, %v3870
        %v3913 = vrot.slane %v3870, 4
        %v3914 = vsel %vm791, %v3894, %v3913
        %v3915 = vrot.slane %v3898, 4
        %v3916 = vsel %vm791, %v3915, %v3874
        %v3917 = vrot.slane %v3874, 4
        %v3918 = vsel %vm791, %v3898, %v3917
        %v3919 = vrot.slane %v3906, 4
        %v3920 = vsel %vm791, %v3919, %v3882
        %v3921 = vrot.slane %v3882, 4
        %v3922 = vsel %vm791, %v3906, %v3921
        %v3923 = vrot.slane %v3910, 4
        %v3924 = vsel %vm791, %v3923, %v3886
        %v3925 = vrot.slane %v3886, 4
        %v3926 = vsel %vm791, %v3910, %v3925
        %v3927 = vrot.slane %v2236, 4
        %v3928 = vsel %vm791, %v3927, %v2232
        %v3929 = vrot.slane %v2232, 4
        %v3930 = vsel %vm791, %v2236, %v3929
        %v3932 = vunpack.c.l.s4 1983009808
        %v3933 = vunpack.c.0.s8 %v3932
        %v3934 = vperm.slane %v3928, %v3933
        %v3936 = vunpack.c.l.s4 1983009808
        %v3937 = vunpack.c.0.s8 %v3936
        %v3938 = vperm.slane %v3930, %v3937
        %v3939 = vrot.slane %v2238, 4
        %v3940 = vsel %vm791, %v3939, %v2234
        %v3941 = vrot.slane %v2234, 4
        %v3942 = vsel %vm791, %v2238, %v3941
        %v3944 = vunpack.c.l.s4 1983009808
        %v3945 = vunpack.c.0.s8 %v3944
        %v3946 = vperm.slane %v3940, %v3945
        %v3948 = vunpack.c.l.s4 1983009808
        %v3949 = vunpack.c.0.s8 %v3948
        %v3950 = vperm.slane %v3942, %v3949
        %v3951 = vrot.slane %v2244, 4
        %v3952 = vsel %vm791, %v3951, %v2240
        %v3953 = vrot.slane %v2240, 4
        %v3954 = vsel %vm791, %v2244, %v3953
        %v3956 = vunpack.c.l.s4 1983009808
        %v3957 = vunpack.c.0.s8 %v3956
        %v3958 = vperm.slane %v3952, %v3957
        %v3960 = vunpack.c.l.s4 1983009808
        %v3961 = vunpack.c.0.s8 %v3960
        %v3962 = vperm.slane %v3954, %v3961
        %v3963 = vrot.slane %v2246, 4
        %v3964 = vsel %vm791, %v3963, %v2242
        %v3965 = vrot.slane %v2242, 4
        %v3966 = vsel %vm791, %v2246, %v3965
        %v3968 = vunpack.c.l.s4 1983009808
        %v3969 = vunpack.c.0.s8 %v3968
        %v3970 = vperm.slane %v3964, %v3969
        %v3972 = vunpack.c.l.s4 1983009808
        %v3973 = vunpack.c.0.s8 %v3972
        %v3974 = vperm.slane %v3966, %v3973
        %v3975 = vrot.slane %v3946, 4
        %v3976 = vsel %vm791, %v3975, %v3934
        %v3977 = vrot.slane %v3934, 4
        %v3978 = vsel %vm791, %v3946, %v3977
        %v3980 = vunpack.c.l.s4 1934713408
        %v3981 = vunpack.c.0.s8 %v3980
        %v3982 = vperm.slane %v3976, %v3981
        %v3984 = vunpack.c.l.s4 1934713408
        %v3985 = vunpack.c.0.s8 %v3984
        %v3986 = vperm.slane %v3978, %v3985
        %v3987 = vrot.slane %v3950, 4
        %v3988 = vsel %vm791, %v3987, %v3938
        %v3989 = vrot.slane %v3938, 4
        %v3990 = vsel %vm791, %v3950, %v3989
        %v3992 = vunpack.c.l.s4 1934713408
        %v3993 = vunpack.c.0.s8 %v3992
        %v3994 = vperm.slane %v3988, %v3993
        %v3996 = vunpack.c.l.s4 1934713408
        %v3997 = vunpack.c.0.s8 %v3996
        %v3998 = vperm.slane %v3990, %v3997
        %v3999 = vrot.slane %v3970, 4
        %v4000 = vsel %vm791, %v3999, %v3958
        %v4001 = vrot.slane %v3958, 4
        %v4002 = vsel %vm791, %v3970, %v4001
        %v4004 = vunpack.c.l.s4 1934713408
        %v4005 = vunpack.c.0.s8 %v4004
        %v4006 = vperm.slane %v4000, %v4005
        %v4008 = vunpack.c.l.s4 1934713408
        %v4009 = vunpack.c.0.s8 %v4008
        %v4010 = vperm.slane %v4002, %v4009
        %v4011 = vrot.slane %v3974, 4
        %v4012 = vsel %vm791, %v4011, %v3962
        %v4013 = vrot.slane %v3962, 4
        %v4014 = vsel %vm791, %v3974, %v4013
        %v4016 = vunpack.c.l.s4 1934713408
        %v4017 = vunpack.c.0.s8 %v4016
        %v4018 = vperm.slane %v4012, %v4017
        %v4020 = vunpack.c.l.s4 1934713408
        %v4021 = vunpack.c.0.s8 %v4020
        %v4022 = vperm.slane %v4014, %v4021
        %v4023 = vrot.slane %v4006, 4
        %v4024 = vsel %vm791, %v4023, %v3982
        %v4025 = vrot.slane %v3982, 4
        %v4026 = vsel %vm791, %v4006, %v4025
        %v4027 = vrot.slane %v4010, 4
        %v4028 = vsel %vm791, %v4027, %v3986
        %v4029 = vrot.slane %v3986, 4
        %v4030 = vsel %vm791, %v4010, %v4029
        %v4031 = vrot.slane %v4018, 4
        %v4032 = vsel %vm791, %v4031, %v3994
        %v4033 = vrot.slane %v3994, 4
        %v4034 = vsel %vm791, %v4018, %v4033
        %v4035 = vrot.slane %v4022, 4
        %v4036 = vsel %vm791, %v4035, %v3998
        %v4037 = vrot.slane %v3998, 4
        %v4038 = vsel %vm791, %v4022, %v4037
        %v4039 = vrot.slane %v2348, 4
        %v4040 = vsel %vm791, %v4039, %v2344
        %v4041 = vrot.slane %v2344, 4
        %v4042 = vsel %vm791, %v2348, %v4041
        %v4044 = vunpack.c.l.s4 1983009808
        %v4045 = vunpack.c.0.s8 %v4044
        %v4046 = vperm.slane %v4040, %v4045
        %v4048 = vunpack.c.l.s4 1983009808
        %v4049 = vunpack.c.0.s8 %v4048
        %v4050 = vperm.slane %v4042, %v4049
        %v4051 = vrot.slane %v2350, 4
        %v4052 = vsel %vm791, %v4051, %v2346
        %v4053 = vrot.slane %v2346, 4
        %v4054 = vsel %vm791, %v2350, %v4053
        %v4056 = vunpack.c.l.s4 1983009808
        %v4057 = vunpack.c.0.s8 %v4056
        %v4058 = vperm.slane %v4052, %v4057
        %v4060 = vunpack.c.l.s4 1983009808
        %v4061 = vunpack.c.0.s8 %v4060
        %v4062 = vperm.slane %v4054, %v4061
        %v4063 = vrot.slane %v2356, 4
        %v4064 = vsel %vm791, %v4063, %v2352
        %v4065 = vrot.slane %v2352, 4
        %v4066 = vsel %vm791, %v2356, %v4065
        %v4068 = vunpack.c.l.s4 1983009808
        %v4069 = vunpack.c.0.s8 %v4068
        %v4070 = vperm.slane %v4064, %v4069
        %v4072 = vunpack.c.l.s4 1983009808
        %v4073 = vunpack.c.0.s8 %v4072
        %v4074 = vperm.slane %v4066, %v4073
        %v4075 = vrot.slane %v2358, 4
        %v4076 = vsel %vm791, %v4075, %v2354
        %v4077 = vrot.slane %v2354, 4
        %v4078 = vsel %vm791, %v2358, %v4077
        %v4080 = vunpack.c.l.s4 1983009808
        %v4081 = vunpack.c.0.s8 %v4080
        %v4082 = vperm.slane %v4076, %v4081
        %v4084 = vunpack.c.l.s4 1983009808
        %v4085 = vunpack.c.0.s8 %v4084
        %v4086 = vperm.slane %v4078, %v4085
        %v4087 = vrot.slane %v4058, 4
        %v4088 = vsel %vm791, %v4087, %v4046
        %v4089 = vrot.slane %v4046, 4
        %v4090 = vsel %vm791, %v4058, %v4089
        %v4092 = vunpack.c.l.s4 1934713408
        %v4093 = vunpack.c.0.s8 %v4092
        %v4094 = vperm.slane %v4088, %v4093
        %v4096 = vunpack.c.l.s4 1934713408
        %v4097 = vunpack.c.0.s8 %v4096
        %v4098 = vperm.slane %v4090, %v4097
        %v4099 = vrot.slane %v4062, 4
        %v4100 = vsel %vm791, %v4099, %v4050
        %v4101 = vrot.slane %v4050, 4
        %v4102 = vsel %vm791, %v4062, %v4101
        %v4104 = vunpack.c.l.s4 1934713408
        %v4105 = vunpack.c.0.s8 %v4104
        %v4106 = vperm.slane %v4100, %v4105
        %v4108 = vunpack.c.l.s4 1934713408
        %v4109 = vunpack.c.0.s8 %v4108
        %v4110 = vperm.slane %v4102, %v4109
        %v4111 = vrot.slane %v4082, 4
        %v4112 = vsel %vm791, %v4111, %v4070
        %v4113 = vrot.slane %v4070, 4
        %v4114 = vsel %vm791, %v4082, %v4113
        %v4116 = vunpack.c.l.s4 1934713408
        %v4117 = vunpack.c.0.s8 %v4116
        %v4118 = vperm.slane %v4112, %v4117
        %v4120 = vunpack.c.l.s4 1934713408
        %v4121 = vunpack.c.0.s8 %v4120
        %v4122 = vperm.slane %v4114, %v4121
        %v4123 = vrot.slane %v4086, 4
        %v4124 = vsel %vm791, %v4123, %v4074
        %v4125 = vrot.slane %v4074, 4
        %v4126 = vsel %vm791, %v4086, %v4125
        %v4128 = vunpack.c.l.s4 1934713408
        %v4129 = vunpack.c.0.s8 %v4128
        %v4130 = vperm.slane %v4124, %v4129
        %v4132 = vunpack.c.l.s4 1934713408
        %v4133 = vunpack.c.0.s8 %v4132
        %v4134 = vperm.slane %v4126, %v4133
        %v4135 = vrot.slane %v4118, 4
        %v4136 = vsel %vm791, %v4135, %v4094
        %v4137 = vrot.slane %v4094, 4
        %v4138 = vsel %vm791, %v4118, %v4137
        %v4139 = vrot.slane %v4122, 4
        %v4140 = vsel %vm791, %v4139, %v4098
        %v4141 = vrot.slane %v4098, 4
        %v4142 = vsel %vm791, %v4122, %v4141
        %v4143 = vrot.slane %v4130, 4
        %v4144 = vsel %vm791, %v4143, %v4106
        %v4145 = vrot.slane %v4106, 4
        %v4146 = vsel %vm791, %v4130, %v4145
        %v4147 = vrot.slane %v4134, 4
        %v4148 = vsel %vm791, %v4147, %v4110
        %v4149 = vrot.slane %v4110, 4
        %v4150 = vsel %vm791, %v4134, %v4149
        %v4151 = vrot.slane %v2460, 4
        %v4152 = vsel %vm791, %v4151, %v2456
        %v4153 = vrot.slane %v2456, 4
        %v4154 = vsel %vm791, %v2460, %v4153
        %v4156 = vunpack.c.l.s4 1983009808
        %v4157 = vunpack.c.0.s8 %v4156
        %v4158 = vperm.slane %v4152, %v4157
        %v4160 = vunpack.c.l.s4 1983009808
        %v4161 = vunpack.c.0.s8 %v4160
        %v4162 = vperm.slane %v4154, %v4161
        %v4163 = vrot.slane %v2462, 4
        %v4164 = vsel %vm791, %v4163, %v2458
        %v4165 = vrot.slane %v2458, 4
        %v4166 = vsel %vm791, %v2462, %v4165
        %v4168 = vunpack.c.l.s4 1983009808
        %v4169 = vunpack.c.0.s8 %v4168
        %v4170 = vperm.slane %v4164, %v4169
        %v4172 = vunpack.c.l.s4 1983009808
        %v4173 = vunpack.c.0.s8 %v4172
        %v4174 = vperm.slane %v4166, %v4173
        %v4175 = vrot.slane %v2468, 4
        %v4176 = vsel %vm791, %v4175, %v2464
        %v4177 = vrot.slane %v2464, 4
        %v4178 = vsel %vm791, %v2468, %v4177
        %v4180 = vunpack.c.l.s4 1983009808
        %v4181 = vunpack.c.0.s8 %v4180
        %v4182 = vperm.slane %v4176, %v4181
        %v4184 = vunpack.c.l.s4 1983009808
        %v4185 = vunpack.c.0.s8 %v4184
        %v4186 = vperm.slane %v4178, %v4185
        %v4187 = vrot.slane %v2470, 4
        %v4188 = vsel %vm791, %v4187, %v2466
        %v4189 = vrot.slane %v2466, 4
        %v4190 = vsel %vm791, %v2470, %v4189
        %v4192 = vunpack.c.l.s4 1983009808
        %v4193 = vunpack.c.0.s8 %v4192
        %v4194 = vperm.slane %v4188, %v4193
        %v4196 = vunpack.c.l.s4 1983009808
        %v4197 = vunpack.c.0.s8 %v4196
        %v4198 = vperm.slane %v4190, %v4197
        %v4199 = vrot.slane %v4170, 4
        %v4200 = vsel %vm791, %v4199, %v4158
        %v4201 = vrot.slane %v4158, 4
        %v4202 = vsel %vm791, %v4170, %v4201
        %v4204 = vunpack.c.l.s4 1934713408
        %v4205 = vunpack.c.0.s8 %v4204
        %v4206 = vperm.slane %v4200, %v4205
        %v4208 = vunpack.c.l.s4 1934713408
        %v4209 = vunpack.c.0.s8 %v4208
        %v4210 = vperm.slane %v4202, %v4209
        %v4211 = vrot.slane %v4174, 4
        %v4212 = vsel %vm791, %v4211, %v4162
        %v4213 = vrot.slane %v4162, 4
        %v4214 = vsel %vm791, %v4174, %v4213
        %v4216 = vunpack.c.l.s4 1934713408
        %v4217 = vunpack.c.0.s8 %v4216
        %v4218 = vperm.slane %v4212, %v4217
        %v4220 = vunpack.c.l.s4 1934713408
        %v4221 = vunpack.c.0.s8 %v4220
        %v4222 = vperm.slane %v4214, %v4221
        %v4223 = vrot.slane %v4194, 4
        %v4224 = vsel %vm791, %v4223, %v4182
        %v4225 = vrot.slane %v4182, 4
        %v4226 = vsel %vm791, %v4194, %v4225
        %v4228 = vunpack.c.l.s4 1934713408
        %v4229 = vunpack.c.0.s8 %v4228
        %v4230 = vperm.slane %v4224, %v4229
        %v4232 = vunpack.c.l.s4 1934713408
        %v4233 = vunpack.c.0.s8 %v4232
        %v4234 = vperm.slane %v4226, %v4233
        %v4235 = vrot.slane %v4198, 4
        %v4236 = vsel %vm791, %v4235, %v4186
        %v4237 = vrot.slane %v4186, 4
        %v4238 = vsel %vm791, %v4198, %v4237
        %v4240 = vunpack.c.l.s4 1934713408
        %v4241 = vunpack.c.0.s8 %v4240
        %v4242 = vperm.slane %v4236, %v4241
        %v4244 = vunpack.c.l.s4 1934713408
        %v4245 = vunpack.c.0.s8 %v4244
        %v4246 = vperm.slane %v4238, %v4245
        %v4247 = vrot.slane %v4230, 4
        %v4248 = vsel %vm791, %v4247, %v4206
        %v4249 = vrot.slane %v4206, 4
        %v4250 = vsel %vm791, %v4230, %v4249
        %v4251 = vrot.slane %v4234, 4
        %v4252 = vsel %vm791, %v4251, %v4210
        %v4253 = vrot.slane %v4210, 4
        %v4254 = vsel %vm791, %v4234, %v4253
        %v4255 = vrot.slane %v4242, 4
        %v4256 = vsel %vm791, %v4255, %v4218
        %v4257 = vrot.slane %v4218, 4
        %v4258 = vsel %vm791, %v4242, %v4257
        %v4259 = vrot.slane %v4246, 4
        %v4260 = vsel %vm791, %v4259, %v4222
        %v4261 = vrot.slane %v4222, 4
        %v4262 = vsel %vm791, %v4246, %v4261
        %v4263 = vrot.slane %v2572, 4
        %v4264 = vsel %vm791, %v4263, %v2568
        %v4265 = vrot.slane %v2568, 4
        %v4266 = vsel %vm791, %v2572, %v4265
        %v4268 = vunpack.c.l.s4 1983009808
        %v4269 = vunpack.c.0.s8 %v4268
        %v4270 = vperm.slane %v4264, %v4269
        %v4272 = vunpack.c.l.s4 1983009808
        %v4273 = vunpack.c.0.s8 %v4272
        %v4274 = vperm.slane %v4266, %v4273
        %v4275 = vrot.slane %v2574, 4
        %v4276 = vsel %vm791, %v4275, %v2570
        %v4277 = vrot.slane %v2570, 4
        %v4278 = vsel %vm791, %v2574, %v4277
        %v4280 = vunpack.c.l.s4 1983009808
        %v4281 = vunpack.c.0.s8 %v4280
        %v4282 = vperm.slane %v4276, %v4281
        %v4284 = vunpack.c.l.s4 1983009808
        %v4285 = vunpack.c.0.s8 %v4284
        %v4286 = vperm.slane %v4278, %v4285
        %v4287 = vrot.slane %v2580, 4
        %v4288 = vsel %vm791, %v4287, %v2576
        %v4289 = vrot.slane %v2576, 4
        %v4290 = vsel %vm791, %v2580, %v4289
        %v4292 = vunpack.c.l.s4 1983009808
        %v4293 = vunpack.c.0.s8 %v4292
        %v4294 = vperm.slane %v4288, %v4293
        %v4296 = vunpack.c.l.s4 1983009808
        %v4297 = vunpack.c.0.s8 %v4296
        %v4298 = vperm.slane %v4290, %v4297
        %v4299 = vrot.slane %v2582, 4
        %v4300 = vsel %vm791, %v4299, %v2578
        %v4301 = vrot.slane %v2578, 4
        %v4302 = vsel %vm791, %v2582, %v4301
        %v4304 = vunpack.c.l.s4 1983009808
        %v4305 = vunpack.c.0.s8 %v4304
        %v4306 = vperm.slane %v4300, %v4305
        %v4308 = vunpack.c.l.s4 1983009808
        %v4309 = vunpack.c.0.s8 %v4308
        %v4310 = vperm.slane %v4302, %v4309
        %v4311 = vrot.slane %v4282, 4
        %v4312 = vsel %vm791, %v4311, %v4270
        %v4313 = vrot.slane %v4270, 4
        %v4314 = vsel %vm791, %v4282, %v4313
        %v4316 = vunpack.c.l.s4 1934713408
        %v4317 = vunpack.c.0.s8 %v4316
        %v4318 = vperm.slane %v4312, %v4317
        %v4320 = vunpack.c.l.s4 1934713408
        %v4321 = vunpack.c.0.s8 %v4320
        %v4322 = vperm.slane %v4314, %v4321
        %v4323 = vrot.slane %v4286, 4
        %v4324 = vsel %vm791, %v4323, %v4274
        %v4325 = vrot.slane %v4274, 4
        %v4326 = vsel %vm791, %v4286, %v4325
        %v4328 = vunpack.c.l.s4 1934713408
        %v4329 = vunpack.c.0.s8 %v4328
        %v4330 = vperm.slane %v4324, %v4329
        %v4332 = vunpack.c.l.s4 1934713408
        %v4333 = vunpack.c.0.s8 %v4332
        %v4334 = vperm.slane %v4326, %v4333
        %v4335 = vrot.slane %v4306, 4
        %v4336 = vsel %vm791, %v4335, %v4294
        %v4337 = vrot.slane %v4294, 4
        %v4338 = vsel %vm791, %v4306, %v4337
        %v4340 = vunpack.c.l.s4 1934713408
        %v4341 = vunpack.c.0.s8 %v4340
        %v4342 = vperm.slane %v4336, %v4341
        %v4344 = vunpack.c.l.s4 1934713408
        %v4345 = vunpack.c.0.s8 %v4344
        %v4346 = vperm.slane %v4338, %v4345
        %v4347 = vrot.slane %v4310, 4
        %v4348 = vsel %vm791, %v4347, %v4298
        %v4349 = vrot.slane %v4298, 4
        %v4350 = vsel %vm791, %v4310, %v4349
        %v4352 = vunpack.c.l.s4 1934713408
        %v4353 = vunpack.c.0.s8 %v4352
        %v4354 = vperm.slane %v4348, %v4353
        %v4356 = vunpack.c.l.s4 1934713408
        %v4357 = vunpack.c.0.s8 %v4356
        %v4358 = vperm.slane %v4350, %v4357
        %v4359 = vrot.slane %v4342, 4
        %v4360 = vsel %vm791, %v4359, %v4318
        %v4361 = vrot.slane %v4318, 4
        %v4362 = vsel %vm791, %v4342, %v4361
        %v4363 = vrot.slane %v4346, 4
        %v4364 = vsel %vm791, %v4363, %v4322
        %v4365 = vrot.slane %v4322, 4
        %v4366 = vsel %vm791, %v4346, %v4365
        %v4367 = vrot.slane %v4354, 4
        %v4368 = vsel %vm791, %v4367, %v4330
        %v4369 = vrot.slane %v4330, 4
        %v4370 = vsel %vm791, %v4354, %v4369
        %v4371 = vrot.slane %v4358, 4
        %v4372 = vsel %vm791, %v4371, %v4334
        %v4373 = vrot.slane %v4334, 4
        %v4374 = vsel %vm791, %v4358, %v4373
        %v4375 = vrot.slane %v2684, 4
        %v4376 = vsel %vm791, %v4375, %v2680
        %v4377 = vrot.slane %v2680, 4
        %v4378 = vsel %vm791, %v2684, %v4377
        %v4380 = vunpack.c.l.s4 1983009808
        %v4381 = vunpack.c.0.s8 %v4380
        %v4382 = vperm.slane %v4376, %v4381
        %v4384 = vunpack.c.l.s4 1983009808
        %v4385 = vunpack.c.0.s8 %v4384
        %v4386 = vperm.slane %v4378, %v4385
        %v4387 = vrot.slane %v2686, 4
        %v4388 = vsel %vm791, %v4387, %v2682
        %v4389 = vrot.slane %v2682, 4
        %v4390 = vsel %vm791, %v2686, %v4389
        %v4392 = vunpack.c.l.s4 1983009808
        %v4393 = vunpack.c.0.s8 %v4392
        %v4394 = vperm.slane %v4388, %v4393
        %v4396 = vunpack.c.l.s4 1983009808
        %v4397 = vunpack.c.0.s8 %v4396
        %v4398 = vperm.slane %v4390, %v4397
        %v4399 = vrot.slane %v2692, 4
        %v4400 = vsel %vm791, %v4399, %v2688
        %v4401 = vrot.slane %v2688, 4
        %v4402 = vsel %vm791, %v2692, %v4401
        %v4404 = vunpack.c.l.s4 1983009808
        %v4405 = vunpack.c.0.s8 %v4404
        %v4406 = vperm.slane %v4400, %v4405
        %v4408 = vunpack.c.l.s4 1983009808
        %v4409 = vunpack.c.0.s8 %v4408
        %v4410 = vperm.slane %v4402, %v4409
        %v4411 = vrot.slane %v2694, 4
        %v4412 = vsel %vm791, %v4411, %v2690
        %v4413 = vrot.slane %v2690, 4
        %v4414 = vsel %vm791, %v2694, %v4413
        %v4416 = vunpack.c.l.s4 1983009808
        %v4417 = vunpack.c.0.s8 %v4416
        %v4418 = vperm.slane %v4412, %v4417
        %v4420 = vunpack.c.l.s4 1983009808
        %v4421 = vunpack.c.0.s8 %v4420
        %v4422 = vperm.slane %v4414, %v4421
        %v4423 = vrot.slane %v4394, 4
        %v4424 = vsel %vm791, %v4423, %v4382
        %v4425 = vrot.slane %v4382, 4
        %v4426 = vsel %vm791, %v4394, %v4425
        %v4428 = vunpack.c.l.s4 1934713408
        %v4429 = vunpack.c.0.s8 %v4428
        %v4430 = vperm.slane %v4424, %v4429
        %v4432 = vunpack.c.l.s4 1934713408
        %v4433 = vunpack.c.0.s8 %v4432
        %v4434 = vperm.slane %v4426, %v4433
        %v4435 = vrot.slane %v4398, 4
        %v4436 = vsel %vm791, %v4435, %v4386
        %v4437 = vrot.slane %v4386, 4
        %v4438 = vsel %vm791, %v4398, %v4437
        %v4440 = vunpack.c.l.s4 1934713408
        %v4441 = vunpack.c.0.s8 %v4440
        %v4442 = vperm.slane %v4436, %v4441
        %v4444 = vunpack.c.l.s4 1934713408
        %v4445 = vunpack.c.0.s8 %v4444
        %v4446 = vperm.slane %v4438, %v4445
        %v4447 = vrot.slane %v4418, 4
        %v4448 = vsel %vm791, %v4447, %v4406
        %v4449 = vrot.slane %v4406, 4
        %v4450 = vsel %vm791, %v4418, %v4449
        %v4452 = vunpack.c.l.s4 1934713408
        %v4453 = vunpack.c.0.s8 %v4452
        %v4454 = vperm.slane %v4448, %v4453
        %v4456 = vunpack.c.l.s4 1934713408
        %v4457 = vunpack.c.0.s8 %v4456
        %v4458 = vperm.slane %v4450, %v4457
        %v4459 = vrot.slane %v4422, 4
        %v4460 = vsel %vm791, %v4459, %v4410
        %v4461 = vrot.slane %v4410, 4
        %v4462 = vsel %vm791, %v4422, %v4461
        %v4464 = vunpack.c.l.s4 1934713408
        %v4465 = vunpack.c.0.s8 %v4464
        %v4466 = vperm.slane %v4460, %v4465
        %v4468 = vunpack.c.l.s4 1934713408
        %v4469 = vunpack.c.0.s8 %v4468
        %v4470 = vperm.slane %v4462, %v4469
        %v4471 = vrot.slane %v4454, 4
        %v4472 = vsel %vm791, %v4471, %v4430
        %v4473 = vrot.slane %v4430, 4
        %v4474 = vsel %vm791, %v4454, %v4473
        %v4475 = vrot.slane %v4458, 4
        %v4476 = vsel %vm791, %v4475, %v4434
        %v4477 = vrot.slane %v4434, 4
        %v4478 = vsel %vm791, %v4458, %v4477
        %v4479 = vrot.slane %v4466, 4
        %v4480 = vsel %vm791, %v4479, %v4442
        %v4481 = vrot.slane %v4442, 4
        %v4482 = vsel %vm791, %v4466, %v4481
        %v4483 = vrot.slane %v4470, 4
        %v4484 = vsel %vm791, %v4483, %v4446
        %v4485 = vrot.slane %v4446, 4
        %v4486 = vsel %vm791, %v4470, %v4485
        %v4487 = vrot.slane %v2796, 4
        %v4488 = vsel %vm791, %v4487, %v2792
        %v4489 = vrot.slane %v2792, 4
        %v4490 = vsel %vm791, %v2796, %v4489
        %v4492 = vunpack.c.l.s4 1983009808
        %v4493 = vunpack.c.0.s8 %v4492
        %v4494 = vperm.slane %v4488, %v4493
        %v4496 = vunpack.c.l.s4 1983009808
        %v4497 = vunpack.c.0.s8 %v4496
        %v4498 = vperm.slane %v4490, %v4497
        %v4499 = vrot.slane %v2798, 4
        %v4500 = vsel %vm791, %v4499, %v2794
        %v4501 = vrot.slane %v2794, 4
        %v4502 = vsel %vm791, %v2798, %v4501
        %v4504 = vunpack.c.l.s4 1983009808
        %v4505 = vunpack.c.0.s8 %v4504
        %v4506 = vperm.slane %v4500, %v4505
        %v4508 = vunpack.c.l.s4 1983009808
        %v4509 = vunpack.c.0.s8 %v4508
        %v4510 = vperm.slane %v4502, %v4509
        %v4511 = vrot.slane %v2804, 4
        %v4512 = vsel %vm791, %v4511, %v2800
        %v4513 = vrot.slane %v2800, 4
        %v4514 = vsel %vm791, %v2804, %v4513
        %v4516 = vunpack.c.l.s4 1983009808
        %v4517 = vunpack.c.0.s8 %v4516
        %v4518 = vperm.slane %v4512, %v4517
        %v4520 = vunpack.c.l.s4 1983009808
        %v4521 = vunpack.c.0.s8 %v4520
        %v4522 = vperm.slane %v4514, %v4521
        %v4523 = vrot.slane %v2806, 4
        %v4524 = vsel %vm791, %v4523, %v2802
        %v4525 = vrot.slane %v2802, 4
        %v4526 = vsel %vm791, %v2806, %v4525
        %v4528 = vunpack.c.l.s4 1983009808
        %v4529 = vunpack.c.0.s8 %v4528
        %v4530 = vperm.slane %v4524, %v4529
        %v4532 = vunpack.c.l.s4 1983009808
        %v4533 = vunpack.c.0.s8 %v4532
        %v4534 = vperm.slane %v4526, %v4533
        %v4535 = vrot.slane %v4506, 4
        %v4536 = vsel %vm791, %v4535, %v4494
        %v4537 = vrot.slane %v4494, 4
        %v4538 = vsel %vm791, %v4506, %v4537
        %v4540 = vunpack.c.l.s4 1934713408
        %v4541 = vunpack.c.0.s8 %v4540
        %v4542 = vperm.slane %v4536, %v4541
        %v4544 = vunpack.c.l.s4 1934713408
        %v4545 = vunpack.c.0.s8 %v4544
        %v4546 = vperm.slane %v4538, %v4545
        %v4547 = vrot.slane %v4510, 4
        %v4548 = vsel %vm791, %v4547, %v4498
        %v4549 = vrot.slane %v4498, 4
        %v4550 = vsel %vm791, %v4510, %v4549
        %v4552 = vunpack.c.l.s4 1934713408
        %v4553 = vunpack.c.0.s8 %v4552
        %v4554 = vperm.slane %v4548, %v4553
        %v4556 = vunpack.c.l.s4 1934713408
        %v4557 = vunpack.c.0.s8 %v4556
        %v4558 = vperm.slane %v4550, %v4557
        %v4559 = vrot.slane %v4530, 4
        %v4560 = vsel %vm791, %v4559, %v4518
        %v4561 = vrot.slane %v4518, 4
        %v4562 = vsel %vm791, %v4530, %v4561
        %v4564 = vunpack.c.l.s4 1934713408
        %v4565 = vunpack.c.0.s8 %v4564
        %v4566 = vperm.slane %v4560, %v4565
        %v4568 = vunpack.c.l.s4 1934713408
        %v4569 = vunpack.c.0.s8 %v4568
        %v4570 = vperm.slane %v4562, %v4569
        %v4571 = vrot.slane %v4534, 4
        %v4572 = vsel %vm791, %v4571, %v4522
        %v4573 = vrot.slane %v4522, 4
        %v4574 = vsel %vm791, %v4534, %v4573
        %v4576 = vunpack.c.l.s4 1934713408
        %v4577 = vunpack.c.0.s8 %v4576
        %v4578 = vperm.slane %v4572, %v4577
        %v4580 = vunpack.c.l.s4 1934713408
        %v4581 = vunpack.c.0.s8 %v4580
        %v4582 = vperm.slane %v4574, %v4581
        %v4583 = vrot.slane %v4566, 4
        %v4584 = vsel %vm791, %v4583, %v4542
        %v4585 = vrot.slane %v4542, 4
        %v4586 = vsel %vm791, %v4566, %v4585
        %v4587 = vrot.slane %v4570, 4
        %v4588 = vsel %vm791, %v4587, %v4546
        %v4589 = vrot.slane %v4546, 4
        %v4590 = vsel %vm791, %v4570, %v4589
        %v4591 = vrot.slane %v4578, 4
        %v4592 = vsel %vm791, %v4591, %v4554
        %v4593 = vrot.slane %v4554, 4
        %v4594 = vsel %vm791, %v4578, %v4593
        %v4595 = vrot.slane %v4582, 4
        %v4596 = vsel %vm791, %v4595, %v4558
        %v4597 = vrot.slane %v4558, 4
        %v4598 = vsel %vm791, %v4582, %v4597
        %v4599 = vrot.slane %v2908, 4
        %v4600 = vsel %vm791, %v4599, %v2904
        %v4601 = vrot.slane %v2904, 4
        %v4602 = vsel %vm791, %v2908, %v4601
        %v4604 = vunpack.c.l.s4 1983009808
        %v4605 = vunpack.c.0.s8 %v4604
        %v4606 = vperm.slane %v4600, %v4605
        %v4608 = vunpack.c.l.s4 1983009808
        %v4609 = vunpack.c.0.s8 %v4608
        %v4610 = vperm.slane %v4602, %v4609
        %v4611 = vrot.slane %v2910, 4
        %v4612 = vsel %vm791, %v4611, %v2906
        %v4613 = vrot.slane %v2906, 4
        %v4614 = vsel %vm791, %v2910, %v4613
        %v4616 = vunpack.c.l.s4 1983009808
        %v4617 = vunpack.c.0.s8 %v4616
        %v4618 = vperm.slane %v4612, %v4617
        %v4620 = vunpack.c.l.s4 1983009808
        %v4621 = vunpack.c.0.s8 %v4620
        %v4622 = vperm.slane %v4614, %v4621
        %v4623 = vrot.slane %v2916, 4
        %v4624 = vsel %vm791, %v4623, %v2912
        %v4625 = vrot.slane %v2912, 4
        %v4626 = vsel %vm791, %v2916, %v4625
        %v4628 = vunpack.c.l.s4 1983009808
        %v4629 = vunpack.c.0.s8 %v4628
        %v4630 = vperm.slane %v4624, %v4629
        %v4632 = vunpack.c.l.s4 1983009808
        %v4633 = vunpack.c.0.s8 %v4632
        %v4634 = vperm.slane %v4626, %v4633
        %v4635 = vrot.slane %v2918, 4
        %v4636 = vsel %vm791, %v4635, %v2914
        %v4637 = vrot.slane %v2914, 4
        %v4638 = vsel %vm791, %v2918, %v4637
        %v4640 = vunpack.c.l.s4 1983009808
        %v4641 = vunpack.c.0.s8 %v4640
        %v4642 = vperm.slane %v4636, %v4641
        %v4644 = vunpack.c.l.s4 1983009808
        %v4645 = vunpack.c.0.s8 %v4644
        %v4646 = vperm.slane %v4638, %v4645
        %v4647 = vrot.slane %v4618, 4
        %v4648 = vsel %vm791, %v4647, %v4606
        %v4649 = vrot.slane %v4606, 4
        %v4650 = vsel %vm791, %v4618, %v4649
        %v4652 = vunpack.c.l.s4 1934713408
        %v4653 = vunpack.c.0.s8 %v4652
        %v4654 = vperm.slane %v4648, %v4653
        %v4656 = vunpack.c.l.s4 1934713408
        %v4657 = vunpack.c.0.s8 %v4656
        %v4658 = vperm.slane %v4650, %v4657
        %v4659 = vrot.slane %v4622, 4
        %v4660 = vsel %vm791, %v4659, %v4610
        %v4661 = vrot.slane %v4610, 4
        %v4662 = vsel %vm791, %v4622, %v4661
        %v4664 = vunpack.c.l.s4 1934713408
        %v4665 = vunpack.c.0.s8 %v4664
        %v4666 = vperm.slane %v4660, %v4665
        %v4668 = vunpack.c.l.s4 1934713408
        %v4669 = vunpack.c.0.s8 %v4668
        %v4670 = vperm.slane %v4662, %v4669
        %v4671 = vrot.slane %v4642, 4
        %v4672 = vsel %vm791, %v4671, %v4630
        %v4673 = vrot.slane %v4630, 4
        %v4674 = vsel %vm791, %v4642, %v4673
        %v4676 = vunpack.c.l.s4 1934713408
        %v4677 = vunpack.c.0.s8 %v4676
        %v4678 = vperm.slane %v4672, %v4677
        %v4680 = vunpack.c.l.s4 1934713408
        %v4681 = vunpack.c.0.s8 %v4680
        %v4682 = vperm.slane %v4674, %v4681
        %v4683 = vrot.slane %v4646, 4
        %v4684 = vsel %vm791, %v4683, %v4634
        %v4685 = vrot.slane %v4634, 4
        %v4686 = vsel %vm791, %v4646, %v4685
        %v4688 = vunpack.c.l.s4 1934713408
        %v4689 = vunpack.c.0.s8 %v4688
        %v4690 = vperm.slane %v4684, %v4689
        %v4692 = vunpack.c.l.s4 1934713408
        %v4693 = vunpack.c.0.s8 %v4692
        %v4694 = vperm.slane %v4686, %v4693
        %v4695 = vrot.slane %v4678, 4
        %v4696 = vsel %vm791, %v4695, %v4654
        %v4697 = vrot.slane %v4654, 4
        %v4698 = vsel %vm791, %v4678, %v4697
        %v4699 = vrot.slane %v4682, 4
        %v4700 = vsel %vm791, %v4699, %v4658
        %v4701 = vrot.slane %v4658, 4
        %v4702 = vsel %vm791, %v4682, %v4701
        %v4703 = vrot.slane %v4690, 4
        %v4704 = vsel %vm791, %v4703, %v4666
        %v4705 = vrot.slane %v4666, 4
        %v4706 = vsel %vm791, %v4690, %v4705
        %v4707 = vrot.slane %v4694, 4
        %v4708 = vsel %vm791, %v4707, %v4670
        %v4709 = vrot.slane %v4670, 4
        %v4710 = vsel %vm791, %v4694, %v4709
        %v4711 = vrot.slane %v3020, 4
        %v4712 = vsel %vm791, %v4711, %v3016
        %v4713 = vrot.slane %v3016, 4
        %v4714 = vsel %vm791, %v3020, %v4713
        %v4716 = vunpack.c.l.s4 1983009808
        %v4717 = vunpack.c.0.s8 %v4716
        %v4718 = vperm.slane %v4712, %v4717
        %v4720 = vunpack.c.l.s4 1983009808
        %v4721 = vunpack.c.0.s8 %v4720
        %v4722 = vperm.slane %v4714, %v4721
        %v4723 = vrot.slane %v3022, 4
        %v4724 = vsel %vm791, %v4723, %v3018
        %v4725 = vrot.slane %v3018, 4
        %v4726 = vsel %vm791, %v3022, %v4725
        %v4728 = vunpack.c.l.s4 1983009808
        %v4729 = vunpack.c.0.s8 %v4728
        %v4730 = vperm.slane %v4724, %v4729
        %v4732 = vunpack.c.l.s4 1983009808
        %v4733 = vunpack.c.0.s8 %v4732
        %v4734 = vperm.slane %v4726, %v4733
        %v4735 = vrot.slane %v3028, 4
        %v4736 = vsel %vm791, %v4735, %v3024
        %v4737 = vrot.slane %v3024, 4
        %v4738 = vsel %vm791, %v3028, %v4737
        %v4740 = vunpack.c.l.s4 1983009808
        %v4741 = vunpack.c.0.s8 %v4740
        %v4742 = vperm.slane %v4736, %v4741
        %v4744 = vunpack.c.l.s4 1983009808
        %v4745 = vunpack.c.0.s8 %v4744
        %v4746 = vperm.slane %v4738, %v4745
        %v4747 = vrot.slane %v3030, 4
        %v4748 = vsel %vm791, %v4747, %v3026
        %v4749 = vrot.slane %v3026, 4
        %v4750 = vsel %vm791, %v3030, %v4749
        %v4752 = vunpack.c.l.s4 1983009808
        %v4753 = vunpack.c.0.s8 %v4752
        %v4754 = vperm.slane %v4748, %v4753
        %v4756 = vunpack.c.l.s4 1983009808
        %v4757 = vunpack.c.0.s8 %v4756
        %v4758 = vperm.slane %v4750, %v4757
        %v4759 = vrot.slane %v4730, 4
        %v4760 = vsel %vm791, %v4759, %v4718
        %v4761 = vrot.slane %v4718, 4
        %v4762 = vsel %vm791, %v4730, %v4761
        %v4764 = vunpack.c.l.s4 1934713408
        %v4765 = vunpack.c.0.s8 %v4764
        %v4766 = vperm.slane %v4760, %v4765
        %v4768 = vunpack.c.l.s4 1934713408
        %v4769 = vunpack.c.0.s8 %v4768
        %v4770 = vperm.slane %v4762, %v4769
        %v4771 = vrot.slane %v4734, 4
        %v4772 = vsel %vm791, %v4771, %v4722
        %v4773 = vrot.slane %v4722, 4
        %v4774 = vsel %vm791, %v4734, %v4773
        %v4776 = vunpack.c.l.s4 1934713408
        %v4777 = vunpack.c.0.s8 %v4776
        %v4778 = vperm.slane %v4772, %v4777
        %v4780 = vunpack.c.l.s4 1934713408
        %v4781 = vunpack.c.0.s8 %v4780
        %v4782 = vperm.slane %v4774, %v4781
        %v4783 = vrot.slane %v4754, 4
        %v4784 = vsel %vm791, %v4783, %v4742
        %v4785 = vrot.slane %v4742, 4
        %v4786 = vsel %vm791, %v4754, %v4785
        %v4788 = vunpack.c.l.s4 1934713408
        %v4789 = vunpack.c.0.s8 %v4788
        %v4790 = vperm.slane %v4784, %v4789
        %v4792 = vunpack.c.l.s4 1934713408
        %v4793 = vunpack.c.0.s8 %v4792
        %v4794 = vperm.slane %v4786, %v4793
        %v4795 = vrot.slane %v4758, 4
        %v4796 = vsel %vm791, %v4795, %v4746
        %v4797 = vrot.slane %v4746, 4
        %v4798 = vsel %vm791, %v4758, %v4797
        %v4800 = vunpack.c.l.s4 1934713408
        %v4801 = vunpack.c.0.s8 %v4800
        %v4802 = vperm.slane %v4796, %v4801
        %v4804 = vunpack.c.l.s4 1934713408
        %v4805 = vunpack.c.0.s8 %v4804
        %v4806 = vperm.slane %v4798, %v4805
        %v4807 = vrot.slane %v4790, 4
        %v4808 = vsel %vm791, %v4807, %v4766
        %v4809 = vrot.slane %v4766, 4
        %v4810 = vsel %vm791, %v4790, %v4809
        %v4811 = vrot.slane %v4794, 4
        %v4812 = vsel %vm791, %v4811, %v4770
        %v4813 = vrot.slane %v4770, 4
        %v4814 = vsel %vm791, %v4794, %v4813
        %v4815 = vrot.slane %v4802, 4
        %v4816 = vsel %vm791, %v4815, %v4778
        %v4817 = vrot.slane %v4778, 4
        %v4818 = vsel %vm791, %v4802, %v4817
        %v4819 = vrot.slane %v4806, 4
        %v4820 = vsel %vm791, %v4819, %v4782
        %v4821 = vrot.slane %v4782, 4
        %v4822 = vsel %vm791, %v4806, %v4821
        %v4823 = vrot.slane %v3132, 4
        %v4824 = vsel %vm791, %v4823, %v3128
        %v4825 = vrot.slane %v3128, 4
        %v4826 = vsel %vm791, %v3132, %v4825
        %v4828 = vunpack.c.l.s4 1983009808
        %v4829 = vunpack.c.0.s8 %v4828
        %v4830 = vperm.slane %v4824, %v4829
        %v4832 = vunpack.c.l.s4 1983009808
        %v4833 = vunpack.c.0.s8 %v4832
        %v4834 = vperm.slane %v4826, %v4833
        %v4835 = vrot.slane %v3134, 4
        %v4836 = vsel %vm791, %v4835, %v3130
        %v4837 = vrot.slane %v3130, 4
        %v4838 = vsel %vm791, %v3134, %v4837
        %v4840 = vunpack.c.l.s4 1983009808
        %v4841 = vunpack.c.0.s8 %v4840
        %v4842 = vperm.slane %v4836, %v4841
        %v4844 = vunpack.c.l.s4 1983009808
        %v4845 = vunpack.c.0.s8 %v4844
        %v4846 = vperm.slane %v4838, %v4845
        %v4847 = vrot.slane %v3140, 4
        %v4848 = vsel %vm791, %v4847, %v3136
        %v4849 = vrot.slane %v3136, 4
        %v4850 = vsel %vm791, %v3140, %v4849
        %v4852 = vunpack.c.l.s4 1983009808
        %v4853 = vunpack.c.0.s8 %v4852
        %v4854 = vperm.slane %v4848, %v4853
        %v4856 = vunpack.c.l.s4 1983009808
        %v4857 = vunpack.c.0.s8 %v4856
        %v4858 = vperm.slane %v4850, %v4857
        %v4859 = vrot.slane %v3142, 4
        %v4860 = vsel %vm791, %v4859, %v3138
        %v4861 = vrot.slane %v3138, 4
        %v4862 = vsel %vm791, %v3142, %v4861
        %v4864 = vunpack.c.l.s4 1983009808
        %v4865 = vunpack.c.0.s8 %v4864
        %v4866 = vperm.slane %v4860, %v4865
        %v4868 = vunpack.c.l.s4 1983009808
        %v4869 = vunpack.c.0.s8 %v4868
        %v4870 = vperm.slane %v4862, %v4869
        %v4871 = vrot.slane %v4842, 4
        %v4872 = vsel %vm791, %v4871, %v4830
        %v4873 = vrot.slane %v4830, 4
        %v4874 = vsel %vm791, %v4842, %v4873
        %v4876 = vunpack.c.l.s4 1934713408
        %v4877 = vunpack.c.0.s8 %v4876
        %v4878 = vperm.slane %v4872, %v4877
        %v4880 = vunpack.c.l.s4 1934713408
        %v4881 = vunpack.c.0.s8 %v4880
        %v4882 = vperm.slane %v4874, %v4881
        %v4883 = vrot.slane %v4846, 4
        %v4884 = vsel %vm791, %v4883, %v4834
        %v4885 = vrot.slane %v4834, 4
        %v4886 = vsel %vm791, %v4846, %v4885
        %v4888 = vunpack.c.l.s4 1934713408
        %v4889 = vunpack.c.0.s8 %v4888
        %v4890 = vperm.slane %v4884, %v4889
        %v4892 = vunpack.c.l.s4 1934713408
        %v4893 = vunpack.c.0.s8 %v4892
        %v4894 = vperm.slane %v4886, %v4893
        %v4895 = vrot.slane %v4866, 4
        %v4896 = vsel %vm791, %v4895, %v4854
        %v4897 = vrot.slane %v4854, 4
        %v4898 = vsel %vm791, %v4866, %v4897
        %v4900 = vunpack.c.l.s4 1934713408
        %v4901 = vunpack.c.0.s8 %v4900
        %v4902 = vperm.slane %v4896, %v4901
        %v4904 = vunpack.c.l.s4 1934713408
        %v4905 = vunpack.c.0.s8 %v4904
        %v4906 = vperm.slane %v4898, %v4905
        %v4907 = vrot.slane %v4870, 4
        %v4908 = vsel %vm791, %v4907, %v4858
        %v4909 = vrot.slane %v4858, 4
        %v4910 = vsel %vm791, %v4870, %v4909
        %v4912 = vunpack.c.l.s4 1934713408
        %v4913 = vunpack.c.0.s8 %v4912
        %v4914 = vperm.slane %v4908, %v4913
        %v4916 = vunpack.c.l.s4 1934713408
        %v4917 = vunpack.c.0.s8 %v4916
        %v4918 = vperm.slane %v4910, %v4917
        %v4919 = vrot.slane %v4902, 4
        %v4920 = vsel %vm791, %v4919, %v4878
        %v4921 = vrot.slane %v4878, 4
        %v4922 = vsel %vm791, %v4902, %v4921
        %v4923 = vrot.slane %v4906, 4
        %v4924 = vsel %vm791, %v4923, %v4882
        %v4925 = vrot.slane %v4882, 4
        %v4926 = vsel %vm791, %v4906, %v4925
        %v4927 = vrot.slane %v4914, 4
        %v4928 = vsel %vm791, %v4927, %v4890
        %v4929 = vrot.slane %v4890, 4
        %v4930 = vsel %vm791, %v4914, %v4929
        %v4931 = vrot.slane %v4918, 4
        %v4932 = vsel %vm791, %v4931, %v4894
        %v4933 = vrot.slane %v4894, 4
        %v4934 = vsel %vm791, %v4918, %v4933
        %v4935 = vrot.slane %v3244, 4
        %v4936 = vsel %vm791, %v4935, %v3240
        %v4937 = vrot.slane %v3240, 4
        %v4938 = vsel %vm791, %v3244, %v4937
        %v4940 = vunpack.c.l.s4 1983009808
        %v4941 = vunpack.c.0.s8 %v4940
        %v4942 = vperm.slane %v4936, %v4941
        %v4944 = vunpack.c.l.s4 1983009808
        %v4945 = vunpack.c.0.s8 %v4944
        %v4946 = vperm.slane %v4938, %v4945
        %v4947 = vrot.slane %v3246, 4
        %v4948 = vsel %vm791, %v4947, %v3242
        %v4949 = vrot.slane %v3242, 4
        %v4950 = vsel %vm791, %v3246, %v4949
        %v4952 = vunpack.c.l.s4 1983009808
        %v4953 = vunpack.c.0.s8 %v4952
        %v4954 = vperm.slane %v4948, %v4953
        %v4956 = vunpack.c.l.s4 1983009808
        %v4957 = vunpack.c.0.s8 %v4956
        %v4958 = vperm.slane %v4950, %v4957
        %v4959 = vrot.slane %v3252, 4
        %v4960 = vsel %vm791, %v4959, %v3248
        %v4961 = vrot.slane %v3248, 4
        %v4962 = vsel %vm791, %v3252, %v4961
        %v4964 = vunpack.c.l.s4 1983009808
        %v4965 = vunpack.c.0.s8 %v4964
        %v4966 = vperm.slane %v4960, %v4965
        %v4968 = vunpack.c.l.s4 1983009808
        %v4969 = vunpack.c.0.s8 %v4968
        %v4970 = vperm.slane %v4962, %v4969
        %v4971 = vrot.slane %v3254, 4
        %v4972 = vsel %vm791, %v4971, %v3250
        %v4973 = vrot.slane %v3250, 4
        %v4974 = vsel %vm791, %v3254, %v4973
        %v4976 = vunpack.c.l.s4 1983009808
        %v4977 = vunpack.c.0.s8 %v4976
        %v4978 = vperm.slane %v4972, %v4977
        %v4980 = vunpack.c.l.s4 1983009808
        %v4981 = vunpack.c.0.s8 %v4980
        %v4982 = vperm.slane %v4974, %v4981
        %v4983 = vrot.slane %v4954, 4
        %v4984 = vsel %vm791, %v4983, %v4942
        %v4985 = vrot.slane %v4942, 4
        %v4986 = vsel %vm791, %v4954, %v4985
        %v4988 = vunpack.c.l.s4 1934713408
        %v4989 = vunpack.c.0.s8 %v4988
        %v4990 = vperm.slane %v4984, %v4989
        %v4992 = vunpack.c.l.s4 1934713408
        %v4993 = vunpack.c.0.s8 %v4992
        %v4994 = vperm.slane %v4986, %v4993
        %v4995 = vrot.slane %v4958, 4
        %v4996 = vsel %vm791, %v4995, %v4946
        %v4997 = vrot.slane %v4946, 4
        %v4998 = vsel %vm791, %v4958, %v4997
        %v5000 = vunpack.c.l.s4 1934713408
        %v5001 = vunpack.c.0.s8 %v5000
        %v5002 = vperm.slane %v4996, %v5001
        %v5004 = vunpack.c.l.s4 1934713408
        %v5005 = vunpack.c.0.s8 %v5004
        %v5006 = vperm.slane %v4998, %v5005
        %v5007 = vrot.slane %v4978, 4
        %v5008 = vsel %vm791, %v5007, %v4966
        %v5009 = vrot.slane %v4966, 4
        %v5010 = vsel %vm791, %v4978, %v5009
        %v5012 = vunpack.c.l.s4 1934713408
        %v5013 = vunpack.c.0.s8 %v5012
        %v5014 = vperm.slane %v5008, %v5013
        %v5016 = vunpack.c.l.s4 1934713408
        %v5017 = vunpack.c.0.s8 %v5016
        %v5018 = vperm.slane %v5010, %v5017
        %v5019 = vrot.slane %v4982, 4
        %v5020 = vsel %vm791, %v5019, %v4970
        %v5021 = vrot.slane %v4970, 4
        %v5022 = vsel %vm791, %v4982, %v5021
        %v5024 = vunpack.c.l.s4 1934713408
        %v5025 = vunpack.c.0.s8 %v5024
        %v5026 = vperm.slane %v5020, %v5025
        %v5028 = vunpack.c.l.s4 1934713408
        %v5029 = vunpack.c.0.s8 %v5028
        %v5030 = vperm.slane %v5022, %v5029
        %v5031 = vrot.slane %v5014, 4
        %v5032 = vsel %vm791, %v5031, %v4990
        %v5033 = vrot.slane %v4990, 4
        %v5034 = vsel %vm791, %v5014, %v5033
        %v5035 = vrot.slane %v5018, 4
        %v5036 = vsel %vm791, %v5035, %v4994
        %v5037 = vrot.slane %v4994, 4
        %v5038 = vsel %vm791, %v5018, %v5037
        %v5039 = vrot.slane %v5026, 4
        %v5040 = vsel %vm791, %v5039, %v5002
        %v5041 = vrot.slane %v5002, 4
        %v5042 = vsel %vm791, %v5026, %v5041
        %v5043 = vrot.slane %v5030, 4
        %v5044 = vsel %vm791, %v5043, %v5006
        %v5045 = vrot.slane %v5006, 4
        %v5046 = vsel %vm791, %v5030, %v5045
        %v5047 = vrot.slane %v3356, 4
        %v5048 = vsel %vm791, %v5047, %v3352
        %v5049 = vrot.slane %v3352, 4
        %v5050 = vsel %vm791, %v3356, %v5049
        %v5052 = vunpack.c.l.s4 1983009808
        %v5053 = vunpack.c.0.s8 %v5052
        %v5054 = vperm.slane %v5048, %v5053
        %v5056 = vunpack.c.l.s4 1983009808
        %v5057 = vunpack.c.0.s8 %v5056
        %v5058 = vperm.slane %v5050, %v5057
        %v5059 = vrot.slane %v3358, 4
        %v5060 = vsel %vm791, %v5059, %v3354
        %v5061 = vrot.slane %v3354, 4
        %v5062 = vsel %vm791, %v3358, %v5061
        %v5064 = vunpack.c.l.s4 1983009808
        %v5065 = vunpack.c.0.s8 %v5064
        %v5066 = vperm.slane %v5060, %v5065
        %v5068 = vunpack.c.l.s4 1983009808
        %v5069 = vunpack.c.0.s8 %v5068
        %v5070 = vperm.slane %v5062, %v5069
        %v5071 = vrot.slane %v3364, 4
        %v5072 = vsel %vm791, %v5071, %v3360
        %v5073 = vrot.slane %v3360, 4
        %v5074 = vsel %vm791, %v3364, %v5073
        %v5076 = vunpack.c.l.s4 1983009808
        %v5077 = vunpack.c.0.s8 %v5076
        %v5078 = vperm.slane %v5072, %v5077
        %v5080 = vunpack.c.l.s4 1983009808
        %v5081 = vunpack.c.0.s8 %v5080
        %v5082 = vperm.slane %v5074, %v5081
        %v5083 = vrot.slane %v3366, 4
        %v5084 = vsel %vm791, %v5083, %v3362
        %v5085 = vrot.slane %v3362, 4
        %v5086 = vsel %vm791, %v3366, %v5085
        %v5088 = vunpack.c.l.s4 1983009808
        %v5089 = vunpack.c.0.s8 %v5088
        %v5090 = vperm.slane %v5084, %v5089
        %v5092 = vunpack.c.l.s4 1983009808
        %v5093 = vunpack.c.0.s8 %v5092
        %v5094 = vperm.slane %v5086, %v5093
        %v5095 = vrot.slane %v5066, 4
        %v5096 = vsel %vm791, %v5095, %v5054
        %v5097 = vrot.slane %v5054, 4
        %v5098 = vsel %vm791, %v5066, %v5097
        %v5100 = vunpack.c.l.s4 1934713408
        %v5101 = vunpack.c.0.s8 %v5100
        %v5102 = vperm.slane %v5096, %v5101
        %v5104 = vunpack.c.l.s4 1934713408
        %v5105 = vunpack.c.0.s8 %v5104
        %v5106 = vperm.slane %v5098, %v5105
        %v5107 = vrot.slane %v5070, 4
        %v5108 = vsel %vm791, %v5107, %v5058
        %v5109 = vrot.slane %v5058, 4
        %v5110 = vsel %vm791, %v5070, %v5109
        %v5112 = vunpack.c.l.s4 1934713408
        %v5113 = vunpack.c.0.s8 %v5112
        %v5114 = vperm.slane %v5108, %v5113
        %v5116 = vunpack.c.l.s4 1934713408
        %v5117 = vunpack.c.0.s8 %v5116
        %v5118 = vperm.slane %v5110, %v5117
        %v5119 = vrot.slane %v5090, 4
        %v5120 = vsel %vm791, %v5119, %v5078
        %v5121 = vrot.slane %v5078, 4
        %v5122 = vsel %vm791, %v5090, %v5121
        %v5124 = vunpack.c.l.s4 1934713408
        %v5125 = vunpack.c.0.s8 %v5124
        %v5126 = vperm.slane %v5120, %v5125
        %v5128 = vunpack.c.l.s4 1934713408
        %v5129 = vunpack.c.0.s8 %v5128
        %v5130 = vperm.slane %v5122, %v5129
        %v5131 = vrot.slane %v5094, 4
        %v5132 = vsel %vm791, %v5131, %v5082
        %v5133 = vrot.slane %v5082, 4
        %v5134 = vsel %vm791, %v5094, %v5133
        %v5136 = vunpack.c.l.s4 1934713408
        %v5137 = vunpack.c.0.s8 %v5136
        %v5138 = vperm.slane %v5132, %v5137
        %v5140 = vunpack.c.l.s4 1934713408
        %v5141 = vunpack.c.0.s8 %v5140
        %v5142 = vperm.slane %v5134, %v5141
        %v5143 = vrot.slane %v5126, 4
        %v5144 = vsel %vm791, %v5143, %v5102
        %v5145 = vrot.slane %v5102, 4
        %v5146 = vsel %vm791, %v5126, %v5145
        %v5147 = vrot.slane %v5130, 4
        %v5148 = vsel %vm791, %v5147, %v5106
        %v5149 = vrot.slane %v5106, 4
        %v5150 = vsel %vm791, %v5130, %v5149
        %v5151 = vrot.slane %v5138, 4
        %v5152 = vsel %vm791, %v5151, %v5114
        %v5153 = vrot.slane %v5114, 4
        %v5154 = vsel %vm791, %v5138, %v5153
        %v5155 = vrot.slane %v5142, 4
        %v5156 = vsel %vm791, %v5155, %v5118
        %v5157 = vrot.slane %v5118, 4
        %v5158 = vsel %vm791, %v5142, %v5157
        %v5159 = vrot.slane %v3468, 4
        %v5160 = vsel %vm791, %v5159, %v3464
        %v5161 = vrot.slane %v3464, 4
        %v5162 = vsel %vm791, %v3468, %v5161
        %v5164 = vunpack.c.l.s4 1983009808
        %v5165 = vunpack.c.0.s8 %v5164
        %v5166 = vperm.slane %v5160, %v5165
        %v5168 = vunpack.c.l.s4 1983009808
        %v5169 = vunpack.c.0.s8 %v5168
        %v5170 = vperm.slane %v5162, %v5169
        %v5171 = vrot.slane %v3470, 4
        %v5172 = vsel %vm791, %v5171, %v3466
        %v5173 = vrot.slane %v3466, 4
        %v5174 = vsel %vm791, %v3470, %v5173
        %v5176 = vunpack.c.l.s4 1983009808
        %v5177 = vunpack.c.0.s8 %v5176
        %v5178 = vperm.slane %v5172, %v5177
        %v5180 = vunpack.c.l.s4 1983009808
        %v5181 = vunpack.c.0.s8 %v5180
        %v5182 = vperm.slane %v5174, %v5181
        %v5183 = vrot.slane %v3476, 4
        %v5184 = vsel %vm791, %v5183, %v3472
        %v5185 = vrot.slane %v3472, 4
        %v5186 = vsel %vm791, %v3476, %v5185
        %v5188 = vunpack.c.l.s4 1983009808
        %v5189 = vunpack.c.0.s8 %v5188
        %v5190 = vperm.slane %v5184, %v5189
        %v5192 = vunpack.c.l.s4 1983009808
        %v5193 = vunpack.c.0.s8 %v5192
        %v5194 = vperm.slane %v5186, %v5193
        %v5195 = vrot.slane %v3478, 4
        %v5196 = vsel %vm791, %v5195, %v3474
        %v5197 = vrot.slane %v3474, 4
        %v5198 = vsel %vm791, %v3478, %v5197
        %v5200 = vunpack.c.l.s4 1983009808
        %v5201 = vunpack.c.0.s8 %v5200
        %v5202 = vperm.slane %v5196, %v5201
        %v5204 = vunpack.c.l.s4 1983009808
        %v5205 = vunpack.c.0.s8 %v5204
        %v5206 = vperm.slane %v5198, %v5205
        %v5207 = vrot.slane %v5178, 4
        %v5208 = vsel %vm791, %v5207, %v5166
        %v5209 = vrot.slane %v5166, 4
        %v5210 = vsel %vm791, %v5178, %v5209
        %v5212 = vunpack.c.l.s4 1934713408
        %v5213 = vunpack.c.0.s8 %v5212
        %v5214 = vperm.slane %v5208, %v5213
        %v5216 = vunpack.c.l.s4 1934713408
        %v5217 = vunpack.c.0.s8 %v5216
        %v5218 = vperm.slane %v5210, %v5217
        %v5219 = vrot.slane %v5182, 4
        %v5220 = vsel %vm791, %v5219, %v5170
        %v5221 = vrot.slane %v5170, 4
        %v5222 = vsel %vm791, %v5182, %v5221
        %v5224 = vunpack.c.l.s4 1934713408
        %v5225 = vunpack.c.0.s8 %v5224
        %v5226 = vperm.slane %v5220, %v5225
        %v5228 = vunpack.c.l.s4 1934713408
        %v5229 = vunpack.c.0.s8 %v5228
        %v5230 = vperm.slane %v5222, %v5229
        %v5231 = vrot.slane %v5202, 4
        %v5232 = vsel %vm791, %v5231, %v5190
        %v5233 = vrot.slane %v5190, 4
        %v5234 = vsel %vm791, %v5202, %v5233
        %v5236 = vunpack.c.l.s4 1934713408
        %v5237 = vunpack.c.0.s8 %v5236
        %v5238 = vperm.slane %v5232, %v5237
        %v5240 = vunpack.c.l.s4 1934713408
        %v5241 = vunpack.c.0.s8 %v5240
        %v5242 = vperm.slane %v5234, %v5241
        %v5243 = vrot.slane %v5206, 4
        %v5244 = vsel %vm791, %v5243, %v5194
        %v5245 = vrot.slane %v5194, 4
        %v5246 = vsel %vm791, %v5206, %v5245
        %v5248 = vunpack.c.l.s4 1934713408
        %v5249 = vunpack.c.0.s8 %v5248
        %v5250 = vperm.slane %v5244, %v5249
        %v5252 = vunpack.c.l.s4 1934713408
        %v5253 = vunpack.c.0.s8 %v5252
        %v5254 = vperm.slane %v5246, %v5253
        %v5255 = vrot.slane %v5238, 4
        %v5256 = vsel %vm791, %v5255, %v5214
        %v5257 = vrot.slane %v5214, 4
        %v5258 = vsel %vm791, %v5238, %v5257
        %v5259 = vrot.slane %v5242, 4
        %v5260 = vsel %vm791, %v5259, %v5218
        %v5261 = vrot.slane %v5218, 4
        %v5262 = vsel %vm791, %v5242, %v5261
        %v5263 = vrot.slane %v5250, 4
        %v5264 = vsel %vm791, %v5263, %v5226
        %v5265 = vrot.slane %v5226, 4
        %v5266 = vsel %vm791, %v5250, %v5265
        %v5267 = vrot.slane %v5254, 4
        %v5268 = vsel %vm791, %v5267, %v5230
        %v5269 = vrot.slane %v5230, 4
        %v5270 = vsel %vm791, %v5254, %v5269
        %v5271 = vrot.slane %v3580, 4
        %v5272 = vsel %vm791, %v5271, %v3576
        %v5273 = vrot.slane %v3576, 4
        %v5274 = vsel %vm791, %v3580, %v5273
        %v5276 = vunpack.c.l.s4 1983009808
        %v5277 = vunpack.c.0.s8 %v5276
        %v5278 = vperm.slane %v5272, %v5277
        %v5280 = vunpack.c.l.s4 1983009808
        %v5281 = vunpack.c.0.s8 %v5280
        %v5282 = vperm.slane %v5274, %v5281
        %v5283 = vrot.slane %v3582, 4
        %v5284 = vsel %vm791, %v5283, %v3578
        %v5285 = vrot.slane %v3578, 4
        %v5286 = vsel %vm791, %v3582, %v5285
        %v5288 = vunpack.c.l.s4 1983009808
        %v5289 = vunpack.c.0.s8 %v5288
        %v5290 = vperm.slane %v5284, %v5289
        %v5292 = vunpack.c.l.s4 1983009808
        %v5293 = vunpack.c.0.s8 %v5292
        %v5294 = vperm.slane %v5286, %v5293
        %v5295 = vrot.slane %v3588, 4
        %v5296 = vsel %vm791, %v5295, %v3584
        %v5297 = vrot.slane %v3584, 4
        %v5298 = vsel %vm791, %v3588, %v5297
        %v5300 = vunpack.c.l.s4 1983009808
        %v5301 = vunpack.c.0.s8 %v5300
        %v5302 = vperm.slane %v5296, %v5301
        %v5304 = vunpack.c.l.s4 1983009808
        %v5305 = vunpack.c.0.s8 %v5304
        %v5306 = vperm.slane %v5298, %v5305
        %v5307 = vrot.slane %v3590, 4
        %v5308 = vsel %vm791, %v5307, %v3586
        %v5309 = vrot.slane %v3586, 4
        %v5310 = vsel %vm791, %v3590, %v5309
        %v5312 = vunpack.c.l.s4 1983009808
        %v5313 = vunpack.c.0.s8 %v5312
        %v5314 = vperm.slane %v5308, %v5313
        %v5316 = vunpack.c.l.s4 1983009808
        %v5317 = vunpack.c.0.s8 %v5316
        %v5318 = vperm.slane %v5310, %v5317
        %v5319 = vrot.slane %v5290, 4
        %v5320 = vsel %vm791, %v5319, %v5278
        %v5321 = vrot.slane %v5278, 4
        %v5322 = vsel %vm791, %v5290, %v5321
        %v5324 = vunpack.c.l.s4 1934713408
        %v5325 = vunpack.c.0.s8 %v5324
        %v5326 = vperm.slane %v5320, %v5325
        %v5328 = vunpack.c.l.s4 1934713408
        %v5329 = vunpack.c.0.s8 %v5328
        %v5330 = vperm.slane %v5322, %v5329
        %v5331 = vrot.slane %v5294, 4
        %v5332 = vsel %vm791, %v5331, %v5282
        %v5333 = vrot.slane %v5282, 4
        %v5334 = vsel %vm791, %v5294, %v5333
        %v5336 = vunpack.c.l.s4 1934713408
        %v5337 = vunpack.c.0.s8 %v5336
        %v5338 = vperm.slane %v5332, %v5337
        %v5340 = vunpack.c.l.s4 1934713408
        %v5341 = vunpack.c.0.s8 %v5340
        %v5342 = vperm.slane %v5334, %v5341
        %v5343 = vrot.slane %v5314, 4
        %v5344 = vsel %vm791, %v5343, %v5302
        %v5345 = vrot.slane %v5302, 4
        %v5346 = vsel %vm791, %v5314, %v5345
        %v5348 = vunpack.c.l.s4 1934713408
        %v5349 = vunpack.c.0.s8 %v5348
        %v5350 = vperm.slane %v5344, %v5349
        %v5352 = vunpack.c.l.s4 1934713408
        %v5353 = vunpack.c.0.s8 %v5352
        %v5354 = vperm.slane %v5346, %v5353
        %v5355 = vrot.slane %v5318, 4
        %v5356 = vsel %vm791, %v5355, %v5306
        %v5357 = vrot.slane %v5306, 4
        %v5358 = vsel %vm791, %v5318, %v5357
        %v5360 = vunpack.c.l.s4 1934713408
        %v5361 = vunpack.c.0.s8 %v5360
        %v5362 = vperm.slane %v5356, %v5361
        %v5364 = vunpack.c.l.s4 1934713408
        %v5365 = vunpack.c.0.s8 %v5364
        %v5366 = vperm.slane %v5358, %v5365
        %v5367 = vrot.slane %v5350, 4
        %v5368 = vsel %vm791, %v5367, %v5326
        %v5369 = vrot.slane %v5326, 4
        %v5370 = vsel %vm791, %v5350, %v5369
        %v5371 = vrot.slane %v5354, 4
        %v5372 = vsel %vm791, %v5371, %v5330
        %v5373 = vrot.slane %v5330, 4
        %v5374 = vsel %vm791, %v5354, %v5373
        %v5375 = vrot.slane %v5362, 4
        %v5376 = vsel %vm791, %v5375, %v5338
        %v5377 = vrot.slane %v5338, 4
        %v5378 = vsel %vm791, %v5362, %v5377
        %v5379 = vrot.slane %v5366, 4
        %v5380 = vsel %vm791, %v5379, %v5342
        %v5381 = vrot.slane %v5342, 4
        %v5382 = vsel %vm791, %v5366, %v5381
        %v5383 = vrot.slane %v3692, 4
        %v5384 = vsel %vm791, %v5383, %v3688
        %v5385 = vrot.slane %v3688, 4
        %v5386 = vsel %vm791, %v3692, %v5385
        %v5388 = vunpack.c.l.s4 1983009808
        %v5389 = vunpack.c.0.s8 %v5388
        %v5390 = vperm.slane %v5384, %v5389
        %v5392 = vunpack.c.l.s4 1983009808
        %v5393 = vunpack.c.0.s8 %v5392
        %v5394 = vperm.slane %v5386, %v5393
        %v5395 = vrot.slane %v3694, 4
        %v5396 = vsel %vm791, %v5395, %v3690
        %v5397 = vrot.slane %v3690, 4
        %v5398 = vsel %vm791, %v3694, %v5397
        %v5400 = vunpack.c.l.s4 1983009808
        %v5401 = vunpack.c.0.s8 %v5400
        %v5402 = vperm.slane %v5396, %v5401
        %v5404 = vunpack.c.l.s4 1983009808
        %v5405 = vunpack.c.0.s8 %v5404
        %v5406 = vperm.slane %v5398, %v5405
        %v5407 = vrot.slane %v3700, 4
        %v5408 = vsel %vm791, %v5407, %v3696
        %v5409 = vrot.slane %v3696, 4
        %v5410 = vsel %vm791, %v3700, %v5409
        %v5412 = vunpack.c.l.s4 1983009808
        %v5413 = vunpack.c.0.s8 %v5412
        %v5414 = vperm.slane %v5408, %v5413
        %v5416 = vunpack.c.l.s4 1983009808
        %v5417 = vunpack.c.0.s8 %v5416
        %v5418 = vperm.slane %v5410, %v5417
        %v5419 = vrot.slane %v3702, 4
        %v5420 = vsel %vm791, %v5419, %v3698
        %v5421 = vrot.slane %v3698, 4
        %v5422 = vsel %vm791, %v3702, %v5421
        %v5424 = vunpack.c.l.s4 1983009808
        %v5425 = vunpack.c.0.s8 %v5424
        %v5426 = vperm.slane %v5420, %v5425
        %v5428 = vunpack.c.l.s4 1983009808
        %v5429 = vunpack.c.0.s8 %v5428
        %v5430 = vperm.slane %v5422, %v5429
        %v5431 = vrot.slane %v5402, 4
        %v5432 = vsel %vm791, %v5431, %v5390
        %v5433 = vrot.slane %v5390, 4
        %v5434 = vsel %vm791, %v5402, %v5433
        %v5436 = vunpack.c.l.s4 1934713408
        %v5437 = vunpack.c.0.s8 %v5436
        %v5438 = vperm.slane %v5432, %v5437
        %v5440 = vunpack.c.l.s4 1934713408
        %v5441 = vunpack.c.0.s8 %v5440
        %v5442 = vperm.slane %v5434, %v5441
        %v5443 = vrot.slane %v5406, 4
        %v5444 = vsel %vm791, %v5443, %v5394
        %v5445 = vrot.slane %v5394, 4
        %v5446 = vsel %vm791, %v5406, %v5445
        %v5448 = vunpack.c.l.s4 1934713408
        %v5449 = vunpack.c.0.s8 %v5448
        %v5450 = vperm.slane %v5444, %v5449
        %v5452 = vunpack.c.l.s4 1934713408
        %v5453 = vunpack.c.0.s8 %v5452
        %v5454 = vperm.slane %v5446, %v5453
        %v5455 = vrot.slane %v5426, 4
        %v5456 = vsel %vm791, %v5455, %v5414
        %v5457 = vrot.slane %v5414, 4
        %v5458 = vsel %vm791, %v5426, %v5457
        %v5460 = vunpack.c.l.s4 1934713408
        %v5461 = vunpack.c.0.s8 %v5460
        %v5462 = vperm.slane %v5456, %v5461
        %v5464 = vunpack.c.l.s4 1934713408
        %v5465 = vunpack.c.0.s8 %v5464
        %v5466 = vperm.slane %v5458, %v5465
        %v5467 = vrot.slane %v5430, 4
        %v5468 = vsel %vm791, %v5467, %v5418
        %v5469 = vrot.slane %v5418, 4
        %v5470 = vsel %vm791, %v5430, %v5469
        %v5472 = vunpack.c.l.s4 1934713408
        %v5473 = vunpack.c.0.s8 %v5472
        %v5474 = vperm.slane %v5468, %v5473
        %v5476 = vunpack.c.l.s4 1934713408
        %v5477 = vunpack.c.0.s8 %v5476
        %v5478 = vperm.slane %v5470, %v5477
        %v5479 = vrot.slane %v5462, 4
        %v5480 = vsel %vm791, %v5479, %v5438
        %v5481 = vrot.slane %v5438, 4
        %v5482 = vsel %vm791, %v5462, %v5481
        %v5483 = vrot.slane %v5466, 4
        %v5484 = vsel %vm791, %v5483, %v5442
        %v5485 = vrot.slane %v5442, 4
        %v5486 = vsel %vm791, %v5466, %v5485
        %v5487 = vrot.slane %v5474, 4
        %v5488 = vsel %vm791, %v5487, %v5450
        %v5489 = vrot.slane %v5450, 4
        %v5490 = vsel %vm791, %v5474, %v5489
        %v5491 = vrot.slane %v5478, 4
        %v5492 = vsel %vm791, %v5491, %v5454
        %v5493 = vrot.slane %v5454, 4
        %v5494 = vsel %vm791, %v5478, %v5493
        %v5495 = vrot.slane %v3804, 4
        %v5496 = vsel %vm791, %v5495, %v3800
        %v5497 = vrot.slane %v3800, 4
        %v5498 = vsel %vm791, %v3804, %v5497
        %v5500 = vunpack.c.l.s4 1983009808
        %v5501 = vunpack.c.0.s8 %v5500
        %v5502 = vperm.slane %v5496, %v5501
        %v5504 = vunpack.c.l.s4 1983009808
        %v5505 = vunpack.c.0.s8 %v5504
        %v5506 = vperm.slane %v5498, %v5505
        %v5507 = vrot.slane %v3806, 4
        %v5508 = vsel %vm791, %v5507, %v3802
        %v5509 = vrot.slane %v3802, 4
        %v5510 = vsel %vm791, %v3806, %v5509
        %v5512 = vunpack.c.l.s4 1983009808
        %v5513 = vunpack.c.0.s8 %v5512
        %v5514 = vperm.slane %v5508, %v5513
        %v5516 = vunpack.c.l.s4 1983009808
        %v5517 = vunpack.c.0.s8 %v5516
        %v5518 = vperm.slane %v5510, %v5517
        %v5519 = vrot.slane %v3812, 4
        %v5520 = vsel %vm791, %v5519, %v3808
        %v5521 = vrot.slane %v3808, 4
        %v5522 = vsel %vm791, %v3812, %v5521
        %v5524 = vunpack.c.l.s4 1983009808
        %v5525 = vunpack.c.0.s8 %v5524
        %v5526 = vperm.slane %v5520, %v5525
        %v5528 = vunpack.c.l.s4 1983009808
        %v5529 = vunpack.c.0.s8 %v5528
        %v5530 = vperm.slane %v5522, %v5529
        %v5531 = vrot.slane %v3814, 4
        %v5532 = vsel %vm791, %v5531, %v3810
        %v5533 = vrot.slane %v3810, 4
        %v5534 = vsel %vm791, %v3814, %v5533
        %v5536 = vunpack.c.l.s4 1983009808
        %v5537 = vunpack.c.0.s8 %v5536
        %v5538 = vperm.slane %v5532, %v5537
        %v5540 = vunpack.c.l.s4 1983009808
        %v5541 = vunpack.c.0.s8 %v5540
        %v5542 = vperm.slane %v5534, %v5541
        %v5543 = vrot.slane %v5514, 4
        %v5544 = vsel %vm791, %v5543, %v5502
        %v5545 = vrot.slane %v5502, 4
        %v5546 = vsel %vm791, %v5514, %v5545
        %v5548 = vunpack.c.l.s4 1934713408
        %v5549 = vunpack.c.0.s8 %v5548
        %v5550 = vperm.slane %v5544, %v5549
        %v5552 = vunpack.c.l.s4 1934713408
        %v5553 = vunpack.c.0.s8 %v5552
        %v5554 = vperm.slane %v5546, %v5553
        %v5555 = vrot.slane %v5518, 4
        %v5556 = vsel %vm791, %v5555, %v5506
        %v5557 = vrot.slane %v5506, 4
        %v5558 = vsel %vm791, %v5518, %v5557
        %v5560 = vunpack.c.l.s4 1934713408
        %v5561 = vunpack.c.0.s8 %v5560
        %v5562 = vperm.slane %v5556, %v5561
        %v5564 = vunpack.c.l.s4 1934713408
        %v5565 = vunpack.c.0.s8 %v5564
        %v5566 = vperm.slane %v5558, %v5565
        %v5567 = vrot.slane %v5538, 4
        %v5568 = vsel %vm791, %v5567, %v5526
        %v5569 = vrot.slane %v5526, 4
        %v5570 = vsel %vm791, %v5538, %v5569
        %v5572 = vunpack.c.l.s4 1934713408
        %v5573 = vunpack.c.0.s8 %v5572
        %v5574 = vperm.slane %v5568, %v5573
        %v5576 = vunpack.c.l.s4 1934713408
        %v5577 = vunpack.c.0.s8 %v5576
        %v5578 = vperm.slane %v5570, %v5577
        %v5579 = vrot.slane %v5542, 4
        %v5580 = vsel %vm791, %v5579, %v5530
        %v5581 = vrot.slane %v5530, 4
        %v5582 = vsel %vm791, %v5542, %v5581
        %v5584 = vunpack.c.l.s4 1934713408
        %v5585 = vunpack.c.0.s8 %v5584
        %v5586 = vperm.slane %v5580, %v5585
        %v5588 = vunpack.c.l.s4 1934713408
        %v5589 = vunpack.c.0.s8 %v5588
        %v5590 = vperm.slane %v5582, %v5589
        %v5591 = vrot.slane %v5574, 4
        %v5592 = vsel %vm791, %v5591, %v5550
        %v5593 = vrot.slane %v5550, 4
        %v5594 = vsel %vm791, %v5574, %v5593
        %v5595 = vrot.slane %v5578, 4
        %v5596 = vsel %vm791, %v5595, %v5554
        %v5597 = vrot.slane %v5554, 4
        %v5598 = vsel %vm791, %v5578, %v5597
        %v5599 = vrot.slane %v5586, 4
        %v5600 = vsel %vm791, %v5599, %v5562
        %v5601 = vrot.slane %v5562, 4
        %v5602 = vsel %vm791, %v5586, %v5601
        %v5603 = vrot.slane %v5590, 4
        %v5604 = vsel %vm791, %v5603, %v5566
        %v5605 = vrot.slane %v5566, 4
        %v5606 = vsel %vm791, %v5590, %v5605
        %v5607 = vrot.slane %v3916, 4
        %v5608 = vsel %vm791, %v5607, %v3912
        %v5609 = vrot.slane %v3912, 4
        %v5610 = vsel %vm791, %v3916, %v5609
        %v5612 = vunpack.c.l.s4 1983009808
        %v5613 = vunpack.c.0.s8 %v5612
        %v5614 = vperm.slane %v5608, %v5613
        %v5616 = vunpack.c.l.s4 1983009808
        %v5617 = vunpack.c.0.s8 %v5616
        %v5618 = vperm.slane %v5610, %v5617
        %v5619 = vrot.slane %v3918, 4
        %v5620 = vsel %vm791, %v5619, %v3914
        %v5621 = vrot.slane %v3914, 4
        %v5622 = vsel %vm791, %v3918, %v5621
        %v5624 = vunpack.c.l.s4 1983009808
        %v5625 = vunpack.c.0.s8 %v5624
        %v5626 = vperm.slane %v5620, %v5625
        %v5628 = vunpack.c.l.s4 1983009808
        %v5629 = vunpack.c.0.s8 %v5628
        %v5630 = vperm.slane %v5622, %v5629
        %v5631 = vrot.slane %v3924, 4
        %v5632 = vsel %vm791, %v5631, %v3920
        %v5633 = vrot.slane %v3920, 4
        %v5634 = vsel %vm791, %v3924, %v5633
        %v5636 = vunpack.c.l.s4 1983009808
        %v5637 = vunpack.c.0.s8 %v5636
        %v5638 = vperm.slane %v5632, %v5637
        %v5640 = vunpack.c.l.s4 1983009808
        %v5641 = vunpack.c.0.s8 %v5640
        %v5642 = vperm.slane %v5634, %v5641
        %v5643 = vrot.slane %v3926, 4
        %v5644 = vsel %vm791, %v5643, %v3922
        %v5645 = vrot.slane %v3922, 4
        %v5646 = vsel %vm791, %v3926, %v5645
        %v5648 = vunpack.c.l.s4 1983009808
        %v5649 = vunpack.c.0.s8 %v5648
        %v5650 = vperm.slane %v5644, %v5649
        %v5652 = vunpack.c.l.s4 1983009808
        %v5653 = vunpack.c.0.s8 %v5652
        %v5654 = vperm.slane %v5646, %v5653
        %v5655 = vrot.slane %v5626, 4
        %v5656 = vsel %vm791, %v5655, %v5614
        %v5657 = vrot.slane %v5614, 4
        %v5658 = vsel %vm791, %v5626, %v5657
        %v5660 = vunpack.c.l.s4 1934713408
        %v5661 = vunpack.c.0.s8 %v5660
        %v5662 = vperm.slane %v5656, %v5661
        %v5664 = vunpack.c.l.s4 1934713408
        %v5665 = vunpack.c.0.s8 %v5664
        %v5666 = vperm.slane %v5658, %v5665
        %v5667 = vrot.slane %v5630, 4
        %v5668 = vsel %vm791, %v5667, %v5618
        %v5669 = vrot.slane %v5618, 4
        %v5670 = vsel %vm791, %v5630, %v5669
        %v5672 = vunpack.c.l.s4 1934713408
        %v5673 = vunpack.c.0.s8 %v5672
        %v5674 = vperm.slane %v5668, %v5673
        %v5676 = vunpack.c.l.s4 1934713408
        %v5677 = vunpack.c.0.s8 %v5676
        %v5678 = vperm.slane %v5670, %v5677
        %v5679 = vrot.slane %v5650, 4
        %v5680 = vsel %vm791, %v5679, %v5638
        %v5681 = vrot.slane %v5638, 4
        %v5682 = vsel %vm791, %v5650, %v5681
        %v5684 = vunpack.c.l.s4 1934713408
        %v5685 = vunpack.c.0.s8 %v5684
        %v5686 = vperm.slane %v5680, %v5685
        %v5688 = vunpack.c.l.s4 1934713408
        %v5689 = vunpack.c.0.s8 %v5688
        %v5690 = vperm.slane %v5682, %v5689
        %v5691 = vrot.slane %v5654, 4
        %v5692 = vsel %vm791, %v5691, %v5642
        %v5693 = vrot.slane %v5642, 4
        %v5694 = vsel %vm791, %v5654, %v5693
        %v5696 = vunpack.c.l.s4 1934713408
        %v5697 = vunpack.c.0.s8 %v5696
        %v5698 = vperm.slane %v5692, %v5697
        %v5700 = vunpack.c.l.s4 1934713408
        %v5701 = vunpack.c.0.s8 %v5700
        %v5702 = vperm.slane %v5694, %v5701
        %v5703 = vrot.slane %v5686, 4
        %v5704 = vsel %vm791, %v5703, %v5662
        %v5705 = vrot.slane %v5662, 4
        %v5706 = vsel %vm791, %v5686, %v5705
        %v5707 = vrot.slane %v5690, 4
        %v5708 = vsel %vm791, %v5707, %v5666
        %v5709 = vrot.slane %v5666, 4
        %v5710 = vsel %vm791, %v5690, %v5709
        %v5711 = vrot.slane %v5698, 4
        %v5712 = vsel %vm791, %v5711, %v5674
        %v5713 = vrot.slane %v5674, 4
        %v5714 = vsel %vm791, %v5698, %v5713
        %v5715 = vrot.slane %v5702, 4
        %v5716 = vsel %vm791, %v5715, %v5678
        %v5717 = vrot.slane %v5678, 4
        %v5718 = vsel %vm791, %v5702, %v5717
        %v5719 = vrot.slane %v4028, 4
        %v5720 = vsel %vm791, %v5719, %v4024
        %v5721 = vrot.slane %v4024, 4
        %v5722 = vsel %vm791, %v4028, %v5721
        %v5724 = vunpack.c.l.s4 1983009808
        %v5725 = vunpack.c.0.s8 %v5724
        %v5726 = vperm.slane %v5720, %v5725
        %v5728 = vunpack.c.l.s4 1983009808
        %v5729 = vunpack.c.0.s8 %v5728
        %v5730 = vperm.slane %v5722, %v5729
        %v5731 = vrot.slane %v4030, 4
        %v5732 = vsel %vm791, %v5731, %v4026
        %v5733 = vrot.slane %v4026, 4
        %v5734 = vsel %vm791, %v4030, %v5733
        %v5736 = vunpack.c.l.s4 1983009808
        %v5737 = vunpack.c.0.s8 %v5736
        %v5738 = vperm.slane %v5732, %v5737
        %v5740 = vunpack.c.l.s4 1983009808
        %v5741 = vunpack.c.0.s8 %v5740
        %v5742 = vperm.slane %v5734, %v5741
        %v5743 = vrot.slane %v4036, 4
        %v5744 = vsel %vm791, %v5743, %v4032
        %v5745 = vrot.slane %v4032, 4
        %v5746 = vsel %vm791, %v4036, %v5745
        %v5748 = vunpack.c.l.s4 1983009808
        %v5749 = vunpack.c.0.s8 %v5748
        %v5750 = vperm.slane %v5744, %v5749
        %v5752 = vunpack.c.l.s4 1983009808
        %v5753 = vunpack.c.0.s8 %v5752
        %v5754 = vperm.slane %v5746, %v5753
        %v5755 = vrot.slane %v4038, 4
        %v5756 = vsel %vm791, %v5755, %v4034
        %v5757 = vrot.slane %v4034, 4
        %v5758 = vsel %vm791, %v4038, %v5757
        %v5760 = vunpack.c.l.s4 1983009808
        %v5761 = vunpack.c.0.s8 %v5760
        %v5762 = vperm.slane %v5756, %v5761
        %v5764 = vunpack.c.l.s4 1983009808
        %v5765 = vunpack.c.0.s8 %v5764
        %v5766 = vperm.slane %v5758, %v5765
        %v5767 = vrot.slane %v5738, 4
        %v5768 = vsel %vm791, %v5767, %v5726
        %v5769 = vrot.slane %v5726, 4
        %v5770 = vsel %vm791, %v5738, %v5769
        %v5772 = vunpack.c.l.s4 1934713408
        %v5773 = vunpack.c.0.s8 %v5772
        %v5774 = vperm.slane %v5768, %v5773
        %v5776 = vunpack.c.l.s4 1934713408
        %v5777 = vunpack.c.0.s8 %v5776
        %v5778 = vperm.slane %v5770, %v5777
        %v5779 = vrot.slane %v5742, 4
        %v5780 = vsel %vm791, %v5779, %v5730
        %v5781 = vrot.slane %v5730, 4
        %v5782 = vsel %vm791, %v5742, %v5781
        %v5784 = vunpack.c.l.s4 1934713408
        %v5785 = vunpack.c.0.s8 %v5784
        %v5786 = vperm.slane %v5780, %v5785
        %v5788 = vunpack.c.l.s4 1934713408
        %v5789 = vunpack.c.0.s8 %v5788
        %v5790 = vperm.slane %v5782, %v5789
        %v5791 = vrot.slane %v5762, 4
        %v5792 = vsel %vm791, %v5791, %v5750
        %v5793 = vrot.slane %v5750, 4
        %v5794 = vsel %vm791, %v5762, %v5793
        %v5796 = vunpack.c.l.s4 1934713408
        %v5797 = vunpack.c.0.s8 %v5796
        %v5798 = vperm.slane %v5792, %v5797
        %v5800 = vunpack.c.l.s4 1934713408
        %v5801 = vunpack.c.0.s8 %v5800
        %v5802 = vperm.slane %v5794, %v5801
        %v5803 = vrot.slane %v5766, 4
        %v5804 = vsel %vm791, %v5803, %v5754
        %v5805 = vrot.slane %v5754, 4
        %v5806 = vsel %vm791, %v5766, %v5805
        %v5808 = vunpack.c.l.s4 1934713408
        %v5809 = vunpack.c.0.s8 %v5808
        %v5810 = vperm.slane %v5804, %v5809
        %v5812 = vunpack.c.l.s4 1934713408
        %v5813 = vunpack.c.0.s8 %v5812
        %v5814 = vperm.slane %v5806, %v5813
        %v5815 = vrot.slane %v5798, 4
        %v5816 = vsel %vm791, %v5815, %v5774
        %v5817 = vrot.slane %v5774, 4
        %v5818 = vsel %vm791, %v5798, %v5817
        %v5819 = vrot.slane %v5802, 4
        %v5820 = vsel %vm791, %v5819, %v5778
        %v5821 = vrot.slane %v5778, 4
        %v5822 = vsel %vm791, %v5802, %v5821
        %v5823 = vrot.slane %v5810, 4
        %v5824 = vsel %vm791, %v5823, %v5786
        %v5825 = vrot.slane %v5786, 4
        %v5826 = vsel %vm791, %v5810, %v5825
        %v5827 = vrot.slane %v5814, 4
        %v5828 = vsel %vm791, %v5827, %v5790
        %v5829 = vrot.slane %v5790, 4
        %v5830 = vsel %vm791, %v5814, %v5829
        %v5831 = vrot.slane %v4140, 4
        %v5832 = vsel %vm791, %v5831, %v4136
        %v5833 = vrot.slane %v4136, 4
        %v5834 = vsel %vm791, %v4140, %v5833
        %v5836 = vunpack.c.l.s4 1983009808
        %v5837 = vunpack.c.0.s8 %v5836
        %v5838 = vperm.slane %v5832, %v5837
        %v5840 = vunpack.c.l.s4 1983009808
        %v5841 = vunpack.c.0.s8 %v5840
        %v5842 = vperm.slane %v5834, %v5841
        %v5843 = vrot.slane %v4142, 4
        %v5844 = vsel %vm791, %v5843, %v4138
        %v5845 = vrot.slane %v4138, 4
        %v5846 = vsel %vm791, %v4142, %v5845
        %v5848 = vunpack.c.l.s4 1983009808
        %v5849 = vunpack.c.0.s8 %v5848
        %v5850 = vperm.slane %v5844, %v5849
        %v5852 = vunpack.c.l.s4 1983009808
        %v5853 = vunpack.c.0.s8 %v5852
        %v5854 = vperm.slane %v5846, %v5853
        %v5855 = vrot.slane %v4148, 4
        %v5856 = vsel %vm791, %v5855, %v4144
        %v5857 = vrot.slane %v4144, 4
        %v5858 = vsel %vm791, %v4148, %v5857
        %v5860 = vunpack.c.l.s4 1983009808
        %v5861 = vunpack.c.0.s8 %v5860
        %v5862 = vperm.slane %v5856, %v5861
        %v5864 = vunpack.c.l.s4 1983009808
        %v5865 = vunpack.c.0.s8 %v5864
        %v5866 = vperm.slane %v5858, %v5865
        %v5867 = vrot.slane %v4150, 4
        %v5868 = vsel %vm791, %v5867, %v4146
        %v5869 = vrot.slane %v4146, 4
        %v5870 = vsel %vm791, %v4150, %v5869
        %v5872 = vunpack.c.l.s4 1983009808
        %v5873 = vunpack.c.0.s8 %v5872
        %v5874 = vperm.slane %v5868, %v5873
        %v5876 = vunpack.c.l.s4 1983009808
        %v5877 = vunpack.c.0.s8 %v5876
        %v5878 = vperm.slane %v5870, %v5877
        %v5879 = vrot.slane %v5850, 4
        %v5880 = vsel %vm791, %v5879, %v5838
        %v5881 = vrot.slane %v5838, 4
        %v5882 = vsel %vm791, %v5850, %v5881
        %v5884 = vunpack.c.l.s4 1934713408
        %v5885 = vunpack.c.0.s8 %v5884
        %v5886 = vperm.slane %v5880, %v5885
        %v5888 = vunpack.c.l.s4 1934713408
        %v5889 = vunpack.c.0.s8 %v5888
        %v5890 = vperm.slane %v5882, %v5889
        %v5891 = vrot.slane %v5854, 4
        %v5892 = vsel %vm791, %v5891, %v5842
        %v5893 = vrot.slane %v5842, 4
        %v5894 = vsel %vm791, %v5854, %v5893
        %v5896 = vunpack.c.l.s4 1934713408
        %v5897 = vunpack.c.0.s8 %v5896
        %v5898 = vperm.slane %v5892, %v5897
        %v5900 = vunpack.c.l.s4 1934713408
        %v5901 = vunpack.c.0.s8 %v5900
        %v5902 = vperm.slane %v5894, %v5901
        %v5903 = vrot.slane %v5874, 4
        %v5904 = vsel %vm791, %v5903, %v5862
        %v5905 = vrot.slane %v5862, 4
        %v5906 = vsel %vm791, %v5874, %v5905
        %v5908 = vunpack.c.l.s4 1934713408
        %v5909 = vunpack.c.0.s8 %v5908
        %v5910 = vperm.slane %v5904, %v5909
        %v5912 = vunpack.c.l.s4 1934713408
        %v5913 = vunpack.c.0.s8 %v5912
        %v5914 = vperm.slane %v5906, %v5913
        %v5915 = vrot.slane %v5878, 4
        %v5916 = vsel %vm791, %v5915, %v5866
        %v5917 = vrot.slane %v5866, 4
        %v5918 = vsel %vm791, %v5878, %v5917
        %v5920 = vunpack.c.l.s4 1934713408
        %v5921 = vunpack.c.0.s8 %v5920
        %v5922 = vperm.slane %v5916, %v5921
        %v5924 = vunpack.c.l.s4 1934713408
        %v5925 = vunpack.c.0.s8 %v5924
        %v5926 = vperm.slane %v5918, %v5925
        %v5927 = vrot.slane %v5910, 4
        %v5928 = vsel %vm791, %v5927, %v5886
        %v5929 = vrot.slane %v5886, 4
        %v5930 = vsel %vm791, %v5910, %v5929
        %v5931 = vrot.slane %v5914, 4
        %v5932 = vsel %vm791, %v5931, %v5890
        %v5933 = vrot.slane %v5890, 4
        %v5934 = vsel %vm791, %v5914, %v5933
        %v5935 = vrot.slane %v5922, 4
        %v5936 = vsel %vm791, %v5935, %v5898
        %v5937 = vrot.slane %v5898, 4
        %v5938 = vsel %vm791, %v5922, %v5937
        %v5939 = vrot.slane %v5926, 4
        %v5940 = vsel %vm791, %v5939, %v5902
        %v5941 = vrot.slane %v5902, 4
        %v5942 = vsel %vm791, %v5926, %v5941
        %v5943 = vrot.slane %v4252, 4
        %v5944 = vsel %vm791, %v5943, %v4248
        %v5945 = vrot.slane %v4248, 4
        %v5946 = vsel %vm791, %v4252, %v5945
        %v5948 = vunpack.c.l.s4 1983009808
        %v5949 = vunpack.c.0.s8 %v5948
        %v5950 = vperm.slane %v5944, %v5949
        %v5952 = vunpack.c.l.s4 1983009808
        %v5953 = vunpack.c.0.s8 %v5952
        %v5954 = vperm.slane %v5946, %v5953
        %v5955 = vrot.slane %v4254, 4
        %v5956 = vsel %vm791, %v5955, %v4250
        %v5957 = vrot.slane %v4250, 4
        %v5958 = vsel %vm791, %v4254, %v5957
        %v5960 = vunpack.c.l.s4 1983009808
        %v5961 = vunpack.c.0.s8 %v5960
        %v5962 = vperm.slane %v5956, %v5961
        %v5964 = vunpack.c.l.s4 1983009808
        %v5965 = vunpack.c.0.s8 %v5964
        %v5966 = vperm.slane %v5958, %v5965
        %v5967 = vrot.slane %v4260, 4
        %v5968 = vsel %vm791, %v5967, %v4256
        %v5969 = vrot.slane %v4256, 4
        %v5970 = vsel %vm791, %v4260, %v5969
        %v5972 = vunpack.c.l.s4 1983009808
        %v5973 = vunpack.c.0.s8 %v5972
        %v5974 = vperm.slane %v5968, %v5973
        %v5976 = vunpack.c.l.s4 1983009808
        %v5977 = vunpack.c.0.s8 %v5976
        %v5978 = vperm.slane %v5970, %v5977
        %v5979 = vrot.slane %v4262, 4
        %v5980 = vsel %vm791, %v5979, %v4258
        %v5981 = vrot.slane %v4258, 4
        %v5982 = vsel %vm791, %v4262, %v5981
        %v5984 = vunpack.c.l.s4 1983009808
        %v5985 = vunpack.c.0.s8 %v5984
        %v5986 = vperm.slane %v5980, %v5985
        %v5988 = vunpack.c.l.s4 1983009808
        %v5989 = vunpack.c.0.s8 %v5988
        %v5990 = vperm.slane %v5982, %v5989
        %v5991 = vrot.slane %v5962, 4
        %v5992 = vsel %vm791, %v5991, %v5950
        %v5993 = vrot.slane %v5950, 4
        %v5994 = vsel %vm791, %v5962, %v5993
        %v5996 = vunpack.c.l.s4 1934713408
        %v5997 = vunpack.c.0.s8 %v5996
        %v5998 = vperm.slane %v5992, %v5997
        %v6000 = vunpack.c.l.s4 1934713408
        %v6001 = vunpack.c.0.s8 %v6000
        %v6002 = vperm.slane %v5994, %v6001
        %v6003 = vrot.slane %v5966, 4
        %v6004 = vsel %vm791, %v6003, %v5954
        %v6005 = vrot.slane %v5954, 4
        %v6006 = vsel %vm791, %v5966, %v6005
        %v6008 = vunpack.c.l.s4 1934713408
        %v6009 = vunpack.c.0.s8 %v6008
        %v6010 = vperm.slane %v6004, %v6009
        %v6012 = vunpack.c.l.s4 1934713408
        %v6013 = vunpack.c.0.s8 %v6012
        %v6014 = vperm.slane %v6006, %v6013
        %v6015 = vrot.slane %v5986, 4
        %v6016 = vsel %vm791, %v6015, %v5974
        %v6017 = vrot.slane %v5974, 4
        %v6018 = vsel %vm791, %v5986, %v6017
        %v6020 = vunpack.c.l.s4 1934713408
        %v6021 = vunpack.c.0.s8 %v6020
        %v6022 = vperm.slane %v6016, %v6021
        %v6024 = vunpack.c.l.s4 1934713408
        %v6025 = vunpack.c.0.s8 %v6024
        %v6026 = vperm.slane %v6018, %v6025
        %v6027 = vrot.slane %v5990, 4
        %v6028 = vsel %vm791, %v6027, %v5978
        %v6029 = vrot.slane %v5978, 4
        %v6030 = vsel %vm791, %v5990, %v6029
        %v6032 = vunpack.c.l.s4 1934713408
        %v6033 = vunpack.c.0.s8 %v6032
        %v6034 = vperm.slane %v6028, %v6033
        %v6036 = vunpack.c.l.s4 1934713408
        %v6037 = vunpack.c.0.s8 %v6036
        %v6038 = vperm.slane %v6030, %v6037
        %v6039 = vrot.slane %v6022, 4
        %v6040 = vsel %vm791, %v6039, %v5998
        %v6041 = vrot.slane %v5998, 4
        %v6042 = vsel %vm791, %v6022, %v6041
        %v6043 = vrot.slane %v6026, 4
        %v6044 = vsel %vm791, %v6043, %v6002
        %v6045 = vrot.slane %v6002, 4
        %v6046 = vsel %vm791, %v6026, %v6045
        %v6047 = vrot.slane %v6034, 4
        %v6048 = vsel %vm791, %v6047, %v6010
        %v6049 = vrot.slane %v6010, 4
        %v6050 = vsel %vm791, %v6034, %v6049
        %v6051 = vrot.slane %v6038, 4
        %v6052 = vsel %vm791, %v6051, %v6014
        %v6053 = vrot.slane %v6014, 4
        %v6054 = vsel %vm791, %v6038, %v6053
        %v6055 = vrot.slane %v4364, 4
        %v6056 = vsel %vm791, %v6055, %v4360
        %v6057 = vrot.slane %v4360, 4
        %v6058 = vsel %vm791, %v4364, %v6057
        %v6060 = vunpack.c.l.s4 1983009808
        %v6061 = vunpack.c.0.s8 %v6060
        %v6062 = vperm.slane %v6056, %v6061
        %v6064 = vunpack.c.l.s4 1983009808
        %v6065 = vunpack.c.0.s8 %v6064
        %v6066 = vperm.slane %v6058, %v6065
        %v6067 = vrot.slane %v4366, 4
        %v6068 = vsel %vm791, %v6067, %v4362
        %v6069 = vrot.slane %v4362, 4
        %v6070 = vsel %vm791, %v4366, %v6069
        %v6072 = vunpack.c.l.s4 1983009808
        %v6073 = vunpack.c.0.s8 %v6072
        %v6074 = vperm.slane %v6068, %v6073
        %v6076 = vunpack.c.l.s4 1983009808
        %v6077 = vunpack.c.0.s8 %v6076
        %v6078 = vperm.slane %v6070, %v6077
        %v6079 = vrot.slane %v4372, 4
        %v6080 = vsel %vm791, %v6079, %v4368
        %v6081 = vrot.slane %v4368, 4
        %v6082 = vsel %vm791, %v4372, %v6081
        %v6084 = vunpack.c.l.s4 1983009808
        %v6085 = vunpack.c.0.s8 %v6084
        %v6086 = vperm.slane %v6080, %v6085
        %v6088 = vunpack.c.l.s4 1983009808
        %v6089 = vunpack.c.0.s8 %v6088
        %v6090 = vperm.slane %v6082, %v6089
        %v6091 = vrot.slane %v4374, 4
        %v6092 = vsel %vm791, %v6091, %v4370
        %v6093 = vrot.slane %v4370, 4
        %v6094 = vsel %vm791, %v4374, %v6093
        %v6096 = vunpack.c.l.s4 1983009808
        %v6097 = vunpack.c.0.s8 %v6096
        %v6098 = vperm.slane %v6092, %v6097
        %v6100 = vunpack.c.l.s4 1983009808
        %v6101 = vunpack.c.0.s8 %v6100
        %v6102 = vperm.slane %v6094, %v6101
        %v6103 = vrot.slane %v6074, 4
        %v6104 = vsel %vm791, %v6103, %v6062
        %v6105 = vrot.slane %v6062, 4
        %v6106 = vsel %vm791, %v6074, %v6105
        %v6108 = vunpack.c.l.s4 1934713408
        %v6109 = vunpack.c.0.s8 %v6108
        %v6110 = vperm.slane %v6104, %v6109
        %v6112 = vunpack.c.l.s4 1934713408
        %v6113 = vunpack.c.0.s8 %v6112
        %v6114 = vperm.slane %v6106, %v6113
        %v6115 = vrot.slane %v6078, 4
        %v6116 = vsel %vm791, %v6115, %v6066
        %v6117 = vrot.slane %v6066, 4
        %v6118 = vsel %vm791, %v6078, %v6117
        %v6120 = vunpack.c.l.s4 1934713408
        %v6121 = vunpack.c.0.s8 %v6120
        %v6122 = vperm.slane %v6116, %v6121
        %v6124 = vunpack.c.l.s4 1934713408
        %v6125 = vunpack.c.0.s8 %v6124
        %v6126 = vperm.slane %v6118, %v6125
        %v6127 = vrot.slane %v6098, 4
        %v6128 = vsel %vm791, %v6127, %v6086
        %v6129 = vrot.slane %v6086, 4
        %v6130 = vsel %vm791, %v6098, %v6129
        %v6132 = vunpack.c.l.s4 1934713408
        %v6133 = vunpack.c.0.s8 %v6132
        %v6134 = vperm.slane %v6128, %v6133
        %v6136 = vunpack.c.l.s4 1934713408
        %v6137 = vunpack.c.0.s8 %v6136
        %v6138 = vperm.slane %v6130, %v6137
        %v6139 = vrot.slane %v6102, 4
        %v6140 = vsel %vm791, %v6139, %v6090
        %v6141 = vrot.slane %v6090, 4
        %v6142 = vsel %vm791, %v6102, %v6141
        %v6144 = vunpack.c.l.s4 1934713408
        %v6145 = vunpack.c.0.s8 %v6144
        %v6146 = vperm.slane %v6140, %v6145
        %v6148 = vunpack.c.l.s4 1934713408
        %v6149 = vunpack.c.0.s8 %v6148
        %v6150 = vperm.slane %v6142, %v6149
        %v6151 = vrot.slane %v6134, 4
        %v6152 = vsel %vm791, %v6151, %v6110
        %v6153 = vrot.slane %v6110, 4
        %v6154 = vsel %vm791, %v6134, %v6153
        %v6155 = vrot.slane %v6138, 4
        %v6156 = vsel %vm791, %v6155, %v6114
        %v6157 = vrot.slane %v6114, 4
        %v6158 = vsel %vm791, %v6138, %v6157
        %v6159 = vrot.slane %v6146, 4
        %v6160 = vsel %vm791, %v6159, %v6122
        %v6161 = vrot.slane %v6122, 4
        %v6162 = vsel %vm791, %v6146, %v6161
        %v6163 = vrot.slane %v6150, 4
        %v6164 = vsel %vm791, %v6163, %v6126
        %v6165 = vrot.slane %v6126, 4
        %v6166 = vsel %vm791, %v6150, %v6165
        %6183 = vrot.lane.b32.xlu0 %v4474, 16
        %v6184 = vpop.permute.xlu0 %6183
        %6185 = vrot.lane.b32.xlu0 %v4586, 16
        %v6186 = vpop.permute.xlu0 %6185
        %6187 = vrot.lane.b32.xlu0 %v4698, 16
        %v6188 = vpop.permute.xlu0 %6187
        %6189 = vrot.lane.b32.xlu0 %v4810, 16
        %v6190 = vpop.permute.xlu0 %6189
        %6191 = vrot.lane.b32.xlu0 %v4922, 16
        %v6192 = vpop.permute.xlu0 %6191
        %6193 = vrot.lane.b32.xlu0 %v5034, 16
        %v6194 = vpop.permute.xlu0 %6193
        %6195 = vrot.lane.b32.xlu0 %v5146, 16
        %v6196 = vpop.permute.xlu0 %6195
        %6197 = vrot.lane.b32.xlu0 %v5258, 16
        %v6198 = vpop.permute.xlu0 %6197
        %6199 = vrot.lane.b32.xlu0 %v5370, 16
        %v6200 = vpop.permute.xlu0 %6199
        %6201 = vrot.lane.b32.xlu0 %v5482, 16
        %v6202 = vpop.permute.xlu0 %6201
        %6203 = vrot.lane.b32.xlu0 %v5594, 16
        %v6204 = vpop.permute.xlu0 %6203
        %6205 = vrot.lane.b32.xlu0 %v5706, 16
        %v6206 = vpop.permute.xlu0 %6205
        %6207 = vrot.lane.b32.xlu0 %v5818, 16
        %v6208 = vpop.permute.xlu0 %6207
        %6209 = vrot.lane.b32.xlu0 %v5930, 16
        %v6210 = vpop.permute.xlu0 %6209
        %6211 = vrot.lane.b32.xlu0 %v6042, 16
        %v6212 = vpop.permute.xlu0 %6211
        %6213 = vrot.lane.b32.xlu0 %v6154, 16
        %v6214 = vpop.permute.xlu0 %6213
        %6247 = vrot.lane.b32.xlu0 %v4476, 32
        %v6248 = vpop.permute.xlu0 %6247
        %6249 = vrot.lane.b32.xlu0 %v4588, 32
        %v6250 = vpop.permute.xlu0 %6249
        %6251 = vrot.lane.b32.xlu0 %v4700, 32
        %v6252 = vpop.permute.xlu0 %6251
        %6253 = vrot.lane.b32.xlu0 %v4812, 32
        %v6254 = vpop.permute.xlu0 %6253
        %6255 = vrot.lane.b32.xlu0 %v4924, 32
        %v6256 = vpop.permute.xlu0 %6255
        %6257 = vrot.lane.b32.xlu0 %v5036, 32
        %v6258 = vpop.permute.xlu0 %6257
        %6259 = vrot.lane.b32.xlu0 %v5148, 32
        %v6260 = vpop.permute.xlu0 %6259
        %6261 = vrot.lane.b32.xlu0 %v5260, 32
        %v6262 = vpop.permute.xlu0 %6261
        %6263 = vrot.lane.b32.xlu0 %v5372, 32
        %v6264 = vpop.permute.xlu0 %6263
        %6265 = vrot.lane.b32.xlu0 %v5484, 32
        %v6266 = vpop.permute.xlu0 %6265
        %6267 = vrot.lane.b32.xlu0 %v5596, 32
        %v6268 = vpop.permute.xlu0 %6267
        %6269 = vrot.lane.b32.xlu0 %v5708, 32
        %v6270 = vpop.permute.xlu0 %6269
        %6271 = vrot.lane.b32.xlu0 %v5820, 32
        %v6272 = vpop.permute.xlu0 %6271
        %6273 = vrot.lane.b32.xlu0 %v5932, 32
        %v6274 = vpop.permute.xlu0 %6273
        %6275 = vrot.lane.b32.xlu0 %v6044, 32
        %v6276 = vpop.permute.xlu0 %6275
        %6277 = vrot.lane.b32.xlu0 %v6156, 32
        %v6278 = vpop.permute.xlu0 %6277
        %6311 = vrot.lane.b32.xlu0 %v4478, 48
        %v6312 = vpop.permute.xlu0 %6311
        %6313 = vrot.lane.b32.xlu0 %v4590, 48
        %v6314 = vpop.permute.xlu0 %6313
        %6315 = vrot.lane.b32.xlu0 %v4702, 48
        %v6316 = vpop.permute.xlu0 %6315
        %6317 = vrot.lane.b32.xlu0 %v4814, 48
        %v6318 = vpop.permute.xlu0 %6317
        %6319 = vrot.lane.b32.xlu0 %v4926, 48
        %v6320 = vpop.permute.xlu0 %6319
        %6321 = vrot.lane.b32.xlu0 %v5038, 48
        %v6322 = vpop.permute.xlu0 %6321
        %6323 = vrot.lane.b32.xlu0 %v5150, 48
        %v6324 = vpop.permute.xlu0 %6323
        %6325 = vrot.lane.b32.xlu0 %v5262, 48
        %v6326 = vpop.permute.xlu0 %6325
        %6327 = vrot.lane.b32.xlu0 %v5374, 48
        %v6328 = vpop.permute.xlu0 %6327
        %6329 = vrot.lane.b32.xlu0 %v5486, 48
        %v6330 = vpop.permute.xlu0 %6329
        %6331 = vrot.lane.b32.xlu0 %v5598, 48
        %v6332 = vpop.permute.xlu0 %6331
        %6333 = vrot.lane.b32.xlu0 %v5710, 48
        %v6334 = vpop.permute.xlu0 %6333
        %6335 = vrot.lane.b32.xlu0 %v5822, 48
        %v6336 = vpop.permute.xlu0 %6335
        %6337 = vrot.lane.b32.xlu0 %v5934, 48
        %v6338 = vpop.permute.xlu0 %6337
        %6339 = vrot.lane.b32.xlu0 %v6046, 48
        %v6340 = vpop.permute.xlu0 %6339
        %6341 = vrot.lane.b32.xlu0 %v6158, 48
        %v6342 = vpop.permute.xlu0 %6341
        %6375 = vrot.lane.b32.xlu0 %v4480, 64
        %v6376 = vpop.permute.xlu0 %6375
        %6377 = vrot.lane.b32.xlu0 %v4592, 64
        %v6378 = vpop.permute.xlu0 %6377
        %6379 = vrot.lane.b32.xlu0 %v4704, 64
        %v6380 = vpop.permute.xlu0 %6379
        %6381 = vrot.lane.b32.xlu0 %v4816, 64
        %v6382 = vpop.permute.xlu0 %6381
        %6383 = vrot.lane.b32.xlu0 %v4928, 64
        %v6384 = vpop.permute.xlu0 %6383
        %6385 = vrot.lane.b32.xlu0 %v5040, 64
        %v6386 = vpop.permute.xlu0 %6385
        %6387 = vrot.lane.b32.xlu0 %v5152, 64
        %v6388 = vpop.permute.xlu0 %6387
        %6389 = vrot.lane.b32.xlu0 %v5264, 64
        %v6390 = vpop.permute.xlu0 %6389
        %6391 = vrot.lane.b32.xlu0 %v5376, 64
        %v6392 = vpop.permute.xlu0 %6391
        %6393 = vrot.lane.b32.xlu0 %v5488, 64
        %v6394 = vpop.permute.xlu0 %6393
        %6395 = vrot.lane.b32.xlu0 %v5600, 64
        %v6396 = vpop.permute.xlu0 %6395
        %6397 = vrot.lane.b32.xlu0 %v5712, 64
        %v6398 = vpop.permute.xlu0 %6397
        %6399 = vrot.lane.b32.xlu0 %v5824, 64
        %v6400 = vpop.permute.xlu0 %6399
        %6401 = vrot.lane.b32.xlu0 %v5936, 64
        %v6402 = vpop.permute.xlu0 %6401
        %6403 = vrot.lane.b32.xlu0 %v6048, 64
        %v6404 = vpop.permute.xlu0 %6403
        %6405 = vrot.lane.b32.xlu0 %v6160, 64
        %v6406 = vpop.permute.xlu0 %6405
        %6439 = vrot.lane.b32.xlu0 %v4482, 80
        %v6440 = vpop.permute.xlu0 %6439
        %6441 = vrot.lane.b32.xlu0 %v4594, 80
        %v6442 = vpop.permute.xlu0 %6441
        %6443 = vrot.lane.b32.xlu0 %v4706, 80
        %v6444 = vpop.permute.xlu0 %6443
        %6445 = vrot.lane.b32.xlu0 %v4818, 80
        %v6446 = vpop.permute.xlu0 %6445
        %6447 = vrot.lane.b32.xlu0 %v4930, 80
        %v6448 = vpop.permute.xlu0 %6447
        %6449 = vrot.lane.b32.xlu0 %v5042, 80
        %v6450 = vpop.permute.xlu0 %6449
        %6451 = vrot.lane.b32.xlu0 %v5154, 80
        %v6452 = vpop.permute.xlu0 %6451
        %6453 = vrot.lane.b32.xlu0 %v5266, 80
        %v6454 = vpop.permute.xlu0 %6453
        %6455 = vrot.lane.b32.xlu0 %v5378, 80
        %v6456 = vpop.permute.xlu0 %6455
        %6457 = vrot.lane.b32.xlu0 %v5490, 80
        %v6458 = vpop.permute.xlu0 %6457
        %6459 = vrot.lane.b32.xlu0 %v5602, 80
        %v6460 = vpop.permute.xlu0 %6459
        %6461 = vrot.lane.b32.xlu0 %v5714, 80
        %v6462 = vpop.permute.xlu0 %6461
        %6463 = vrot.lane.b32.xlu0 %v5826, 80
        %v6464 = vpop.permute.xlu0 %6463
        %6465 = vrot.lane.b32.xlu0 %v5938, 80
        %v6466 = vpop.permute.xlu0 %6465
        %6467 = vrot.lane.b32.xlu0 %v6050, 80
        %v6468 = vpop.permute.xlu0 %6467
        %6469 = vrot.lane.b32.xlu0 %v6162, 80
        %v6470 = vpop.permute.xlu0 %6469
        %6503 = vrot.lane.b32.xlu0 %v4484, 96
        %v6504 = vpop.permute.xlu0 %6503
        %6505 = vrot.lane.b32.xlu0 %v4596, 96
        %v6506 = vpop.permute.xlu0 %6505
        %6507 = vrot.lane.b32.xlu0 %v4708, 96
        %v6508 = vpop.permute.xlu0 %6507
        %6509 = vrot.lane.b32.xlu0 %v4820, 96
        %v6510 = vpop.permute.xlu0 %6509
        %6511 = vrot.lane.b32.xlu0 %v4932, 96
        %v6512 = vpop.permute.xlu0 %6511
        %6513 = vrot.lane.b32.xlu0 %v5044, 96
        %v6514 = vpop.permute.xlu0 %6513
        %6515 = vrot.lane.b32.xlu0 %v5156, 96
        %v6516 = vpop.permute.xlu0 %6515
        %6517 = vrot.lane.b32.xlu0 %v5268, 96
        %v6518 = vpop.permute.xlu0 %6517
        %6519 = vrot.lane.b32.xlu0 %v5380, 96
        %v6520 = vpop.permute.xlu0 %6519
        %6521 = vrot.lane.b32.xlu0 %v5492, 96
        %v6522 = vpop.permute.xlu0 %6521
        %6523 = vrot.lane.b32.xlu0 %v5604, 96
        %v6524 = vpop.permute.xlu0 %6523
        %6525 = vrot.lane.b32.xlu0 %v5716, 96
        %v6526 = vpop.permute.xlu0 %6525
        %6527 = vrot.lane.b32.xlu0 %v5828, 96
        %v6528 = vpop.permute.xlu0 %6527
        %6529 = vrot.lane.b32.xlu0 %v5940, 96
        %v6530 = vpop.permute.xlu0 %6529
        %6531 = vrot.lane.b32.xlu0 %v6052, 96
        %v6532 = vpop.permute.xlu0 %6531
        %6533 = vrot.lane.b32.xlu0 %v6164, 96
        %v6534 = vpop.permute.xlu0 %6533
        %6567 = vrot.lane.b32.xlu0 %v4486, 112
        %v6568 = vpop.permute.xlu0 %6567
        %6569 = vrot.lane.b32.xlu0 %v4598, 112
        %v6570 = vpop.permute.xlu0 %6569
        %6571 = vrot.lane.b32.xlu0 %v4710, 112
        %v6572 = vpop.permute.xlu0 %6571
        %6573 = vrot.lane.b32.xlu0 %v4822, 112
        %v6574 = vpop.permute.xlu0 %6573
        %6575 = vrot.lane.b32.xlu0 %v4934, 112
        %v6576 = vpop.permute.xlu0 %6575
        %6577 = vrot.lane.b32.xlu0 %v5046, 112
        %v6578 = vpop.permute.xlu0 %6577
        %6579 = vrot.lane.b32.xlu0 %v5158, 112
        %v6580 = vpop.permute.xlu0 %6579
        %6581 = vrot.lane.b32.xlu0 %v5270, 112
        %v6582 = vpop.permute.xlu0 %6581
        %6583 = vrot.lane.b32.xlu0 %v5382, 112
        %v6584 = vpop.permute.xlu0 %6583
        %6585 = vrot.lane.b32.xlu0 %v5494, 112
        %v6586 = vpop.permute.xlu0 %6585
        %6587 = vrot.lane.b32.xlu0 %v5606, 112
        %v6588 = vpop.permute.xlu0 %6587
        %6589 = vrot.lane.b32.xlu0 %v5718, 112
        %v6590 = vpop.permute.xlu0 %6589
        %6591 = vrot.lane.b32.xlu0 %v5830, 112
        %v6592 = vpop.permute.xlu0 %6591
        %6593 = vrot.lane.b32.xlu0 %v5942, 112
        %v6594 = vpop.permute.xlu0 %6593
        %6595 = vrot.lane.b32.xlu0 %v6054, 112
        %v6596 = vpop.permute.xlu0 %6595
        %6597 = vrot.lane.b32.xlu0 %v6166, 112
        %v6598 = vpop.permute.xlu0 %6597
        %vm6615 = vcmask 130048
        %v6616 = vsel %vm6615, %v4472, %v6184
        %v6617 = vsel %vm6615, %v4584, %v6186
        %v6618 = vsel %vm6615, %v4696, %v6188
        %v6619 = vsel %vm6615, %v4808, %v6190
        %v6620 = vsel %vm6615, %v4920, %v6192
        %v6621 = vsel %vm6615, %v5032, %v6194
        %v6622 = vsel %vm6615, %v5144, %v6196
        %v6623 = vsel %vm6615, %v5256, %v6198
        %v6624 = vsel %vm6615, %v5368, %v6200
        %v6625 = vsel %vm6615, %v5480, %v6202
        %v6626 = vsel %vm6615, %v5592, %v6204
        %v6627 = vsel %vm6615, %v5704, %v6206
        %v6628 = vsel %vm6615, %v5816, %v6208
        %v6629 = vsel %vm6615, %v5928, %v6210
        %v6630 = vsel %vm6615, %v6040, %v6212
        %v6631 = vsel %vm6615, %v6152, %v6214
        %v6632 = vsel %vm259, %v6616, %v6248
        %v6633 = vsel %vm259, %v6617, %v6250
        %v6634 = vsel %vm259, %v6618, %v6252
        %v6635 = vsel %vm259, %v6619, %v6254
        %v6636 = vsel %vm259, %v6620, %v6256
        %v6637 = vsel %vm259, %v6621, %v6258
        %v6638 = vsel %vm259, %v6622, %v6260
        %v6639 = vsel %vm259, %v6623, %v6262
        %v6640 = vsel %vm259, %v6624, %v6264
        %v6641 = vsel %vm259, %v6625, %v6266
        %v6642 = vsel %vm259, %v6626, %v6268
        %v6643 = vsel %vm259, %v6627, %v6270
        %v6644 = vsel %vm259, %v6628, %v6272
        %v6645 = vsel %vm259, %v6629, %v6274
        %v6646 = vsel %vm259, %v6630, %v6276
        %v6647 = vsel %vm259, %v6631, %v6278
        %vm6648 = vcmask 392192
        %v6649 = vsel %vm6648, %v6632, %v6312
        %v6650 = vsel %vm6648, %v6633, %v6314
        %v6651 = vsel %vm6648, %v6634, %v6316
        %v6652 = vsel %vm6648, %v6635, %v6318
        %v6653 = vsel %vm6648, %v6636, %v6320
        %v6654 = vsel %vm6648, %v6637, %v6322
        %v6655 = vsel %vm6648, %v6638, %v6324
        %v6656 = vsel %vm6648, %v6639, %v6326
        %v6657 = vsel %vm6648, %v6640, %v6328
        %v6658 = vsel %vm6648, %v6641, %v6330
        %v6659 = vsel %vm6648, %v6642, %v6332
        %v6660 = vsel %vm6648, %v6643, %v6334
        %v6661 = vsel %vm6648, %v6644, %v6336
        %v6662 = vsel %vm6648, %v6645, %v6338
        %v6663 = vsel %vm6648, %v6646, %v6340
        %v6664 = vsel %vm6648, %v6647, %v6342
        %v6665 = vsel %vm367, %v6649, %v6376
        %v6666 = vsel %vm367, %v6650, %v6378
        %v6667 = vsel %vm367, %v6651, %v6380
        %v6668 = vsel %vm367, %v6652, %v6382
        %v6669 = vsel %vm367, %v6653, %v6384
        %v6670 = vsel %vm367, %v6654, %v6386
        %v6671 = vsel %vm367, %v6655, %v6388
        %v6672 = vsel %vm367, %v6656, %v6390
        %v6673 = vsel %vm367, %v6657, %v6392
        %v6674 = vsel %vm367, %v6658, %v6394
        %v6675 = vsel %vm367, %v6659, %v6396
        %v6676 = vsel %vm367, %v6660, %v6398
        %v6677 = vsel %vm367, %v6661, %v6400
        %v6678 = vsel %vm367, %v6662, %v6402
        %v6679 = vsel %vm367, %v6663, %v6404
        %v6680 = vsel %vm367, %v6664, %v6406
        %vm6681 = vcmask 654336
        %v6682 = vsel %vm6681, %v6665, %v6440
        %v6683 = vsel %vm6681, %v6666, %v6442
        %v6684 = vsel %vm6681, %v6667, %v6444
        %v6685 = vsel %vm6681, %v6668, %v6446
        %v6686 = vsel %vm6681, %v6669, %v6448
        %v6687 = vsel %vm6681, %v6670, %v6450
        %v6688 = vsel %vm6681, %v6671, %v6452
        %v6689 = vsel %vm6681, %v6672, %v6454
        %v6690 = vsel %vm6681, %v6673, %v6456
        %v6691 = vsel %vm6681, %v6674, %v6458
        %v6692 = vsel %vm6681, %v6675, %v6460
        %v6693 = vsel %vm6681, %v6676, %v6462
        %v6694 = vsel %vm6681, %v6677, %v6464
        %v6695 = vsel %vm6681, %v6678, %v6466
        %v6696 = vsel %vm6681, %v6679, %v6468
        %v6697 = vsel %vm6681, %v6680, %v6470
        %vm6698 = vcmask 785408
        %v6699 = vsel %vm6698, %v6682, %v6504
        %v6700 = vsel %vm6698, %v6683, %v6506
        %v6701 = vsel %vm6698, %v6684, %v6508
        %v6702 = vsel %vm6698, %v6685, %v6510
        %v6703 = vsel %vm6698, %v6686, %v6512
        %v6704 = vsel %vm6698, %v6687, %v6514
        %v6705 = vsel %vm6698, %v6688, %v6516
        %v6706 = vsel %vm6698, %v6689, %v6518
        %v6707 = vsel %vm6698, %v6690, %v6520
        %v6708 = vsel %vm6698, %v6691, %v6522
        %v6709 = vsel %vm6698, %v6692, %v6524
        %v6710 = vsel %vm6698, %v6693, %v6526
        %v6711 = vsel %vm6698, %v6694, %v6528
        %v6712 = vsel %vm6698, %v6695, %v6530
        %v6713 = vsel %vm6698, %v6696, %v6532
        %v6714 = vsel %vm6698, %v6697, %v6534
        %vm6715 = vcmask 916480
        %v6716 = vsel %vm6715, %v6699, %v6568
        %v6717 = vsel %vm6715, %v6700, %v6570
        %v6718 = vsel %vm6715, %v6701, %v6572
        %v6719 = vsel %vm6715, %v6702, %v6574
        %v6720 = vsel %vm6715, %v6703, %v6576
        %v6721 = vsel %vm6715, %v6704, %v6578
        %v6722 = vsel %vm6715, %v6705, %v6580
        %v6723 = vsel %vm6715, %v6706, %v6582
        %v6724 = vsel %vm6715, %v6707, %v6584
        %v6725 = vsel %vm6715, %v6708, %v6586
        %v6726 = vsel %vm6715, %v6709, %v6588
        %v6727 = vsel %vm6715, %v6710, %v6590
        %v6728 = vsel %vm6715, %v6711, %v6592
        %v6729 = vsel %vm6715, %v6712, %v6594
        %v6730 = vsel %vm6715, %v6713, %v6596
        %v6731 = vsel %vm6715, %v6714, %v6598
        %6732 = vst [vmem:[%s218] sm:$0xff] %v6716
        %6733 = vst [vmem:[%s218 + $0x8] sm:$0xff] %v6717
        %6734 = vst [vmem:[%s218 + $0x10] sm:$0xff] %v6718
        %6735 = vst [vmem:[%s218 + $0x18] sm:$0xff] %v6719
        %6736 = vst [vmem:[%s218 + $0x20] sm:$0xff] %v6720
        %6737 = vst [vmem:[%s218 + $0x28] sm:$0xff] %v6721
        %6738 = vst [vmem:[%s218 + $0x30] sm:$0xff] %v6722
        %6739 = vst [vmem:[%s218 + $0x38] sm:$0xff] %v6723
        %6740 = vst [vmem:[%s218 + $0x40] sm:$0xff] %v6724
        %6741 = vst [vmem:[%s218 + $0x48] sm:$0xff] %v6725
        %6742 = vst [vmem:[%s218 + $0x50] sm:$0xff] %v6726
        %6743 = vst [vmem:[%s218 + $0x58] sm:$0xff] %v6727
        %6744 = vst [vmem:[%s218 + $0x60] sm:$0xff] %v6728
        %6745 = vst [vmem:[%s218 + $0x68] sm:$0xff] %v6729
        %6746 = vst [vmem:[%s218 + $0x70] sm:$0xff] %v6730
        %6747 = vst [vmem:[%s218 + $0x78] sm:$0xff] %v6731
        %s6748 = sand.u32 %s137, 1
        %s6749 = scalar_lea.sflag [#allocation3], %s6748
        %s6750 = sand.u32 %s137, 1
        %s6751 = smul.addr %s6750, 128
        %s6752 = scalar_lea.vmem [#allocation2], %s6751
        // Predicated region
        $region41: #{tpu_custom_call.1} parent=39 // pred_check
          %p6753 = pneg %p147
        $region42: #{tpu_custom_call.1} parent=39 // pred_check_branch
          %6755 = sbr.rel (%p6753) target = $region44
        $region43: #{tpu_custom_call.1} parent=39 // pred_region
          %s6756 = smul.u32 16, %s19
          %6758 = vsyncadd %s6749, 0
          %s6759 = smul.addr %s6756, 8
          %s6760 = scalar_lea.hbm %s5, %s6759
          %s6761 = sshll.u32 %s6752, 4
          %s6762 = int_to_ptr.vmem [resolvable:$true] %s6761
          %s6763 = sshll.u32 %s6760, 4
          %s6764 = int_to_ptr.hbm [resolvable:$true] %s6763
          %6769 = dma.vmem_to_hbm [thread:$0]  %s6762, 2048, %s6764, %s6749, 128, 128, 8
        $region44: #{tpu_custom_call.1} parent=39 // pred_fallthru
          _
      $region40: #{tpu_custom_call.1} parent=5 // pred_fallthru
        _
      %p6770 = scmp.le.s32.totalorder 2, %s14
      // Predicated region
      $region45: #{tpu_custom_call.1} parent=5 // pred_check
        %p6771 = pneg %p6770
      $region46: #{tpu_custom_call.1} parent=5 // pred_check_branch
        %6773 = sbr.rel (%p6771) target = $region48
      $region47: #{tpu_custom_call.1} parent=5 // pred_region
        %s6774 = ssub.s32 %s14, 2
        // Predicated region
        $region49: #{tpu_custom_call.1} parent=47 // pred_check
          %p6775 = pneg %p153
        $region50: #{tpu_custom_call.1} parent=47 // pred_check_branch
          %6777 = sbr.rel (%p6775) target = $region52
        $region51: #{tpu_custom_call.1} parent=47 // pred_region
          %s6778 = sand.u32 %s138, 1
          %s6779 = scalar_lea.sflag [#allocation3], %s6778
          %s6780 = sand.u32 %s138, 1
          %s6781 = smul.addr %s6780, 128
          %s6782 = scalar_lea.vmem [#allocation2], %s6781
          %6784 = dma.done %s6779, 2048
        $region52: #{tpu_custom_call.1} parent=47 // pred_fallthru
          _
      $region48: #{tpu_custom_call.1} parent=5 // pred_fallthru
        _
    $region6: #{tpu_custom_call.1} parent=1 // loop_footer
      %s18 = sadd.s32 1, %s14
    $region7: #{tpu_custom_call.1} parent=1 // loop_footer_branch
      %13 = sbr.rel target = $region3
    $region8: #{tpu_custom_call.1} parent=1 // loop_exit
      _
    %6785 = vsyncpa [#allocation3], 1
    %s6786 = scalar_lea.sflag [#allocation3], 1
    %6787 = vsyncpa %s6786, 1

// kernel: tpu_custom_call.1
$region0: #{tpu_custom_call.1}
  #allocation0 [shape = 'u32[]', space=smem, size = 0x4, offset = 0x4, fixed_abs, tag = 'smem constant byte address 0x4 - core index']
  #allocation1 [shape = 'u32[72,128]{1,0:T(1,128)}', space=vmem, size = 0x9000, scoped, tag = 'internal scratch']
  %s0 = inlined_call_operand.vmem [shape: f32[256,32], index: 0, kind: input, shape index: {}]
  %s1 = inlined_call_operand.vmem [shape: bf16[32,64], index: 1, kind: input, shape index: {}]
  %s2 = inlined_call_operand.vmem [shape: f32[1,64], index: 2, kind: input, shape index: {}]
  %s3 = inlined_call_operand.vmem [shape: bf16[64,256], index: 3, kind: input, shape index: {}]
  %s4 = inlined_call_operand.vmem [shape: f32[1,256], index: 4, kind: input, shape index: {}]
  %s5 = inlined_call_operand.hbm [shape: f32[256,256], index: 5, kind: output, shape index: {}]
  %s6 = sld [smem:[#allocation0]]
  $region53: #{tpu_custom_call.1} parent=0
    _
  %s8 = ssub.s32 1, %s6
  %s9 = scalar_select 0, %s8, %s6
  $region1: #{tpu_custom_call.1} parent=0
    #allocation2 [shape = 'u8[131072]{0}', space=vmem, size = 0x20000, scoped, tag = 'output window, operand 0']
    #allocation3 [shape = 's32[2]{0}', space=sflag, size = 0x8, scoped, tag = 'scoped memory for tpu_custom_call.1']
    %10 = vsyncpa [#allocation3], 0
    %s11 = scalar_lea.sflag [#allocation3], 1
    %12 = vsyncpa %s11, 0
    loop: start=0, step=1, limit=6
    $region2: #{tpu_custom_call.1} parent=1 // loop_pre_header
      _
    $region3: #{tpu_custom_call.1} parent=1 // loop_header
      %s14 = sphi 0, %s18
      %p15 = scmp.ge.s32.totalorder %s14, 6
      %s24 = sphi 0, %s26
      %s27 = sphi 0, %s24
      %s28 = sphi 0, %s27
      %s44 = sphi 0, %s28
      %s48 = sphi 0, %s48
      %s50 = sphi 0, %s48
      %s51 = sphi 0, %s50
      %s65 = sphi 0, %s51
      %s69 = sphi 0, %s69
      %s71 = sphi 0, %s69
      %s72 = sphi 0, %s71
      %s86 = sphi 0, %s72
      %s90 = sphi 0, %s90
      %s92 = sphi 0, %s90
      %s93 = sphi 0, %s92
      %s107 = sphi 0, %s93
      %s111 = sphi 0, %s111
      %s113 = sphi 0, %s111
      %s114 = sphi 0, %s113
      %s128 = sphi 0, %s114
      %s134 = sphi 0, %s136
      %s137 = sphi 0, %s134
      %s138 = sphi 0, %s137
      %s154 = sphi 0, %s138
    $region4: #{tpu_custom_call.1} parent=1 // loop_header_branch
      %17 = sbr.rel (%p15) target = $region8
    $region5: #{tpu_custom_call.1} parent=1 // loop_body
      %s19 = ssub.s32 %s14, 1
      %s20 = ssub.s32 %s14, 2
      %s21 = sadd.s32 %s14, 1
      %s22 = ssub.s32 %s14, %s21
      %p23 = scmp.eq.s32.totalorder %s22, 0
      %s25 = sadd.s32 %s24, 1
      %s26 = scalar_select %p23, %s24, %s25
      %p29 = pneg %p23
      %p30 = scmp.eq.s32.totalorder %s14, 3
      %p31 = por %p29, %p30
      %p32 = scmp.ne.s32.totalorder %s24, %s27
      %p33 = scmp.eq.s32.totalorder %s14, 0
      %p34 = por %p32, %p33
      %p35 = scmp.ne.s32.totalorder %s24, %s27
      %p36 = scmp.eq.s32.totalorder %s19, 3
      %p37 = por %p35, %p36
      %p38 = scmp.ne.s32.totalorder %s27, %s28
      %p39 = scmp.eq.s32.totalorder %s19, 0
      %p40 = por %p38, %p39
      %p41 = scmp.ne.s32.totalorder %s27, %s28
      %p42 = scmp.eq.s32.totalorder %s20, 3
      %p43 = por %p41, %p42
      %p45 = scmp.ne.s32.totalorder %s28, %s44
      %p46 = scmp.eq.s32.totalorder %s20, 0
      %p47 = por %p45, %p46
      %s49 = sadd.s32 %s48, 1
      %p52 = scmp.eq.s32.totalorder %s14, 3
      %p53 = scmp.ne.s32.totalorder %s48, %s50
      %p54 = scmp.eq.s32.totalorder %s14, 0
      %p55 = por %p53, %p54
      %p56 = scmp.ne.s32.totalorder %s48, %s50
      %p57 = scmp.eq.s32.totalorder %s19, 3
      %p58 = por %p56, %p57
      %p59 = scmp.ne.s32.totalorder %s50, %s51
      %p60 = scmp.eq.s32.totalorder %s19, 0
      %p61 = por %p59, %p60
      %p62 = scmp.ne.s32.totalorder %s50, %s51
      %p63 = scmp.eq.s32.totalorder %s20, 3
      %p64 = por %p62, %p63
      %p66 = scmp.ne.s32.totalorder %s51, %s65
      %p67 = scmp.eq.s32.totalorder %s20, 0
      %p68 = por %p66, %p67
      %s70 = sadd.s32 %s69, 1
      %p73 = scmp.eq.s32.totalorder %s14, 3
      %p74 = scmp.ne.s32.totalorder %s69, %s71
      %p75 = scmp.eq.s32.totalorder %s14, 0
      %p76 = por %p74, %p75
      %p77 = scmp.ne.s32.totalorder %s69, %s71
      %p78 = scmp.eq.s32.totalorder %s19, 3
      %p79 = por %p77, %p78
      %p80 = scmp.ne.s32.totalorder %s71, %s72
      %p81 = scmp.eq.s32.totalorder %s19, 0
      %p82 = por %p80, %p81
      %p83 = scmp.ne.s32.totalorder %s71, %s72
      %p84 = scmp.eq.s32.totalorder %s20, 3
      %p85 = por %p83, %p84
      %p87 = scmp.ne.s32.totalorder %s72, %s86
      %p88 = scmp.eq.s32.totalorder %s20, 0
      %p89 = por %p87, %p88
      %s91 = sadd.s32 %s90, 1
      %p94 = scmp.eq.s32.totalorder %s14, 3
      %p95 = scmp.ne.s32.totalorder %s90, %s92
      %p96 = scmp.eq.s32.totalorder %s14, 0
      %p97 = por %p95, %p96
      %p98 = scmp.ne.s32.totalorder %s90, %s92
      %p99 = scmp.eq.s32.totalorder %s19, 3
      %p100 = por %p98, %p99
      %p101 = scmp.ne.s32.totalorder %s92, %s93
      %p102 = scmp.eq.s32.totalorder %s19, 0
      %p103 = por %p101, %p102
      %p104 = scmp.ne.s32.totalorder %s92, %s93
      %p105 = scmp.eq.s32.totalorder %s20, 3
      %p106 = por %p104, %p105
      %p108 = scmp.ne.s32.totalorder %s93, %s107
      %p109 = scmp.eq.s32.totalorder %s20, 0
      %p110 = por %p108, %p109
      %s112 = sadd.s32 %s111, 1
      %p115 = scmp.eq.s32.totalorder %s14, 3
      %p116 = scmp.ne.s32.totalorder %s111, %s113
      %p117 = scmp.eq.s32.totalorder %s14, 0
      %p118 = por %p116, %p117
      %p119 = scmp.ne.s32.totalorder %s111, %s113
      %p120 = scmp.eq.s32.totalorder %s19, 3
      %p121 = por %p119, %p120
      %p122 = scmp.ne.s32.totalorder %s113, %s114
      %p123 = scmp.eq.s32.totalorder %s19, 0
      %p124 = por %p122, %p123
      %p125 = scmp.ne.s32.totalorder %s113, %s114
      %p126 = scmp.eq.s32.totalorder %s20, 3
      %p127 = por %p125, %p126
      %p129 = scmp.ne.s32.totalorder %s114, %s128
      %p130 = scmp.eq.s32.totalorder %s20, 0
      %p131 = por %p129, %p130
      %s132 = ssub.s32 %s14, %s21
      %p133 = scmp.eq.s32.totalorder %s132, 0
      %s135 = sadd.s32 %s134, 1
      %s136 = scalar_select %p133, %s134, %s135
      %p139 = pneg %p133
      %p140 = scmp.eq.s32.totalorder %s14, 3
      %p141 = por %p139, %p140
      %p142 = scmp.ne.s32.totalorder %s134, %s137
      %p143 = scmp.eq.s32.totalorder %s14, 0
      %p144 = por %p142, %p143
      %p145 = scmp.ne.s32.totalorder %s134, %s137
      %p146 = scmp.eq.s32.totalorder %s19, 3
      %p147 = por %p145, %p146
      %p148 = scmp.ne.s32.totalorder %s137, %s138
      %p149 = scmp.eq.s32.totalorder %s19, 0
      %p150 = por %p148, %p149
      %p151 = scmp.ne.s32.totalorder %s137, %s138
      %p152 = scmp.eq.s32.totalorder %s20, 3
      %p153 = por %p151, %p152
      %p155 = scmp.ne.s32.totalorder %s138, %s154
      %p156 = scmp.eq.s32.totalorder %s20, 0
      %p157 = por %p155, %p156
      %p158 = scmp.le.s32.totalorder 1, %s14
      %p159 = scmp.lt.s32.totalorder %s14, 5
      %p160 = pnand %p158, %p159
      %p161 = pneg %p160
      // Predicated region
      $region9: #{tpu_custom_call.1} parent=5 // pred_check
        _
      $region10: #{tpu_custom_call.1} parent=5 // pred_check_branch
        %163 = sbr.rel (%p160) target = $region12
      $region11: #{tpu_custom_call.1} parent=5 // pred_region
        %s164 = ssub.s32 %s14, 1
        // Predicated region
        $region13: #{tpu_custom_call.1} parent=11 // pred_check
          %p165 = pneg %p61
        $region14: #{tpu_custom_call.1} parent=11 // pred_check_branch
          %167 = sbr.rel (%p165) target = $region16
        $region15: #{tpu_custom_call.1} parent=11 // pred_region
          _
        $region16: #{tpu_custom_call.1} parent=11 // pred_fallthru
          _
        // Predicated region
        $region17: #{tpu_custom_call.1} parent=11 // pred_check
          %p168 = pneg %p82
        $region18: #{tpu_custom_call.1} parent=11 // pred_check_branch
          %170 = sbr.rel (%p168) target = $region20
        $region19: #{tpu_custom_call.1} parent=11 // pred_region
          _
        $region20: #{tpu_custom_call.1} parent=11 // pred_fallthru
          _
        // Predicated region
        $region21: #{tpu_custom_call.1} parent=11 // pred_check
          %p171 = pneg %p103
        $region22: #{tpu_custom_call.1} parent=11 // pred_check_branch
          %173 = sbr.rel (%p171) target = $region24
        $region23: #{tpu_custom_call.1} parent=11 // pred_region
          _
        $region24: #{tpu_custom_call.1} parent=11 // pred_fallthru
          _
        // Predicated region
        $region25: #{tpu_custom_call.1} parent=11 // pred_check
          %p174 = pneg %p124
        $region26: #{tpu_custom_call.1} parent=11 // pred_check_branch
          %176 = sbr.rel (%p174) target = $region28
        $region27: #{tpu_custom_call.1} parent=11 // pred_region
          _
        $region28: #{tpu_custom_call.1} parent=11 // pred_fallthru
          _
      $region12: #{tpu_custom_call.1} parent=5 // pred_fallthru
        _
      %p177 = scmp.lt.s32.totalorder %s14, 4
      // Predicated region
      $region29: #{tpu_custom_call.1} parent=5 // pred_check
        %p178 = pneg %p177
      $region30: #{tpu_custom_call.1} parent=5 // pred_check_branch
        %180 = sbr.rel (%p178) target = $region32
      $region31: #{tpu_custom_call.1} parent=5 // pred_region
        // Predicated region
        $region33: #{tpu_custom_call.1} parent=31 // pred_check
          %p181 = pneg %p34
        $region34: #{tpu_custom_call.1} parent=31 // pred_check_branch
          %183 = sbr.rel (%p181) target = $region36
        $region35: #{tpu_custom_call.1} parent=31 // pred_region
          %s184 = smul.u32 8, %s14
          %p185 = scmp.lt.s32.totalorder %s184, 31
          %s186 = scalar_select %p185, %s184, 31
          %s187 = smul.addr %s186, 8
          %s188 = scalar_lea.vmem %s0, %s187
          %s189 = smul.u32 8, %s14
        $region36: #{tpu_custom_call.1} parent=31 // pred_fallthru
          _
      $region32: #{tpu_custom_call.1} parent=5 // pred_fallthru
        _
      %p190 = scmp.le.s32.totalorder 1, %s14
      %p191 = scmp.lt.s32.totalorder %s14, 5
      %p192 = pnand %p190, %p191
      %p193 = pneg %p192
      // Predicated region
      $region37: #{tpu_custom_call.1} parent=5 // pred_check
        _
      $region38: #{tpu_custom_call.1} parent=5 // pred_check_branch
        %195 = sbr.rel (%p192) target = $region40
      $region39: #{tpu_custom_call.1} parent=5 // pred_region
        %s196 = ssub.s32 %s14, 1
        %s197 = smul.u32 8, %s19
        %p198 = scmp.lt.s32.totalorder %s197, 31
        %s199 = scalar_select %p198, %s197, 31
        %s200 = smul.addr %s199, 8
        %s201 = scalar_lea.vmem %s0, %s200
        %p202 = pneg %p40
        %p203 = pneg %p37
        %p204 = pneg %p61
        %p205 = pneg %p58
        %p206 = pneg %p82
        %p207 = pneg %p79
        %p208 = pneg %p103
        %p209 = pneg %p100
        %p210 = pneg %p124
        %p211 = pneg %p121
        %p212 = pneg %p150
        %p213 = pneg %p147
        %s214 = sand.u32 %s137, 1
        %s215 = scalar_lea.sflag [#allocation3], %s214
        %s216 = sand.u32 %s137, 1
        %s217 = smul.addr %s216, 128
        %s218 = scalar_lea.vmem [#allocation2], %s217
        %s219 = smul.u32 8, %s19
        %p220 = scmp.lt.s32.totalorder %s219, 31
        %s221 = scalar_select %p220, %s219, 31
        %s222 = smul.addr %s221, 8
        %s223 = scalar_lea.vmem %s0, %s222
        %s224 = smul.u32 8, %s19
        %s225 = smul.u32 8, %s19
        %v227 = vld [vmem:[%s223] sm:$0xff]
        %v228 = vld [vmem:[%s223 + $0x8] sm:$0xff]
        %v229 = vld [vmem:[%s223 + $0x10] sm:$0xff]
        %v230 = vld [vmem:[%s223 + $0x18] sm:$0xff]
        %v231 = vld [vmem:[%s223 + $0x20] sm:$0xff]
        %v232 = vld [vmem:[%s223 + $0x28] sm:$0xff]
        %v233 = vld [vmem:[%s223 + $0x30] sm:$0xff]
        %v234 = vld [vmem:[%s223 + $0x38] sm:$0xff]
        %v235 = vpack.c.bf16 %v228, %v227
        %v236 = vpack.c.bf16 %v230, %v229
        %v237 = vpack.c.bf16 %v232, %v231
        %v238 = vpack.c.bf16 %v234, %v233
        %v239 = vld [vmem:[%s1] sm:$0xf]
        %v240 = vld [vmem:[%s1 + $0x4] sm:$0xf]
        %v241 = vld [vmem:[%s1 + $0x8] sm:$0xf]
        %v242 = vld [vmem:[%s1 + $0xc] sm:$0xf]
        %v243 = vld [vmem:[%s2] sm:$0x1]
        %v245 = vperm.slane %v243, 0
        %v251 = vunpack.c.l.b16 %v239
        %v252 = vunpack.c.l.b16 %v240
        %v253 = vunpack.c.l.b16 %v241
        %v254 = vunpack.c.l.b16 %v242
        %v255 = vpack.c.b16 %v252, %v251
        %v256 = vpack.c.b16 %v254, %v253
        %vm259 = vcmask 261120
        %v261 = vsel %vm259, %v235, 0
        %v264 = vsel %vm259, %v236, 0
        %v267 = vsel %vm259, %v237, 0
        %v270 = vsel %vm259, %v238, 0
        %272 = vmatpush.bf16.msra.mxu0 0
        %273 = vmatpush.bf16.msra.mxu0 0
        %274 = vmatpush.bf16.msra.mxu0 0
        %275 = vmatpush.bf16.msra.mxu0 0
        %276 = vmatpush.bf16.msra.mxu0 0
        %277 = vmatpush.bf16.msra.mxu0 0
        %278 = vmatpush.bf16.msra.mxu0 %v256
        %279 = vmatpush.bf16.msra.mxu0 %v255
        %280 = vmatmul.bf16.gmra.mxu0 %v261
        %v281 = vpop.f32.mrf.mxu0
        %v282 = vadd.f32 %v245, %v281
        %v283 = vpop.f32.mrf.mxu0
        %v284 = vadd.f32 %v245, %v283
        %285 = vmatmul.bf16.gmra.mxu0 %v264
        %v286 = vpop.f32.mrf.mxu0
        %v287 = vadd.f32 %v245, %v286
        %v288 = vpop.f32.mrf.mxu0
        %v289 = vadd.f32 %v245, %v288
        %290 = vmatmul.bf16.gmra.mxu0 %v267
        %v291 = vpop.f32.mrf.mxu0
        %v292 = vadd.f32 %v245, %v291
        %v293 = vpop.f32.mrf.mxu0
        %v294 = vadd.f32 %v245, %v293
        %295 = vmatmul.bf16.gmra.mxu0 %v270
        %v296 = vpop.f32.mrf.mxu0
        %v297 = vadd.f32 %v245, %v296
        %v298 = vpop.f32.mrf.mxu0
        %v299 = vadd.f32 %v245, %v298
        %300 = vdwg.mxu0
        %v301 = vtanh.pop %v282
        %v302 = vtanh.pop %v284
        %v303 = vtanh.pop %v287
        %v304 = vtanh.pop %v289
        %v305 = vtanh.pop %v292
        %v306 = vtanh.pop %v294
        %v307 = vtanh.pop %v297
        %v308 = vtanh.pop %v299
        %v309 = vpack.c.bf16 %v302, %v301
        %v310 = vpack.c.bf16 %v304, %v303
        %v311 = vpack.c.bf16 %v306, %v305
        %v312 = vpack.c.bf16 %v308, %v307
        %v313 = vld [vmem:[%s3] sm:$0xff]
        %v314 = vld [vmem:[%s3 + $0x8] sm:$0xff]
        %v315 = vld [vmem:[%s3 + $0x10] sm:$0xff]
        %v316 = vld [vmem:[%s3 + $0x18] sm:$0xff]
        %v317 = vld [vmem:[%s3 + $0x20] sm:$0xff]
        %v318 = vld [vmem:[%s3 + $0x28] sm:$0xff]
        %v319 = vld [vmem:[%s3 + $0x30] sm:$0xff]
        %v320 = vld [vmem:[%s3 + $0x38] sm:$0xff]
        %v321 = vld [vmem:[%s4] sm:$0x3]
        %v323 = vperm.slane %v321, 0
        %v324 = vperm.slane %v321, 1
        %v335 = vunpack.c.l.b16 %v313
        %v336 = vunpack.c.h.b16 %v313
        %v337 = vunpack.c.l.b16 %v314
        %v338 = vunpack.c.h.b16 %v314
        %v339 = vunpack.c.l.b16 %v315
        %v340 = vunpack.c.h.b16 %v315
        %v341 = vunpack.c.l.b16 %v316
        %v342 = vunpack.c.h.b16 %v316
        %v343 = vunpack.c.l.b16 %v317
        %v344 = vunpack.c.h.b16 %v317
        %v345 = vunpack.c.l.b16 %v318
        %v346 = vunpack.c.h.b16 %v318
        %v347 = vunpack.c.l.b16 %v319
        %v348 = vunpack.c.h.b16 %v319
        %v349 = vunpack.c.l.b16 %v320
        %v350 = vunpack.c.h.b16 %v320
        %v351 = vpack.c.b16 %v337, %v335
        %v352 = vpack.c.b16 %v338, %v336
        %v353 = vpack.c.b16 %v341, %v339
        %v354 = vpack.c.b16 %v342, %v340
        %v355 = vpack.c.b16 %v345, %v343
        %v356 = vpack.c.b16 %v346, %v344
        %v357 = vpack.c.b16 %v349, %v347
        %v358 = vpack.c.b16 %v350, %v348
        %vm367 = vcmask 523264
        %v369 = vsel %vm367, %v309, 0
        %v372 = vsel %vm367, %v310, 0
        %v375 = vsel %vm367, %v311, 0
        %v378 = vsel %vm367, %v312, 0
        %380 = vmatpush.bf16.msra.mxu0 0
        %381 = vmatpush.bf16.msra.mxu0 0
        %382 = vmatpush.bf16.msra.mxu0 0
        %383 = vmatpush.bf16.msra.mxu0 0
        %384 = vmatpush.bf16.msra.mxu0 %v357
        %385 = vmatpush.bf16.msra.mxu0 %v355
        %386 = vmatpush.bf16.msra.mxu0 %v353
        %387 = vmatpush.bf16.msra.mxu0 %v351
        %388 = vmatmul.bf16.gmra.mxu0 %v369
        %v389 = vpop.f32.mrf.mxu0
        %v390 = vadd.f32 %v323, %v389
        %v391 = vpop.f32.mrf.mxu0
        %v392 = vadd.f32 %v323, %v391
        %393 = vmatmul.bf16.gmra.mxu0 %v372
        %v394 = vpop.f32.mrf.mxu0
        %v395 = vadd.f32 %v323, %v394
        %v396 = vpop.f32.mrf.mxu0
        %v397 = vadd.f32 %v323, %v396
        %398 = vmatmul.bf16.gmra.mxu0 %v375
        %v399 = vpop.f32.mrf.mxu0
        %v400 = vadd.f32 %v323, %v399
        %v401 = vpop.f32.mrf.mxu0
        %v402 = vadd.f32 %v323, %v401
        %403 = vmatmul.bf16.gmra.mxu0 %v378
        %v404 = vpop.f32.mrf.mxu0
        %v405 = vadd.f32 %v323, %v404
        %v406 = vpop.f32.mrf.mxu0
        %v407 = vadd.f32 %v323, %v406
        %408 = vdwg.mxu0
        %409 = vmatpush.bf16.msra.mxu0 0
        %410 = vmatpush.bf16.msra.mxu0 0
        %411 = vmatpush.bf16.msra.mxu0 0
        %412 = vmatpush.bf16.msra.mxu0 0
        %413 = vmatpush.bf16.msra.mxu0 %v358
        %414 = vmatpush.bf16.msra.mxu0 %v356
        %415 = vmatpush.bf16.msra.mxu0 %v354
        %416 = vmatpush.bf16.msra.mxu0 %v352
        %417 = vmatmul.bf16.gmra.mxu0 %v369
        %v418 = vpop.f32.mrf.mxu0
        %v419 = vadd.f32 %v324, %v418
        %v420 = vpop.f32.mrf.mxu0
        %v421 = vadd.f32 %v324, %v420
        %422 = vmatmul.bf16.gmra.mxu0 %v372
        %v423 = vpop.f32.mrf.mxu0
        %v424 = vadd.f32 %v324, %v423
        %v425 = vpop.f32.mrf.mxu0
        %v426 = vadd.f32 %v324, %v425
        %427 = vmatmul.bf16.gmra.mxu0 %v375
        %v428 = vpop.f32.mrf.mxu0
        %v429 = vadd.f32 %v324, %v428
        %v430 = vpop.f32.mrf.mxu0
        %v431 = vadd.f32 %v324, %v430
        %432 = vmatmul.bf16.gmra.mxu0 %v378
        %v433 = vpop.f32.mrf.mxu0
        %v434 = vadd.f32 %v324, %v433
        %v435 = vpop.f32.mrf.mxu0
        %v436 = vadd.f32 %v324, %v435
        %437 = vdwg.mxu0
        %438 = vst [vmem:[%s218] sm:$0xff] %v390
        %439 = vst [vmem:[%s218 + $0x8] sm:$0xff] %v419
        %440 = vst [vmem:[%s218 + $0x10] sm:$0xff] %v392
        %441 = vst [vmem:[%s218 + $0x18] sm:$0xff] %v421
        %442 = vst [vmem:[%s218 + $0x20] sm:$0xff] %v395
        %443 = vst [vmem:[%s218 + $0x28] sm:$0xff] %v424
        %444 = vst [vmem:[%s218 + $0x30] sm:$0xff] %v397
        %445 = vst [vmem:[%s218 + $0x38] sm:$0xff] %v426
        %446 = vst [vmem:[%s218 + $0x40] sm:$0xff] %v400
        %447 = vst [vmem:[%s218 + $0x48] sm:$0xff] %v429
        %448 = vst [vmem:[%s218 + $0x50] sm:$0xff] %v402
        %449 = vst [vmem:[%s218 + $0x58] sm:$0xff] %v431
        %450 = vst [vmem:[%s218 + $0x60] sm:$0xff] %v405
        %451 = vst [vmem:[%s218 + $0x68] sm:$0xff] %v434
        %452 = vst [vmem:[%s218 + $0x70] sm:$0xff] %v407
        %453 = vst [vmem:[%s218 + $0x78] sm:$0xff] %v436
        %s454 = sand.u32 %s137, 1
        %s455 = scalar_lea.sflag [#allocation3], %s454
        %s456 = sand.u32 %s137, 1
        %s457 = smul.addr %s456, 128
        %s458 = scalar_lea.vmem [#allocation2], %s457
        // Predicated region
        $region41: #{tpu_custom_call.1} parent=39 // pred_check
          %p459 = pneg %p147
        $region42: #{tpu_custom_call.1} parent=39 // pred_check_branch
          %461 = sbr.rel (%p459) target = $region44
        $region43: #{tpu_custom_call.1} parent=39 // pred_region
          %s462 = smul.u32 8, %s19
          %464 = vsyncadd %s455, 0
          %s465 = smul.addr %s462, 2
          %s466 = smul.addr %s465, 8
          %s467 = scalar_lea.hbm %s5, %s466
          %s468 = sshll.u32 %s458, 4
          %s469 = int_to_ptr.vmem [resolvable:$true] %s468
          %s470 = sshll.u32 %s467, 4
          %s471 = int_to_ptr.hbm [resolvable:$true] %s470
          %476 = dma.vmem_to_hbm [thread:$0]  %s469, 2048, %s471, %s455, 256, 256, 16
        $region44: #{tpu_custom_call.1} parent=39 // pred_fallthru
          _
      $region40: #{tpu_custom_call.1} parent=5 // pred_fallthru
        _
      %p477 = scmp.le.s32.totalorder 2, %s14
      // Predicated region
      $region45: #{tpu_custom_call.1} parent=5 // pred_check
        %p478 = pneg %p477
      $region46: #{tpu_custom_call.1} parent=5 // pred_check_branch
        %480 = sbr.rel (%p478) target = $region48
      $region47: #{tpu_custom_call.1} parent=5 // pred_region
        %s481 = ssub.s32 %s14, 2
        // Predicated region
        $region49: #{tpu_custom_call.1} parent=47 // pred_check
          %p482 = pneg %p153
        $region50: #{tpu_custom_call.1} parent=47 // pred_check_branch
          %484 = sbr.rel (%p482) target = $region52
        $region51: #{tpu_custom_call.1} parent=47 // pred_region
          %s485 = sand.u32 %s138, 1
          %s486 = scalar_lea.sflag [#allocation3], %s485
          %s487 = sand.u32 %s138, 1
          %s488 = smul.addr %s487, 128
          %s489 = scalar_lea.vmem [#allocation2], %s488
          %491 = dma.done %s486, 2048
        $region52: #{tpu_custom_call.1} parent=47 // pred_fallthru
          _
      $region48: #{tpu_custom_call.1} parent=5 // pred_fallthru
        _
    $region6: #{tpu_custom_call.1} parent=1 // loop_footer
      %s18 = sadd.s32 1, %s14
    $region7: #{tpu_custom_call.1} parent=1 // loop_footer_branch
      %13 = sbr.rel target = $region3
    $region8: #{tpu_custom_call.1} parent=1 // loop_exit
      _
    %492 = vsyncpa [#allocation3], 1
    %s493 = scalar_lea.sflag [#allocation3], 1
    %494 = vsyncpa %s493, 1

</llo_original>
